<compile_context>
chip_gen: v5e
topology: v5e:2x2
jax: 0.10.0
libtpu: 0.0.40
codegen_flags: <defaults>
</compile_context>

<pallas_src>
import functools

import jax
import jax.numpy as jnp
from jax.experimental import pallas as pl
from jax.experimental.pallas import tpu as pltpu


# ----------------------------- in-kernel helpers -----------------------------

def _layernorm(x, gamma, beta, eps=1e-5):
    # x: (N, D), gamma/beta: (1, D)
    mu = jnp.mean(x, axis=-1, keepdims=True)
    xc = x - mu
    var = jnp.mean(xc * xc, axis=-1, keepdims=True)
    return xc * jax.lax.rsqrt(var + eps) * gamma + beta


# --------------------------------- the kernel --------------------------------

def _photometric_dec_kernel(*refs, num_layers, num_heads, has_mask, compute_dtype):
    time_ref, band_ref, z_ref = refs[0], refs[1], refs[2]
    if has_mask:
        mask_ref = refs[3]
        rest = refs[4:]
    else:
        mask_ref = None
        rest = refs[3:]
    (band_tab_ref, wt_ref, bt_ref, wz_ref, bz_ref,
     wq_ref, bq_ref, wk_ref, bk_ref, wv_ref, bv_ref,
     wo_ref, bo_ref, caw_ref, cab_ref,
     w1_ref, b1_ref, w2_ref, b2_ref,
     g1_ref, be1_ref, g2_ref, be2_ref, g3_ref, be3_ref,
     wout_ref, bout_ref, out_ref) = rest

    TB, S = time_ref.shape                      # batch tile, sequence (static)
    D = wt_ref.shape[-1]
    nb = band_tab_ref.shape[0]
    n_tok = TB * S
    dh = D // num_heads
    scale = 1.0 / float(dh) ** 0.5
    cd = compute_dtype
    f32 = jnp.float32

    # ---- token embedding: Linear(1->D)(time) + Embedding(band) ----
    # band gather done in-kernel as an exact one-hot matmul (ids are DMA'd instead
    # of a pre-embedded (B,S,D) slab).
    band_oh = (band_ref[...][:, :, None] ==
               jax.lax.broadcasted_iota(jnp.int32, (TB, S, nb), 2)
               ).astype(f32).reshape(n_tok, nb)
    band_emb = jnp.dot(band_oh, band_tab_ref[...], preferred_element_type=f32)  # (n_tok, D)
    x = (time_ref[...][:, :, None] * wt_ref[...] + bt_ref[...]
         + band_emb.reshape(TB, S, D)).reshape(n_tok, D)                        # f32

    # ---- latent memory token, computed once per batch element ----
    mem = jnp.dot(z_ref[...].astype(cd), wz_ref[...],
                  preferred_element_type=f32) + bz_ref[...]                      # (TB, D)

    # hoisted additive key-padding mask, shared by all layers/heads
    neg_mask = mask_ref[...] * (-1e9) if has_mask else None                      # (TB, 1, S)

    # TODO(synk): at large num_layers switch to lax.fori_loop with dynamic weight
    # indexing to bound vreg live ranges; static unroll is fine at small L.
    for l in range(num_layers):
        # ---- self-attention (post-LN; dropout = identity in eval) ----
        xc = x.astype(cd)
        q = (jnp.dot(xc, wq_ref[l], preferred_element_type=f32) + bq_ref[l]).reshape(TB, S, D)
        k = (jnp.dot(xc, wk_ref[l], preferred_element_type=f32) + bk_ref[l]).reshape(TB, S, D)
        v = (jnp.dot(xc, wv_ref[l], preferred_element_type=f32) + bv_ref[l]).reshape(TB, S, D)

        oh_list = []
        for h in range(num_heads):                                   # static head loop
            sl = slice(h * dh, (h + 1) * dh)
            s = jnp.einsum('bqd,bkd->bqk', q[..., sl].astype(cd), k[..., sl].astype(cd),
                           preferred_element_type=f32) * scale       # (TB, S, S)
            if neg_mask is not None:
                s = s + neg_mask
            s = s - jnp.max(s, axis=-1, keepdims=True)
            p = jnp.exp(s)
            p = p * pl.reciprocal(jnp.sum(p, axis=-1, keepdims=True), approx=True)
            oh_list.append(jnp.einsum('bqk,bkd->bqd', p.astype(cd), v[..., sl].astype(cd),
                                      preferred_element_type=f32))   # (TB, S, dh)
        # fused head output projection: one (n_tok, D) @ (D, D) matmul
        o = jnp.concatenate(oh_list, axis=-1).reshape(n_tok, D)
        attn = jnp.dot(o.astype(cd), wo_ref[l], preferred_element_type=f32) + bo_ref[l]
        x = _layernorm(x + attn, g1_ref[l], be1_ref[l])

        # ---- cross-attention to the single latent memory token ----
        # softmax over one key == 1; V and O projections pre-folded into caw/cab.
        ca = jnp.dot(mem.astype(cd), caw_ref[l], preferred_element_type=f32) + cab_ref[l]  # (TB, D)
        x = (x.reshape(TB, S, D) + ca[:, None, :]).reshape(n_tok, D)
        x = _layernorm(x, g2_ref[l], be2_ref[l])

        # ---- feed-forward (ReLU) ----
        h1 = jnp.maximum(
            jnp.dot(x.astype(cd), w1_ref[l], preferred_element_type=f32) + b1_ref[l], 0.0)
        ff = jnp.dot(h1.astype(cd), w2_ref[l], preferred_element_type=f32) + b2_ref[l]
        x = _layernorm(x + ff, g3_ref[l], be3_ref[l])

    # ---- output head Linear(D -> 1) as a lane reduce; lane-dense (1,1,TB*S) write ----
    out = jnp.sum(x.reshape(TB, S, D) * wout_ref[...], axis=-1) + bout_ref[...]   # (TB, S)
    out_ref[...] = out.reshape(1, 1, n_tok).astype(out_ref.dtype)


# --------------------------------- wrapper ------------------------------------

def photometric_dec_forward(params, time, band, z, mask=None, *,
                            num_heads, num_layers, batch_block=None,
                            compute_dtype=jnp.bfloat16):
    """Forward of PhotometricDec: returns (x_rec, var), each (B, S)."""
    B, S = time.shape
    num_bands, D = params["band_emb"].shape
    assert D % num_heads == 0
    cd = compute_dtype
    f32 = jnp.float32

    # ---- batch tiling: bounded per-step VMEM; G >= 2 at large B (v7x 2-TC sharding) ----
    if batch_block is None:
        TB = min(B, 256)
    else:
        TB = max(1, min(batch_block, B))
    if TB < B and TB % 8 != 0:
        TB = min(B, -(-TB // 8) * 8)        # keep the second-minor block 8-aligned
    G = -(-B // TB)
    B_pad = G * TB

    time2 = time.astype(f32)
    band2 = band.astype(jnp.int32)
    z2 = z.astype(f32)
    has_mask = mask is not None
    mask3 = mask.astype(f32).reshape(B, 1, S) if has_mask else None
    if B_pad != B:
        time2 = jnp.pad(time2, ((0, B_pad - B), (0, 0)))
        band2 = jnp.pad(band2, ((0, B_pad - B), (0, 0)))
        z2 = jnp.pad(z2, ((0, B_pad - B), (0, 0)))
        if has_mask:
            mask3 = jnp.pad(mask3, ((0, B_pad - B), (0, 0), (0, 0)))

    # ---- weight prep (exact linear-algebra refactors of the torch layout) ----
    nb_pad = -(-num_bands // 8) * 8
    band_tab = jnp.pad(params["band_emb"].astype(f32),
                       ((0, nb_pad - num_bands), (0, 0)))

    wqkv_s, bqkv_s = params["wqkv_s"], params["bqkv_s"]
    wq, wk, wv = [wqkv_s[:, :, i * D:(i + 1) * D] for i in range(3)]
    bq, bk, bv = [bqkv_s[:, :, i * D:(i + 1) * D] for i in range(3)]
    # cross-attention: memory length is 1 -> softmax == 1; fold V and O projections.
    wv_c = params["wqkv_c"][:, :, 2 * D:3 * D]
    bv_c = params["bqkv_c"][:, :, 2 * D:3 * D]
    ca_w = jnp.einsum('lij,ljk->lik', wv_c, params["wo_c"])
    ca_b = jnp.einsum('lij,ljk->lik', bv_c, params["wo_c"]) + params["bo_c"]

    weights = [
        band_tab,
        params["wt"].astype(f32), params["bt"].astype(f32),
        params["wz"].astype(cd), params["bz"].astype(f32),
        wq.astype(cd), bq.astype(f32), wk.astype(cd), bk.astype(f32),
        wv.astype(cd), bv.astype(f32),
        params["wo_s"].astype(cd), params["bo_s"].astype(f32),
        ca_w.astype(cd), ca_b.astype(f32),
        params["w1"].astype(cd), params["b1"].astype(f32),
        params["w2"].astype(cd), params["b2"].astype(f32),
        params["g1"], params["be1"], params["g2"], params["be2"],
        params["g3"], params["be3"],
        params["wout"].reshape(1, D).astype(f32), params["bout"].astype(f32),
    ]

    batched = [time2, band2, z2] + ([mask3] if has_mask else [])

    def _batched_spec(a):
        nd = a.ndim
        return pl.BlockSpec((TB,) + tuple(a.shape[1:]),
                            lambda b, nd=nd: (b,) + (0,) * (nd - 1))

    def _full_spec(a):
        shp = tuple(a.shape)
        nd = len(shp)
        # TODO(synk): mark these pipeline_mode=pl.Buffered(1) (constant index_map ->
        # never re-fetched) to halve resident weight VMEM at production D/ff/L.
        return pl.BlockSpec(shp, lambda b, nd=nd: (0,) * nd)

    in_specs = [_batched_spec(a) for a in batched] + [_full_spec(w) for w in weights]

    n_tok = TB * S
    out = pl.pallas_call(
        functools.partial(_photometric_dec_kernel, num_layers=num_layers,
                          num_heads=num_heads, has_mask=has_mask,
                          compute_dtype=cd),
        out_shape=jax.ShapeDtypeStruct((G, 1, n_tok), jnp.float32),
        grid_spec=pltpu.PrefetchScalarGridSpec(
            num_scalar_prefetch=0,
            grid=(G,),
            in_specs=in_specs,
            out_specs=pl.BlockSpec((1, 1, n_tok), lambda b: (b, 0, 0)),
        ),
        compiler_params=pltpu.CompilerParams(
            dimension_semantics=("parallel",),
            vmem_limit_bytes=32 * 1024 * 1024,
        ),
    )(*batched, *weights)

    x_rec = out.reshape(B_pad, S)[:B]           # (B, S) == flux.squeeze(-1)
    var = jnp.ones_like(x_rec)
    if has_mask:
        var = var + 1e8 * mask.astype(var.dtype)
    return x_rec, var


# --------------------------- pure-JAX reference (for checks) -------------------

def _reference_forward(params, time, band, z, mask, *, num_heads, num_layers):
    D = params["band_emb"].shape[1]
    H = num_heads
    dh = D // H

    band_e = params["band_emb"][band]                                   # (B, S, D)
    x = time[..., None] * params["wt"] + params["bt"] + band_e
    mem3 = (z @ params["wz"] + params["bz"])[:, None, :]                # (B, 1, D)

    def ln(v, g, b, eps=1e-5):
        mu = v.mean(-1, keepdims=True)
        var = ((v - mu) ** 2).mean(-1, keepdims=True)
        return (v - mu) / jnp.sqrt(var + eps) * g + b

    def mha(q_in, kv_in, wqkv, bqkv, wo, bo, key_mask):
        q = q_in @ wqkv[:, :D] + bqkv[:, :D]
        k = kv_in @ wqkv[:, D:2 * D] + bqkv[:, D:2 * D]
        v = kv_in @ wqkv[:, 2 * D:] + bqkv[:, 2 * D:]
        Bb, Sq, _ = q.shape
        Sk = k.shape[1]
        q = q.reshape(Bb, Sq, H, dh).transpose(0, 2, 1, 3)
        k = k.reshape(Bb, Sk, H, dh).transpose(0, 2, 1, 3)
        v = v.reshape(Bb, Sk, H, dh).transpose(0, 2, 1, 3)
        s = jnp.einsum('bhqd,bhkd->bhqk', q, k) / jnp.sqrt(float(dh))
        if key_mask is not None:
            s = s + (-1e9) * key_mask[:, None, None, :]
        p = jax.nn.softmax(s, axis=-1)
        o = jnp.einsum('bhqk,bhkd->bhqd', p, v).transpose(0, 2, 1, 3).reshape(Bb, Sq, D)
        return o @ wo + bo

    for l in range(num_layers):
        sa = mha(x, x, params["wqkv_s"][l], params["bqkv_s"][l],
                 params["wo_s"][l], params["bo_s"][l], mask)
        x = ln(x + sa, params["g1"][l], params["be1"][l])
        ca = mha(x, mem3, params["wqkv_c"][l], params["bqkv_c"][l],
                 params["wo_c"][l], params["bo_c"][l], None)
        x = ln(x + ca, params["g2"][l], params["be2"][l])
        h = jax.nn.relu(x @ params["w1"][l] + params["b1"][l])
        ff = h @ params["w2"][l] + params["b2"][l]
        x = ln(x + ff, params["g3"][l], params["be3"][l])

    flux = (x @ params["wout"])[..., 0] + params["bout"][0, 0]
    var = jnp.ones_like(flux)
    if mask is not None:
        var = var + 1e8 * mask
    return flux, var


# ------------------------------ parameter init --------------------------------

def init_params(key, *, latent_dim, num_bands, model_dim, ff_dim, num_layers):
    D, F, L = model_dim, ff_dim, num_layers
    ks = jax.random.split(key, 12)

    def nrm(k, shape, scale=0.05):
        return scale * jax.random.normal(k, shape, dtype=jnp.float32)

    p = {}
    p["band_emb"] = nrm(ks[0], (num_bands, D))
    p["wt"] = nrm(ks[1], (1, D));              p["bt"] = jnp.zeros((1, D), jnp.float32)
    p["wz"] = nrm(ks[2], (latent_dim, D));     p["bz"] = jnp.zeros((1, D), jnp.float32)
    p["wqkv_s"] = nrm(ks[3], (L, D, 3 * D));   p["bqkv_s"] = jnp.zeros((L, 1, 3 * D), jnp.float32)
    p["wo_s"] = nrm(ks[4], (L, D, D));         p["bo_s"] = jnp.zeros((L, 1, D), jnp.float32)
    p["wqkv_c"] = nrm(ks[5], (L, D, 3 * D));   p["bqkv_c"] = jnp.zeros((L, 1, 3 * D), jnp.float32)
    p["wo_c"] = nrm(ks[6], (L, D, D));         p["bo_c"] = jnp.zeros((L, 1, D), jnp.float32)
    p["w1"] = nrm(ks[7], (L, D, F));           p["b1"] = jnp.zeros((L, 1, F), jnp.float32)
    p["w2"] = nrm(ks[8], (L, F, D));           p["b2"] = jnp.zeros((L, 1, D), jnp.float32)
    for n in ("1", "2", "3"):
        p["g" + n] = jnp.ones((L, 1, D), jnp.float32)
        p["be" + n] = jnp.zeros((L, 1, D), jnp.float32)
    p["wout"] = nrm(ks[9], (D, 1));            p["bout"] = jnp.zeros((1, 1), jnp.float32)
    return p


# ----------------------------------- main --------------------------------------

if __name__ == "__main__":
    latent_dim, num_bands, model_dim = 16, 6, 32
    num_heads, ff_dim, num_layers = 4, 64, 2
    B, S = 2, 8

    key = jax.random.PRNGKey(0)
    kp, kt, kb, kz, km = jax.random.split(key, 5)

    params = init_params(kp, latent_dim=latent_dim, num_bands=num_bands,
                         model_dim=model_dim, ff_dim=ff_dim, num_layers=num_layers)

    time = jax.random.uniform(kt, (B, S), dtype=jnp.float32)            # observation times
    band = jax.random.randint(kb, (B, S), 0, num_bands)                 # photometric band ids
    z = jax.random.normal(kz, (B, latent_dim), dtype=jnp.float32)       # latent code
    mask = (jax.random.uniform(km, (B, S)) < 0.25).astype(jnp.float32)  # padding mask

    with jax.default_matmul_precision("float32"):
        ref_x_nm, ref_v_nm = _reference_forward(params, time, band, z, None,
                                                num_heads=num_heads, num_layers=num_layers)
        ref_x_m, ref_v_m = _reference_forward(params, time, band, z, mask,
                                              num_heads=num_heads, num_layers=num_layers)

    # ---- f32 compute path (exact up to approx-reciprocal softmax), masked ----
    x32, v32 = photometric_dec_forward(params, time, band, z, mask=mask,
                                       num_heads=num_heads, num_layers=num_layers,
                                       compute_dtype=jnp.float32)
    jax.block_until_ready((x32, v32))
    assert x32.shape == (B, S) and v32.shape == (B, S)
    assert bool(jnp.allclose(x32, ref_x_m, atol=1e-2, rtol=1e-2)), (
        "f32 masked max abs err = %g" % float(jnp.max(jnp.abs(x32 - ref_x_m))))
    assert bool(jnp.allclose(v32, ref_v_m))

    # ---- bf16 matmul operands (v6e/v7x MXU-native path), unmasked ----
    xb, vb = photometric_dec_forward(params, time, band, z, mask=None,
                                     num_heads=num_heads, num_layers=num_layers,
                                     compute_dtype=jnp.bfloat16)
    jax.block_until_ready((xb, vb))
    assert bool(jnp.all(vb == 1.0))
    assert bool(jnp.allclose(xb, ref_x_nm, atol=3e-2, rtol=3e-2)), (
        "bf16 unmasked max abs err = %g" % float(jnp.max(jnp.abs(xb - ref_x_nm))))

    # ---- bf16 matmul operands, masked ----
    xbm, vbm = photometric_dec_forward(params, time, band, z, mask=mask,
                                       num_heads=num_heads, num_layers=num_layers,
                                       compute_dtype=jnp.bfloat16)
    jax.block_until_ready((xbm, vbm))
    assert bool(jnp.allclose(xbm, ref_x_m, atol=3e-2, rtol=3e-2)), (
        "bf16 masked max abs err = %g" % float(jnp.max(jnp.abs(xbm - ref_x_m))))
    assert bool(jnp.allclose(vbm, ref_v_m))

    print("KERNEL_OK")
</pallas_src>

<mosaic_0001>
module attributes {stable_mosaic.version = 11 : i64} {
  func.func @_photometric_dec_kernel(%arg0: i32, %arg1: memref<2x8xf32, #tpu.memory_space<vmem>>, %arg2: memref<2x8xi32, #tpu.memory_space<vmem>>, %arg3: memref<2x16xf32, #tpu.memory_space<vmem>>, %arg4: memref<2x1x8xf32, #tpu.memory_space<vmem>>, %arg5: memref<8x32xf32, #tpu.memory_space<vmem>>, %arg6: memref<1x32xf32, #tpu.memory_space<vmem>>, %arg7: memref<1x32xf32, #tpu.memory_space<vmem>>, %arg8: memref<16x32xf32, #tpu.memory_space<vmem>>, %arg9: memref<1x32xf32, #tpu.memory_space<vmem>>, %arg10: memref<2x32x32xf32, #tpu.memory_space<vmem>>, %arg11: memref<2x1x32xf32, #tpu.memory_space<vmem>>, %arg12: memref<2x32x32xf32, #tpu.memory_space<vmem>>, %arg13: memref<2x1x32xf32, #tpu.memory_space<vmem>>, %arg14: memref<2x32x32xf32, #tpu.memory_space<vmem>>, %arg15: memref<2x1x32xf32, #tpu.memory_space<vmem>>, %arg16: memref<2x32x32xf32, #tpu.memory_space<vmem>>, %arg17: memref<2x1x32xf32, #tpu.memory_space<vmem>>, %arg18: memref<2x32x32xf32, #tpu.memory_space<vmem>>, %arg19: memref<2x1x32xf32, #tpu.memory_space<vmem>>, %arg20: memref<2x32x64xf32, #tpu.memory_space<vmem>>, %arg21: memref<2x1x64xf32, #tpu.memory_space<vmem>>, %arg22: memref<2x64x32xf32, #tpu.memory_space<vmem>>, %arg23: memref<2x1x32xf32, #tpu.memory_space<vmem>>, %arg24: memref<2x1x32xf32, #tpu.memory_space<vmem>>, %arg25: memref<2x1x32xf32, #tpu.memory_space<vmem>>, %arg26: memref<2x1x32xf32, #tpu.memory_space<vmem>>, %arg27: memref<2x1x32xf32, #tpu.memory_space<vmem>>, %arg28: memref<2x1x32xf32, #tpu.memory_space<vmem>>, %arg29: memref<2x1x32xf32, #tpu.memory_space<vmem>>, %arg30: memref<1x32xf32, #tpu.memory_space<vmem>>, %arg31: memref<1x1xf32, #tpu.memory_space<vmem>>, %arg32: memref<1x1x16xf32, #tpu.memory_space<vmem>>) attributes {dimension_semantics = [#tpu.dimension_semantics<parallel>], iteration_bounds = array<i64: 1>, scalar_prefetch = 0 : i64, scratch_operands = 0 : i64, tpu.core_type = #tpu.core_type<tc>, window_params = [{transform_indices = @transform_0, window_bounds = array<i64: 2, 8>}, {transform_indices = @transform_1, window_bounds = array<i64: 2, 8>}, {transform_indices = @transform_2, window_bounds = array<i64: 2, 16>}, {transform_indices = @transform_3, window_bounds = array<i64: 2, 1, 8>}, {pipeline_mode = #tpu.pipeline_mode<synchronous>, transform_indices = @transform_4, window_bounds = array<i64: 8, 32>}, {pipeline_mode = #tpu.pipeline_mode<synchronous>, transform_indices = @transform_5, window_bounds = array<i64: 1, 32>}, {pipeline_mode = #tpu.pipeline_mode<synchronous>, transform_indices = @transform_6, window_bounds = array<i64: 1, 32>}, {pipeline_mode = #tpu.pipeline_mode<synchronous>, transform_indices = @transform_7, window_bounds = array<i64: 16, 32>}, {pipeline_mode = #tpu.pipeline_mode<synchronous>, transform_indices = @transform_8, window_bounds = array<i64: 1, 32>}, {pipeline_mode = #tpu.pipeline_mode<synchronous>, transform_indices = @transform_9, window_bounds = array<i64: 2, 32, 32>}, {pipeline_mode = #tpu.pipeline_mode<synchronous>, transform_indices = @transform_10, window_bounds = array<i64: 2, 1, 32>}, {pipeline_mode = #tpu.pipeline_mode<synchronous>, transform_indices = @transform_11, window_bounds = array<i64: 2, 32, 32>}, {pipeline_mode = #tpu.pipeline_mode<synchronous>, transform_indices = @transform_12, window_bounds = array<i64: 2, 1, 32>}, {pipeline_mode = #tpu.pipeline_mode<synchronous>, transform_indices = @transform_13, window_bounds = array<i64: 2, 32, 32>}, {pipeline_mode = #tpu.pipeline_mode<synchronous>, transform_indices = @transform_14, window_bounds = array<i64: 2, 1, 32>}, {pipeline_mode = #tpu.pipeline_mode<synchronous>, transform_indices = @transform_15, window_bounds = array<i64: 2, 32, 32>}, {pipeline_mode = #tpu.pipeline_mode<synchronous>, transform_indices = @transform_16, window_bounds = array<i64: 2, 1, 32>}, {pipeline_mode = #tpu.pipeline_mode<synchronous>, transform_indices = @transform_17, window_bounds = array<i64: 2, 32, 32>}, {pipeline_mode = #tpu.pipeline_mode<synchronous>, transform_indices = @transform_18, window_bounds = array<i64: 2, 1, 32>}, {pipeline_mode = #tpu.pipeline_mode<synchronous>, transform_indices = @transform_19, window_bounds = array<i64: 2, 32, 64>}, {pipeline_mode = #tpu.pipeline_mode<synchronous>, transform_indices = @transform_20, window_bounds = array<i64: 2, 1, 64>}, {pipeline_mode = #tpu.pipeline_mode<synchronous>, transform_indices = @transform_21, window_bounds = array<i64: 2, 64, 32>}, {pipeline_mode = #tpu.pipeline_mode<synchronous>, transform_indices = @transform_22, window_bounds = array<i64: 2, 1, 32>}, {pipeline_mode = #tpu.pipeline_mode<synchronous>, transform_indices = @transform_23, window_bounds = array<i64: 2, 1, 32>}, {pipeline_mode = #tpu.pipeline_mode<synchronous>, transform_indices = @transform_24, window_bounds = array<i64: 2, 1, 32>}, {pipeline_mode = #tpu.pipeline_mode<synchronous>, transform_indices = @transform_25, window_bounds = array<i64: 2, 1, 32>}, {pipeline_mode = #tpu.pipeline_mode<synchronous>, transform_indices = @transform_26, window_bounds = array<i64: 2, 1, 32>}, {pipeline_mode = #tpu.pipeline_mode<synchronous>, transform_indices = @transform_27, window_bounds = array<i64: 2, 1, 32>}, {pipeline_mode = #tpu.pipeline_mode<synchronous>, transform_indices = @transform_28, window_bounds = array<i64: 2, 1, 32>}, {pipeline_mode = #tpu.pipeline_mode<synchronous>, transform_indices = @transform_29, window_bounds = array<i64: 1, 32>}, {pipeline_mode = #tpu.pipeline_mode<synchronous>, transform_indices = @transform_30, window_bounds = array<i64: 1, 1>}, {transform_indices = @transform_31, window_bounds = array<i64: 1, 1, 16>}]} {
    %c0 = arith.constant 0 : index
    %c0_0 = arith.constant 0 : index
    %0 = vector.load %arg2[%c0, %c0_0] : memref<2x8xi32, #tpu.memory_space<vmem>>, vector<2x8xi32>
    %1 = vector.shape_cast %0 : vector<2x8xi32> to vector<2x8x1xi32>
    %2 = tpu.iota {dimensions = array<i32: 2>} : vector<2x8x8xi32>
    %3 = vector.broadcast %1 : vector<2x8x1xi32> to vector<2x8x8xi32>
    %4 = arith.cmpi eq, %3, %2 : vector<2x8x8xi32>
    %5 = arith.extui %4 : vector<2x8x8xi1> to vector<2x8x8xi32>
    %6 = arith.sitofp %5 : vector<2x8x8xi32> to vector<2x8x8xf32>
    %7 = vector.shape_cast %6 : vector<2x8x8xf32> to vector<16x8xf32>
    %c0_1 = arith.constant 0 : index
    %c0_2 = arith.constant 0 : index
    %8 = vector.load %arg5[%c0_1, %c0_2] : memref<8x32xf32, #tpu.memory_space<vmem>>, vector<8x32xf32>
    %cst = arith.constant dense<0.000000e+00> : vector<16x32xf32>
    %9 = tpu.matmul %7, %8, %cst {dimension_numbers = #tpu.dot_dimension_numbers<[1], [0], [0], [1], [0, 0, 1, 1], [], []>} : vector<16x8xf32>, vector<8x32xf32>, vector<16x32xf32> -> vector<16x32xf32>
    %c0_3 = arith.constant 0 : index
    %c0_4 = arith.constant 0 : index
    %10 = vector.load %arg1[%c0_3, %c0_4] : memref<2x8xf32, #tpu.memory_space<vmem>>, vector<2x8xf32>
    %11 = vector.shape_cast %10 : vector<2x8xf32> to vector<2x8x1xf32>
    %c0_5 = arith.constant 0 : index
    %c0_6 = arith.constant 0 : index
    %12 = vector.load %arg6[%c0_5, %c0_6] : memref<1x32xf32, #tpu.memory_space<vmem>>, vector<1x32xf32>
    %13 = vector.shape_cast %12 : vector<1x32xf32> to vector<1x1x32xf32>
    %14 = vector.broadcast %11 : vector<2x8x1xf32> to vector<2x8x32xf32>
    %15 = vector.broadcast %13 : vector<1x1x32xf32> to vector<2x8x32xf32>
    %16 = arith.mulf %14, %15 : vector<2x8x32xf32>
    %c0_7 = arith.constant 0 : index
    %c0_8 = arith.constant 0 : index
    %17 = vector.load %arg7[%c0_7, %c0_8] : memref<1x32xf32, #tpu.memory_space<vmem>>, vector<1x32xf32>
    %18 = vector.shape_cast %17 : vector<1x32xf32> to vector<1x1x32xf32>
    %19 = vector.broadcast %18 : vector<1x1x32xf32> to vector<2x8x32xf32>
    %20 = arith.addf %16, %19 : vector<2x8x32xf32>
    %21 = vector.shape_cast %9 : vector<16x32xf32> to vector<2x8x32xf32>
    %22 = arith.addf %20, %21 : vector<2x8x32xf32>
    %23 = vector.shape_cast %22 : vector<2x8x32xf32> to vector<16x32xf32>
    %c0_9 = arith.constant 0 : index
    %c0_10 = arith.constant 0 : index
    %24 = vector.load %arg3[%c0_9, %c0_10] : memref<2x16xf32, #tpu.memory_space<vmem>>, vector<2x16xf32>
    %c0_11 = arith.constant 0 : index
    %c0_12 = arith.constant 0 : index
    %25 = vector.load %arg8[%c0_11, %c0_12] : memref<16x32xf32, #tpu.memory_space<vmem>>, vector<16x32xf32>
    %cst_13 = arith.constant dense<0.000000e+00> : vector<2x32xf32>
    %26 = tpu.matmul %24, %25, %cst_13 {dimension_numbers = #tpu.dot_dimension_numbers<[1], [0], [0], [1], [0, 0, 1, 1], [], []>} : vector<2x16xf32>, vector<16x32xf32>, vector<2x32xf32> -> vector<2x32xf32>
    %c0_14 = arith.constant 0 : index
    %c0_15 = arith.constant 0 : index
    %27 = vector.load %arg9[%c0_14, %c0_15] : memref<1x32xf32, #tpu.memory_space<vmem>>, vector<1x32xf32>
    %28 = vector.broadcast %27 : vector<1x32xf32> to vector<2x32xf32>
    %29 = arith.addf %26, %28 : vector<2x32xf32>
    %c0_16 = arith.constant 0 : index
    %c0_17 = arith.constant 0 : index
    %c0_18 = arith.constant 0 : index
    %30 = vector.load %arg4[%c0_16, %c0_17, %c0_18] : memref<2x1x8xf32, #tpu.memory_space<vmem>>, vector<2x1x8xf32>
    %cst_19 = arith.constant -1.000000e+09 : f32
    %31 = vector.broadcast %cst_19 : f32 to vector<2x1x8xf32>
    %32 = arith.mulf %30, %31 : vector<2x1x8xf32>
    %c0_20 = arith.constant 0 : index
    %c0_21 = arith.constant 0 : index
    %c0_22 = arith.constant 0 : index
    %33 = vector.load %arg10[%c0_20, %c0_21, %c0_22] : memref<2x32x32xf32, #tpu.memory_space<vmem>>, vector<1x32x32xf32>
    %34 = vector.shape_cast %33 : vector<1x32x32xf32> to vector<32x32xf32>
    %cst_23 = arith.constant dense<0.000000e+00> : vector<16x32xf32>
    %35 = tpu.matmul %23, %34, %cst_23 {dimension_numbers = #tpu.dot_dimension_numbers<[1], [0], [0], [1], [0, 0, 1, 1], [], []>} : vector<16x32xf32>, vector<32x32xf32>, vector<16x32xf32> -> vector<16x32xf32>
    %c0_24 = arith.constant 0 : index
    %c0_25 = arith.constant 0 : index
    %c0_26 = arith.constant 0 : index
    %36 = vector.load %arg11[%c0_24, %c0_25, %c0_26] : memref<2x1x32xf32, #tpu.memory_space<vmem>>, vector<1x1x32xf32>
    %37 = vector.shape_cast %36 : vector<1x1x32xf32> to vector<1x32xf32>
    %38 = vector.broadcast %37 : vector<1x32xf32> to vector<16x32xf32>
    %39 = arith.addf %35, %38 : vector<16x32xf32>
    %40 = vector.shape_cast %39 : vector<16x32xf32> to vector<2x8x32xf32>
    %c0_27 = arith.constant 0 : index
    %c0_28 = arith.constant 0 : index
    %c0_29 = arith.constant 0 : index
    %41 = vector.load %arg12[%c0_27, %c0_28, %c0_29] : memref<2x32x32xf32, #tpu.memory_space<vmem>>, vector<1x32x32xf32>
    %42 = vector.shape_cast %41 : vector<1x32x32xf32> to vector<32x32xf32>
    %cst_30 = arith.constant dense<0.000000e+00> : vector<16x32xf32>
    %43 = tpu.matmul %23, %42, %cst_30 {dimension_numbers = #tpu.dot_dimension_numbers<[1], [0], [0], [1], [0, 0, 1, 1], [], []>} : vector<16x32xf32>, vector<32x32xf32>, vector<16x32xf32> -> vector<16x32xf32>
    %c0_31 = arith.constant 0 : index
    %c0_32 = arith.constant 0 : index
    %c0_33 = arith.constant 0 : index
    %44 = vector.load %arg13[%c0_31, %c0_32, %c0_33] : memref<2x1x32xf32, #tpu.memory_space<vmem>>, vector<1x1x32xf32>
    %45 = vector.shape_cast %44 : vector<1x1x32xf32> to vector<1x32xf32>
    %46 = vector.broadcast %45 : vector<1x32xf32> to vector<16x32xf32>
    %47 = arith.addf %43, %46 : vector<16x32xf32>
    %48 = vector.shape_cast %47 : vector<16x32xf32> to vector<2x8x32xf32>
    %c0_34 = arith.constant 0 : index
    %c0_35 = arith.constant 0 : index
    %c0_36 = arith.constant 0 : index
    %49 = vector.load %arg14[%c0_34, %c0_35, %c0_36] : memref<2x32x32xf32, #tpu.memory_space<vmem>>, vector<1x32x32xf32>
    %50 = vector.shape_cast %49 : vector<1x32x32xf32> to vector<32x32xf32>
    %cst_37 = arith.constant dense<0.000000e+00> : vector<16x32xf32>
    %51 = tpu.matmul %23, %50, %cst_37 {dimension_numbers = #tpu.dot_dimension_numbers<[1], [0], [0], [1], [0, 0, 1, 1], [], []>} : vector<16x32xf32>, vector<32x32xf32>, vector<16x32xf32> -> vector<16x32xf32>
    %c0_38 = arith.constant 0 : index
    %c0_39 = arith.constant 0 : index
    %c0_40 = arith.constant 0 : index
    %52 = vector.load %arg15[%c0_38, %c0_39, %c0_40] : memref<2x1x32xf32, #tpu.memory_space<vmem>>, vector<1x1x32xf32>
    %53 = vector.shape_cast %52 : vector<1x1x32xf32> to vector<1x32xf32>
    %54 = vector.broadcast %53 : vector<1x32xf32> to vector<16x32xf32>
    %55 = arith.addf %51, %54 : vector<16x32xf32>
    %56 = vector.shape_cast %55 : vector<16x32xf32> to vector<2x8x32xf32>
    %57 = vector.extract_strided_slice %40 {offsets = [0, 0, 0], sizes = [2, 8, 8], strides = [1, 1, 1]} : vector<2x8x32xf32> to vector<2x8x8xf32>
    %58 = vector.extract_strided_slice %48 {offsets = [0, 0, 0], sizes = [2, 8, 8], strides = [1, 1, 1]} : vector<2x8x32xf32> to vector<2x8x8xf32>
    "tpu.trace_start"() <{level = 10 : i32, message = "bqd,bkd->bqk"}> : () -> ()
    %cst_41 = arith.constant dense<0.000000e+00> : vector<2x8x8xf32>
    %59 = tpu.matmul %57, %58, %cst_41 {dimension_numbers = #tpu.dot_dimension_numbers<[2], [2], [1], [1], [0, 0, 0, 1, 1, 1], [0], [0]>} : vector<2x8x8xf32>, vector<2x8x8xf32>, vector<2x8x8xf32> -> vector<2x8x8xf32>
    "tpu.trace_stop"() : () -> ()
    %cst_42 = arith.constant 0.353553385 : f32
    %60 = vector.broadcast %cst_42 : f32 to vector<2x8x8xf32>
    %61 = arith.mulf %59, %60 : vector<2x8x8xf32>
    %62 = vector.broadcast %32 : vector<2x1x8xf32> to vector<2x8x8xf32>
    %63 = arith.addf %61, %62 : vector<2x8x8xf32>
    %cst_43 = arith.constant dense<0xFF800000> : vector<2x8xf32>
    %64 = vector.multi_reduction <maximumf>, %63, %cst_43 [2] : vector<2x8x8xf32> to vector<2x8xf32>
    %65 = vector.shape_cast %64 : vector<2x8xf32> to vector<2x8x1xf32>
    %66 = vector.broadcast %65 : vector<2x8x1xf32> to vector<2x8x8xf32>
    %67 = arith.subf %63, %66 : vector<2x8x8xf32>
    %68 = math.exp %67 : vector<2x8x8xf32>
    %cst_44 = arith.constant dense<0.000000e+00> : vector<2x8xf32>
    %69 = vector.multi_reduction <add>, %68, %cst_44 [2] : vector<2x8x8xf32> to vector<2x8xf32>
    %70 = vector.shape_cast %69 : vector<2x8xf32> to vector<2x8x1xf32>
    %71 = tpu.reciprocal %70 {approx = true} : vector<2x8x1xf32> -> vector<2x8x1xf32>
    %72 = vector.broadcast %71 : vector<2x8x1xf32> to vector<2x8x8xf32>
    %73 = arith.mulf %68, %72 : vector<2x8x8xf32>
    %74 = vector.extract_strided_slice %56 {offsets = [0, 0, 0], sizes = [2, 8, 8], strides = [1, 1, 1]} : vector<2x8x32xf32> to vector<2x8x8xf32>
    "tpu.trace_start"() <{level = 10 : i32, message = "bqk,bkd->bqd"}> : () -> ()
    %cst_45 = arith.constant dense<0.000000e+00> : vector<2x8x8xf32>
    %75 = tpu.matmul %73, %74, %cst_45 {dimension_numbers = #tpu.dot_dimension_numbers<[2], [1], [1], [2], [0, 0, 0, 1, 1, 2], [0], [0]>} : vector<2x8x8xf32>, vector<2x8x8xf32>, vector<2x8x8xf32> -> vector<2x8x8xf32>
    "tpu.trace_stop"() : () -> ()
    %76 = vector.extract_strided_slice %40 {offsets = [0, 0, 8], sizes = [2, 8, 8], strides = [1, 1, 1]} : vector<2x8x32xf32> to vector<2x8x8xf32>
    %77 = vector.extract_strided_slice %48 {offsets = [0, 0, 8], sizes = [2, 8, 8], strides = [1, 1, 1]} : vector<2x8x32xf32> to vector<2x8x8xf32>
    "tpu.trace_start"() <{level = 10 : i32, message = "bqd,bkd->bqk"}> : () -> ()
    %cst_46 = arith.constant dense<0.000000e+00> : vector<2x8x8xf32>
    %78 = tpu.matmul %76, %77, %cst_46 {dimension_numbers = #tpu.dot_dimension_numbers<[2], [2], [1], [1], [0, 0, 0, 1, 1, 1], [0], [0]>} : vector<2x8x8xf32>, vector<2x8x8xf32>, vector<2x8x8xf32> -> vector<2x8x8xf32>
    "tpu.trace_stop"() : () -> ()
    %cst_47 = arith.constant 0.353553385 : f32
    %79 = vector.broadcast %cst_47 : f32 to vector<2x8x8xf32>
    %80 = arith.mulf %78, %79 : vector<2x8x8xf32>
    %81 = vector.broadcast %32 : vector<2x1x8xf32> to vector<2x8x8xf32>
    %82 = arith.addf %80, %81 : vector<2x8x8xf32>
    %cst_48 = arith.constant dense<0xFF800000> : vector<2x8xf32>
    %83 = vector.multi_reduction <maximumf>, %82, %cst_48 [2] : vector<2x8x8xf32> to vector<2x8xf32>
    %84 = vector.shape_cast %83 : vector<2x8xf32> to vector<2x8x1xf32>
    %85 = vector.broadcast %84 : vector<2x8x1xf32> to vector<2x8x8xf32>
    %86 = arith.subf %82, %85 : vector<2x8x8xf32>
    %87 = math.exp %86 : vector<2x8x8xf32>
    %cst_49 = arith.constant dense<0.000000e+00> : vector<2x8xf32>
    %88 = vector.multi_reduction <add>, %87, %cst_49 [2] : vector<2x8x8xf32> to vector<2x8xf32>
    %89 = vector.shape_cast %88 : vector<2x8xf32> to vector<2x8x1xf32>
    %90 = tpu.reciprocal %89 {approx = true} : vector<2x8x1xf32> -> vector<2x8x1xf32>
    %91 = vector.broadcast %90 : vector<2x8x1xf32> to vector<2x8x8xf32>
    %92 = arith.mulf %87, %91 : vector<2x8x8xf32>
    %93 = vector.extract_strided_slice %56 {offsets = [0, 0, 8], sizes = [2, 8, 8], strides = [1, 1, 1]} : vector<2x8x32xf32> to vector<2x8x8xf32>
    "tpu.trace_start"() <{level = 10 : i32, message = "bqk,bkd->bqd"}> : () -> ()
    %cst_50 = arith.constant dense<0.000000e+00> : vector<2x8x8xf32>
    %94 = tpu.matmul %92, %93, %cst_50 {dimension_numbers = #tpu.dot_dimension_numbers<[2], [1], [1], [2], [0, 0, 0, 1, 1, 2], [0], [0]>} : vector<2x8x8xf32>, vector<2x8x8xf32>, vector<2x8x8xf32> -> vector<2x8x8xf32>
    "tpu.trace_stop"() : () -> ()
    %95 = vector.extract_strided_slice %40 {offsets = [0, 0, 16], sizes = [2, 8, 8], strides = [1, 1, 1]} : vector<2x8x32xf32> to vector<2x8x8xf32>
    %96 = vector.extract_strided_slice %48 {offsets = [0, 0, 16], sizes = [2, 8, 8], strides = [1, 1, 1]} : vector<2x8x32xf32> to vector<2x8x8xf32>
    "tpu.trace_start"() <{level = 10 : i32, message = "bqd,bkd->bqk"}> : () -> ()
    %cst_51 = arith.constant dense<0.000000e+00> : vector<2x8x8xf32>
    %97 = tpu.matmul %95, %96, %cst_51 {dimension_numbers = #tpu.dot_dimension_numbers<[2], [2], [1], [1], [0, 0, 0, 1, 1, 1], [0], [0]>} : vector<2x8x8xf32>, vector<2x8x8xf32>, vector<2x8x8xf32> -> vector<2x8x8xf32>
    "tpu.trace_stop"() : () -> ()
    %cst_52 = arith.constant 0.353553385 : f32
    %98 = vector.broadcast %cst_52 : f32 to vector<2x8x8xf32>
    %99 = arith.mulf %97, %98 : vector<2x8x8xf32>
    %100 = vector.broadcast %32 : vector<2x1x8xf32> to vector<2x8x8xf32>
    %101 = arith.addf %99, %100 : vector<2x8x8xf32>
    %cst_53 = arith.constant dense<0xFF800000> : vector<2x8xf32>
    %102 = vector.multi_reduction <maximumf>, %101, %cst_53 [2] : vector<2x8x8xf32> to vector<2x8xf32>
    %103 = vector.shape_cast %102 : vector<2x8xf32> to vector<2x8x1xf32>
    %104 = vector.broadcast %103 : vector<2x8x1xf32> to vector<2x8x8xf32>
    %105 = arith.subf %101, %104 : vector<2x8x8xf32>
    %106 = math.exp %105 : vector<2x8x8xf32>
    %cst_54 = arith.constant dense<0.000000e+00> : vector<2x8xf32>
    %107 = vector.multi_reduction <add>, %106, %cst_54 [2] : vector<2x8x8xf32> to vector<2x8xf32>
    %108 = vector.shape_cast %107 : vector<2x8xf32> to vector<2x8x1xf32>
    %109 = tpu.reciprocal %108 {approx = true} : vector<2x8x1xf32> -> vector<2x8x1xf32>
    %110 = vector.broadcast %109 : vector<2x8x1xf32> to vector<2x8x8xf32>
    %111 = arith.mulf %106, %110 : vector<2x8x8xf32>
    %112 = vector.extract_strided_slice %56 {offsets = [0, 0, 16], sizes = [2, 8, 8], strides = [1, 1, 1]} : vector<2x8x32xf32> to vector<2x8x8xf32>
    "tpu.trace_start"() <{level = 10 : i32, message = "bqk,bkd->bqd"}> : () -> ()
    %cst_55 = arith.constant dense<0.000000e+00> : vector<2x8x8xf32>
    %113 = tpu.matmul %111, %112, %cst_55 {dimension_numbers = #tpu.dot_dimension_numbers<[2], [1], [1], [2], [0, 0, 0, 1, 1, 2], [0], [0]>} : vector<2x8x8xf32>, vector<2x8x8xf32>, vector<2x8x8xf32> -> vector<2x8x8xf32>
    "tpu.trace_stop"() : () -> ()
    %114 = vector.extract_strided_slice %40 {offsets = [0, 0, 24], sizes = [2, 8, 8], strides = [1, 1, 1]} : vector<2x8x32xf32> to vector<2x8x8xf32>
    %115 = vector.extract_strided_slice %48 {offsets = [0, 0, 24], sizes = [2, 8, 8], strides = [1, 1, 1]} : vector<2x8x32xf32> to vector<2x8x8xf32>
    "tpu.trace_start"() <{level = 10 : i32, message = "bqd,bkd->bqk"}> : () -> ()
    %cst_56 = arith.constant dense<0.000000e+00> : vector<2x8x8xf32>
    %116 = tpu.matmul %114, %115, %cst_56 {dimension_numbers = #tpu.dot_dimension_numbers<[2], [2], [1], [1], [0, 0, 0, 1, 1, 1], [0], [0]>} : vector<2x8x8xf32>, vector<2x8x8xf32>, vector<2x8x8xf32> -> vector<2x8x8xf32>
    "tpu.trace_stop"() : () -> ()
    %cst_57 = arith.constant 0.353553385 : f32
    %117 = vector.broadcast %cst_57 : f32 to vector<2x8x8xf32>
    %118 = arith.mulf %116, %117 : vector<2x8x8xf32>
    %119 = vector.broadcast %32 : vector<2x1x8xf32> to vector<2x8x8xf32>
    %120 = arith.addf %118, %119 : vector<2x8x8xf32>
    %cst_58 = arith.constant dense<0xFF800000> : vector<2x8xf32>
    %121 = vector.multi_reduction <maximumf>, %120, %cst_58 [2] : vector<2x8x8xf32> to vector<2x8xf32>
    %122 = vector.shape_cast %121 : vector<2x8xf32> to vector<2x8x1xf32>
    %123 = vector.broadcast %122 : vector<2x8x1xf32> to vector<2x8x8xf32>
    %124 = arith.subf %120, %123 : vector<2x8x8xf32>
    %125 = math.exp %124 : vector<2x8x8xf32>
    %cst_59 = arith.constant dense<0.000000e+00> : vector<2x8xf32>
    %126 = vector.multi_reduction <add>, %125, %cst_59 [2] : vector<2x8x8xf32> to vector<2x8xf32>
    %127 = vector.shape_cast %126 : vector<2x8xf32> to vector<2x8x1xf32>
    %128 = tpu.reciprocal %127 {approx = true} : vector<2x8x1xf32> -> vector<2x8x1xf32>
    %129 = vector.broadcast %128 : vector<2x8x1xf32> to vector<2x8x8xf32>
    %130 = arith.mulf %125, %129 : vector<2x8x8xf32>
    %131 = vector.extract_strided_slice %56 {offsets = [0, 0, 24], sizes = [2, 8, 8], strides = [1, 1, 1]} : vector<2x8x32xf32> to vector<2x8x8xf32>
    "tpu.trace_start"() <{level = 10 : i32, message = "bqk,bkd->bqd"}> : () -> ()
    %cst_60 = arith.constant dense<0.000000e+00> : vector<2x8x8xf32>
    %132 = tpu.matmul %130, %131, %cst_60 {dimension_numbers = #tpu.dot_dimension_numbers<[2], [1], [1], [2], [0, 0, 0, 1, 1, 2], [0], [0]>} : vector<2x8x8xf32>, vector<2x8x8xf32>, vector<2x8x8xf32> -> vector<2x8x8xf32>
    "tpu.trace_stop"() : () -> ()
    %133 = tpu.concatenate %75, %94, %113, %132 in 2 : vector<2x8x8xf32>, vector<2x8x8xf32>, vector<2x8x8xf32>, vector<2x8x8xf32> -> vector<2x8x32xf32>
    %134 = vector.shape_cast %133 : vector<2x8x32xf32> to vector<16x32xf32>
    %c0_61 = arith.constant 0 : index
    %c0_62 = arith.constant 0 : index
    %c0_63 = arith.constant 0 : index
    %135 = vector.load %arg16[%c0_61, %c0_62, %c0_63] : memref<2x32x32xf32, #tpu.memory_space<vmem>>, vector<1x32x32xf32>
    %136 = vector.shape_cast %135 : vector<1x32x32xf32> to vector<32x32xf32>
    %cst_64 = arith.constant dense<0.000000e+00> : vector<16x32xf32>
    %137 = tpu.matmul %134, %136, %cst_64 {dimension_numbers = #tpu.dot_dimension_numbers<[1], [0], [0], [1], [0, 0, 1, 1], [], []>} : vector<16x32xf32>, vector<32x32xf32>, vector<16x32xf32> -> vector<16x32xf32>
    %c0_65 = arith.constant 0 : index
    %c0_66 = arith.constant 0 : index
    %c0_67 = arith.constant 0 : index
    %138 = vector.load %arg17[%c0_65, %c0_66, %c0_67] : memref<2x1x32xf32, #tpu.memory_space<vmem>>, vector<1x1x32xf32>
    %139 = vector.shape_cast %138 : vector<1x1x32xf32> to vector<1x32xf32>
    %140 = vector.broadcast %139 : vector<1x32xf32> to vector<16x32xf32>
    %141 = arith.addf %137, %140 : vector<16x32xf32>
    %142 = arith.addf %23, %141 : vector<16x32xf32>
    %c0_68 = arith.constant 0 : index
    %c0_69 = arith.constant 0 : index
    %c0_70 = arith.constant 0 : index
    %143 = vector.load %arg24[%c0_68, %c0_69, %c0_70] : memref<2x1x32xf32, #tpu.memory_space<vmem>>, vector<1x1x32xf32>
    %144 = vector.shape_cast %143 : vector<1x1x32xf32> to vector<1x32xf32>
    %c0_71 = arith.constant 0 : index
    %c0_72 = arith.constant 0 : index
    %c0_73 = arith.constant 0 : index
    %145 = vector.load %arg25[%c0_71, %c0_72, %c0_73] : memref<2x1x32xf32, #tpu.memory_space<vmem>>, vector<1x1x32xf32>
    %146 = vector.shape_cast %145 : vector<1x1x32xf32> to vector<1x32xf32>
    %cst_74 = arith.constant dense<0.000000e+00> : vector<16xf32>
    %147 = vector.multi_reduction <add>, %142, %cst_74 [1] : vector<16x32xf32> to vector<16xf32>
    %148 = vector.shape_cast %147 : vector<16xf32> to vector<16x1xf32>
    %cst_75 = arith.constant 3.200000e+01 : f32
    %149 = vector.broadcast %cst_75 : f32 to vector<16x1xf32>
    %150 = arith.divf %148, %149 : vector<16x1xf32>
    %151 = vector.broadcast %150 : vector<16x1xf32> to vector<16x32xf32>
    %152 = arith.subf %142, %151 : vector<16x32xf32>
    %153 = arith.mulf %152, %152 : vector<16x32xf32>
    %cst_76 = arith.constant dense<0.000000e+00> : vector<16xf32>
    %154 = vector.multi_reduction <add>, %153, %cst_76 [1] : vector<16x32xf32> to vector<16xf32>
    %155 = vector.shape_cast %154 : vector<16xf32> to vector<16x1xf32>
    %cst_77 = arith.constant 3.200000e+01 : f32
    %156 = vector.broadcast %cst_77 : f32 to vector<16x1xf32>
    %157 = arith.divf %155, %156 : vector<16x1xf32>
    %cst_78 = arith.constant 9.99999974E-6 : f32
    %158 = vector.broadcast %cst_78 : f32 to vector<16x1xf32>
    %159 = arith.addf %157, %158 : vector<16x1xf32>
    %160 = math.rsqrt %159 : vector<16x1xf32>
    %161 = vector.broadcast %160 : vector<16x1xf32> to vector<16x32xf32>
    %162 = arith.mulf %152, %161 : vector<16x32xf32>
    %163 = vector.broadcast %144 : vector<1x32xf32> to vector<16x32xf32>
    %164 = arith.mulf %162, %163 : vector<16x32xf32>
    %165 = vector.broadcast %146 : vector<1x32xf32> to vector<16x32xf32>
    %166 = arith.addf %164, %165 : vector<16x32xf32>
    %c0_79 = arith.constant 0 : index
    %c0_80 = arith.constant 0 : index
    %c0_81 = arith.constant 0 : index
    %167 = vector.load %arg18[%c0_79, %c0_80, %c0_81] : memref<2x32x32xf32, #tpu.memory_space<vmem>>, vector<1x32x32xf32>
    %168 = vector.shape_cast %167 : vector<1x32x32xf32> to vector<32x32xf32>
    %cst_82 = arith.constant dense<0.000000e+00> : vector<2x32xf32>
    %169 = tpu.matmul %29, %168, %cst_82 {dimension_numbers = #tpu.dot_dimension_numbers<[1], [0], [0], [1], [0, 0, 1, 1], [], []>} : vector<2x32xf32>, vector<32x32xf32>, vector<2x32xf32> -> vector<2x32xf32>
    %c0_83 = arith.constant 0 : index
    %c0_84 = arith.constant 0 : index
    %c0_85 = arith.constant 0 : index
    %170 = vector.load %arg19[%c0_83, %c0_84, %c0_85] : memref<2x1x32xf32, #tpu.memory_space<vmem>>, vector<1x1x32xf32>
    %171 = vector.shape_cast %170 : vector<1x1x32xf32> to vector<1x32xf32>
    %172 = vector.broadcast %171 : vector<1x32xf32> to vector<2x32xf32>
    %173 = arith.addf %169, %172 : vector<2x32xf32>
    %174 = vector.shape_cast %166 : vector<16x32xf32> to vector<2x8x32xf32>
    %175 = vector.shape_cast %173 : vector<2x32xf32> to vector<2x1x32xf32>
    %176 = vector.broadcast %175 : vector<2x1x32xf32> to vector<2x8x32xf32>
    %177 = arith.addf %174, %176 : vector<2x8x32xf32>
    %178 = vector.shape_cast %177 : vector<2x8x32xf32> to vector<16x32xf32>
    %c0_86 = arith.constant 0 : index
    %c0_87 = arith.constant 0 : index
    %c0_88 = arith.constant 0 : index
    %179 = vector.load %arg26[%c0_86, %c0_87, %c0_88] : memref<2x1x32xf32, #tpu.memory_space<vmem>>, vector<1x1x32xf32>
    %180 = vector.shape_cast %179 : vector<1x1x32xf32> to vector<1x32xf32>
    %c0_89 = arith.constant 0 : index
    %c0_90 = arith.constant 0 : index
    %c0_91 = arith.constant 0 : index
    %181 = vector.load %arg27[%c0_89, %c0_90, %c0_91] : memref<2x1x32xf32, #tpu.memory_space<vmem>>, vector<1x1x32xf32>
    %182 = vector.shape_cast %181 : vector<1x1x32xf32> to vector<1x32xf32>
    %cst_92 = arith.constant dense<0.000000e+00> : vector<16xf32>
    %183 = vector.multi_reduction <add>, %178, %cst_92 [1] : vector<16x32xf32> to vector<16xf32>
    %184 = vector.shape_cast %183 : vector<16xf32> to vector<16x1xf32>
    %cst_93 = arith.constant 3.200000e+01 : f32
    %185 = vector.broadcast %cst_93 : f32 to vector<16x1xf32>
    %186 = arith.divf %184, %185 : vector<16x1xf32>
    %187 = vector.broadcast %186 : vector<16x1xf32> to vector<16x32xf32>
    %188 = arith.subf %178, %187 : vector<16x32xf32>
    %189 = arith.mulf %188, %188 : vector<16x32xf32>
    %cst_94 = arith.constant dense<0.000000e+00> : vector<16xf32>
    %190 = vector.multi_reduction <add>, %189, %cst_94 [1] : vector<16x32xf32> to vector<16xf32>
    %191 = vector.shape_cast %190 : vector<16xf32> to vector<16x1xf32>
    %cst_95 = arith.constant 3.200000e+01 : f32
    %192 = vector.broadcast %cst_95 : f32 to vector<16x1xf32>
    %193 = arith.divf %191, %192 : vector<16x1xf32>
    %cst_96 = arith.constant 9.99999974E-6 : f32
    %194 = vector.broadcast %cst_96 : f32 to vector<16x1xf32>
    %195 = arith.addf %193, %194 : vector<16x1xf32>
    %196 = math.rsqrt %195 : vector<16x1xf32>
    %197 = vector.broadcast %196 : vector<16x1xf32> to vector<16x32xf32>
    %198 = arith.mulf %188, %197 : vector<16x32xf32>
    %199 = vector.broadcast %180 : vector<1x32xf32> to vector<16x32xf32>
    %200 = arith.mulf %198, %199 : vector<16x32xf32>
    %201 = vector.broadcast %182 : vector<1x32xf32> to vector<16x32xf32>
    %202 = arith.addf %200, %201 : vector<16x32xf32>
    %c0_97 = arith.constant 0 : index
    %c0_98 = arith.constant 0 : index
    %c0_99 = arith.constant 0 : index
    %203 = vector.load %arg20[%c0_97, %c0_98, %c0_99] : memref<2x32x64xf32, #tpu.memory_space<vmem>>, vector<1x32x64xf32>
    %204 = vector.shape_cast %203 : vector<1x32x64xf32> to vector<32x64xf32>
    %cst_100 = arith.constant dense<0.000000e+00> : vector<16x64xf32>
    %205 = tpu.matmul %202, %204, %cst_100 {dimension_numbers = #tpu.dot_dimension_numbers<[1], [0], [0], [1], [0, 0, 1, 1], [], []>} : vector<16x32xf32>, vector<32x64xf32>, vector<16x64xf32> -> vector<16x64xf32>
    %c0_101 = arith.constant 0 : index
    %c0_102 = arith.constant 0 : index
    %c0_103 = arith.constant 0 : index
    %206 = vector.load %arg21[%c0_101, %c0_102, %c0_103] : memref<2x1x64xf32, #tpu.memory_space<vmem>>, vector<1x1x64xf32>
    %207 = vector.shape_cast %206 : vector<1x1x64xf32> to vector<1x64xf32>
    %208 = vector.broadcast %207 : vector<1x64xf32> to vector<16x64xf32>
    %209 = arith.addf %205, %208 : vector<16x64xf32>
    %cst_104 = arith.constant 0.000000e+00 : f32
    %210 = vector.broadcast %cst_104 : f32 to vector<16x64xf32>
    %211 = arith.maximumf %209, %210 : vector<16x64xf32>
    %c0_105 = arith.constant 0 : index
    %c0_106 = arith.constant 0 : index
    %c0_107 = arith.constant 0 : index
    %212 = vector.load %arg22[%c0_105, %c0_106, %c0_107] : memref<2x64x32xf32, #tpu.memory_space<vmem>>, vector<1x64x32xf32>
    %213 = vector.shape_cast %212 : vector<1x64x32xf32> to vector<64x32xf32>
    %cst_108 = arith.constant dense<0.000000e+00> : vector<16x32xf32>
    %214 = tpu.matmul %211, %213, %cst_108 {dimension_numbers = #tpu.dot_dimension_numbers<[1], [0], [0], [1], [0, 0, 1, 1], [], []>} : vector<16x64xf32>, vector<64x32xf32>, vector<16x32xf32> -> vector<16x32xf32>
    %c0_109 = arith.constant 0 : index
    %c0_110 = arith.constant 0 : index
    %c0_111 = arith.constant 0 : index
    %215 = vector.load %arg23[%c0_109, %c0_110, %c0_111] : memref<2x1x32xf32, #tpu.memory_space<vmem>>, vector<1x1x32xf32>
    %216 = vector.shape_cast %215 : vector<1x1x32xf32> to vector<1x32xf32>
    %217 = vector.broadcast %216 : vector<1x32xf32> to vector<16x32xf32>
    %218 = arith.addf %214, %217 : vector<16x32xf32>
    %219 = arith.addf %202, %218 : vector<16x32xf32>
    %c0_112 = arith.constant 0 : index
    %c0_113 = arith.constant 0 : index
    %c0_114 = arith.constant 0 : index
    %220 = vector.load %arg28[%c0_112, %c0_113, %c0_114] : memref<2x1x32xf32, #tpu.memory_space<vmem>>, vector<1x1x32xf32>
    %221 = vector.shape_cast %220 : vector<1x1x32xf32> to vector<1x32xf32>
    %c0_115 = arith.constant 0 : index
    %c0_116 = arith.constant 0 : index
    %c0_117 = arith.constant 0 : index
    %222 = vector.load %arg29[%c0_115, %c0_116, %c0_117] : memref<2x1x32xf32, #tpu.memory_space<vmem>>, vector<1x1x32xf32>
    %223 = vector.shape_cast %222 : vector<1x1x32xf32> to vector<1x32xf32>
    %cst_118 = arith.constant dense<0.000000e+00> : vector<16xf32>
    %224 = vector.multi_reduction <add>, %219, %cst_118 [1] : vector<16x32xf32> to vector<16xf32>
    %225 = vector.shape_cast %224 : vector<16xf32> to vector<16x1xf32>
    %cst_119 = arith.constant 3.200000e+01 : f32
    %226 = vector.broadcast %cst_119 : f32 to vector<16x1xf32>
    %227 = arith.divf %225, %226 : vector<16x1xf32>
    %228 = vector.broadcast %227 : vector<16x1xf32> to vector<16x32xf32>
    %229 = arith.subf %219, %228 : vector<16x32xf32>
    %230 = arith.mulf %229, %229 : vector<16x32xf32>
    %cst_120 = arith.constant dense<0.000000e+00> : vector<16xf32>
    %231 = vector.multi_reduction <add>, %230, %cst_120 [1] : vector<16x32xf32> to vector<16xf32>
    %232 = vector.shape_cast %231 : vector<16xf32> to vector<16x1xf32>
    %cst_121 = arith.constant 3.200000e+01 : f32
    %233 = vector.broadcast %cst_121 : f32 to vector<16x1xf32>
    %234 = arith.divf %232, %233 : vector<16x1xf32>
    %cst_122 = arith.constant 9.99999974E-6 : f32
    %235 = vector.broadcast %cst_122 : f32 to vector<16x1xf32>
    %236 = arith.addf %234, %235 : vector<16x1xf32>
    %237 = math.rsqrt %236 : vector<16x1xf32>
    %238 = vector.broadcast %237 : vector<16x1xf32> to vector<16x32xf32>
    %239 = arith.mulf %229, %238 : vector<16x32xf32>
    %240 = vector.broadcast %221 : vector<1x32xf32> to vector<16x32xf32>
    %241 = arith.mulf %239, %240 : vector<16x32xf32>
    %242 = vector.broadcast %223 : vector<1x32xf32> to vector<16x32xf32>
    %243 = arith.addf %241, %242 : vector<16x32xf32>
    %c1 = arith.constant 1 : index
    %c0_123 = arith.constant 0 : index
    %c0_124 = arith.constant 0 : index
    %244 = vector.load %arg10[%c1, %c0_123, %c0_124] : memref<2x32x32xf32, #tpu.memory_space<vmem>>, vector<1x32x32xf32>
    %245 = vector.shape_cast %244 : vector<1x32x32xf32> to vector<32x32xf32>
    %cst_125 = arith.constant dense<0.000000e+00> : vector<16x32xf32>
    %246 = tpu.matmul %243, %245, %cst_125 {dimension_numbers = #tpu.dot_dimension_numbers<[1], [0], [0], [1], [0, 0, 1, 1], [], []>} : vector<16x32xf32>, vector<32x32xf32>, vector<16x32xf32> -> vector<16x32xf32>
    %c1_126 = arith.constant 1 : index
    %c0_127 = arith.constant 0 : index
    %c0_128 = arith.constant 0 : index
    %247 = vector.load %arg11[%c1_126, %c0_127, %c0_128] : memref<2x1x32xf32, #tpu.memory_space<vmem>>, vector<1x1x32xf32>
    %248 = vector.shape_cast %247 : vector<1x1x32xf32> to vector<1x32xf32>
    %249 = vector.broadcast %248 : vector<1x32xf32> to vector<16x32xf32>
    %250 = arith.addf %246, %249 : vector<16x32xf32>
    %251 = vector.shape_cast %250 : vector<16x32xf32> to vector<2x8x32xf32>
    %c1_129 = arith.constant 1 : index
    %c0_130 = arith.constant 0 : index
    %c0_131 = arith.constant 0 : index
    %252 = vector.load %arg12[%c1_129, %c0_130, %c0_131] : memref<2x32x32xf32, #tpu.memory_space<vmem>>, vector<1x32x32xf32>
    %253 = vector.shape_cast %252 : vector<1x32x32xf32> to vector<32x32xf32>
    %cst_132 = arith.constant dense<0.000000e+00> : vector<16x32xf32>
    %254 = tpu.matmul %243, %253, %cst_132 {dimension_numbers = #tpu.dot_dimension_numbers<[1], [0], [0], [1], [0, 0, 1, 1], [], []>} : vector<16x32xf32>, vector<32x32xf32>, vector<16x32xf32> -> vector<16x32xf32>
    %c1_133 = arith.constant 1 : index
    %c0_134 = arith.constant 0 : index
    %c0_135 = arith.constant 0 : index
    %255 = vector.load %arg13[%c1_133, %c0_134, %c0_135] : memref<2x1x32xf32, #tpu.memory_space<vmem>>, vector<1x1x32xf32>
    %256 = vector.shape_cast %255 : vector<1x1x32xf32> to vector<1x32xf32>
    %257 = vector.broadcast %256 : vector<1x32xf32> to vector<16x32xf32>
    %258 = arith.addf %254, %257 : vector<16x32xf32>
    %259 = vector.shape_cast %258 : vector<16x32xf32> to vector<2x8x32xf32>
    %c1_136 = arith.constant 1 : index
    %c0_137 = arith.constant 0 : index
    %c0_138 = arith.constant 0 : index
    %260 = vector.load %arg14[%c1_136, %c0_137, %c0_138] : memref<2x32x32xf32, #tpu.memory_space<vmem>>, vector<1x32x32xf32>
    %261 = vector.shape_cast %260 : vector<1x32x32xf32> to vector<32x32xf32>
    %cst_139 = arith.constant dense<0.000000e+00> : vector<16x32xf32>
    %262 = tpu.matmul %243, %261, %cst_139 {dimension_numbers = #tpu.dot_dimension_numbers<[1], [0], [0], [1], [0, 0, 1, 1], [], []>} : vector<16x32xf32>, vector<32x32xf32>, vector<16x32xf32> -> vector<16x32xf32>
    %c1_140 = arith.constant 1 : index
    %c0_141 = arith.constant 0 : index
    %c0_142 = arith.constant 0 : index
    %263 = vector.load %arg15[%c1_140, %c0_141, %c0_142] : memref<2x1x32xf32, #tpu.memory_space<vmem>>, vector<1x1x32xf32>
    %264 = vector.shape_cast %263 : vector<1x1x32xf32> to vector<1x32xf32>
    %265 = vector.broadcast %264 : vector<1x32xf32> to vector<16x32xf32>
    %266 = arith.addf %262, %265 : vector<16x32xf32>
    %267 = vector.shape_cast %266 : vector<16x32xf32> to vector<2x8x32xf32>
    %268 = vector.extract_strided_slice %251 {offsets = [0, 0, 0], sizes = [2, 8, 8], strides = [1, 1, 1]} : vector<2x8x32xf32> to vector<2x8x8xf32>
    %269 = vector.extract_strided_slice %259 {offsets = [0, 0, 0], sizes = [2, 8, 8], strides = [1, 1, 1]} : vector<2x8x32xf32> to vector<2x8x8xf32>
    "tpu.trace_start"() <{level = 10 : i32, message = "bqd,bkd->bqk"}> : () -> ()
    %cst_143 = arith.constant dense<0.000000e+00> : vector<2x8x8xf32>
    %270 = tpu.matmul %268, %269, %cst_143 {dimension_numbers = #tpu.dot_dimension_numbers<[2], [2], [1], [1], [0, 0, 0, 1, 1, 1], [0], [0]>} : vector<2x8x8xf32>, vector<2x8x8xf32>, vector<2x8x8xf32> -> vector<2x8x8xf32>
    "tpu.trace_stop"() : () -> ()
    %cst_144 = arith.constant 0.353553385 : f32
    %271 = vector.broadcast %cst_144 : f32 to vector<2x8x8xf32>
    %272 = arith.mulf %270, %271 : vector<2x8x8xf32>
    %273 = vector.broadcast %32 : vector<2x1x8xf32> to vector<2x8x8xf32>
    %274 = arith.addf %272, %273 : vector<2x8x8xf32>
    %cst_145 = arith.constant dense<0xFF800000> : vector<2x8xf32>
    %275 = vector.multi_reduction <maximumf>, %274, %cst_145 [2] : vector<2x8x8xf32> to vector<2x8xf32>
    %276 = vector.shape_cast %275 : vector<2x8xf32> to vector<2x8x1xf32>
    %277 = vector.broadcast %276 : vector<2x8x1xf32> to vector<2x8x8xf32>
    %278 = arith.subf %274, %277 : vector<2x8x8xf32>
    %279 = math.exp %278 : vector<2x8x8xf32>
    %cst_146 = arith.constant dense<0.000000e+00> : vector<2x8xf32>
    %280 = vector.multi_reduction <add>, %279, %cst_146 [2] : vector<2x8x8xf32> to vector<2x8xf32>
    %281 = vector.shape_cast %280 : vector<2x8xf32> to vector<2x8x1xf32>
    %282 = tpu.reciprocal %281 {approx = true} : vector<2x8x1xf32> -> vector<2x8x1xf32>
    %283 = vector.broadcast %282 : vector<2x8x1xf32> to vector<2x8x8xf32>
    %284 = arith.mulf %279, %283 : vector<2x8x8xf32>
    %285 = vector.extract_strided_slice %267 {offsets = [0, 0, 0], sizes = [2, 8, 8], strides = [1, 1, 1]} : vector<2x8x32xf32> to vector<2x8x8xf32>
    "tpu.trace_start"() <{level = 10 : i32, message = "bqk,bkd->bqd"}> : () -> ()
    %cst_147 = arith.constant dense<0.000000e+00> : vector<2x8x8xf32>
    %286 = tpu.matmul %284, %285, %cst_147 {dimension_numbers = #tpu.dot_dimension_numbers<[2], [1], [1], [2], [0, 0, 0, 1, 1, 2], [0], [0]>} : vector<2x8x8xf32>, vector<2x8x8xf32>, vector<2x8x8xf32> -> vector<2x8x8xf32>
    "tpu.trace_stop"() : () -> ()
    %287 = vector.extract_strided_slice %251 {offsets = [0, 0, 8], sizes = [2, 8, 8], strides = [1, 1, 1]} : vector<2x8x32xf32> to vector<2x8x8xf32>
    %288 = vector.extract_strided_slice %259 {offsets = [0, 0, 8], sizes = [2, 8, 8], strides = [1, 1, 1]} : vector<2x8x32xf32> to vector<2x8x8xf32>
    "tpu.trace_start"() <{level = 10 : i32, message = "bqd,bkd->bqk"}> : () -> ()
    %cst_148 = arith.constant dense<0.000000e+00> : vector<2x8x8xf32>
    %289 = tpu.matmul %287, %288, %cst_148 {dimension_numbers = #tpu.dot_dimension_numbers<[2], [2], [1], [1], [0, 0, 0, 1, 1, 1], [0], [0]>} : vector<2x8x8xf32>, vector<2x8x8xf32>, vector<2x8x8xf32> -> vector<2x8x8xf32>
    "tpu.trace_stop"() : () -> ()
    %cst_149 = arith.constant 0.353553385 : f32
    %290 = vector.broadcast %cst_149 : f32 to vector<2x8x8xf32>
    %291 = arith.mulf %289, %290 : vector<2x8x8xf32>
    %292 = vector.broadcast %32 : vector<2x1x8xf32> to vector<2x8x8xf32>
    %293 = arith.addf %291, %292 : vector<2x8x8xf32>
    %cst_150 = arith.constant dense<0xFF800000> : vector<2x8xf32>
    %294 = vector.multi_reduction <maximumf>, %293, %cst_150 [2] : vector<2x8x8xf32> to vector<2x8xf32>
    %295 = vector.shape_cast %294 : vector<2x8xf32> to vector<2x8x1xf32>
    %296 = vector.broadcast %295 : vector<2x8x1xf32> to vector<2x8x8xf32>
    %297 = arith.subf %293, %296 : vector<2x8x8xf32>
    %298 = math.exp %297 : vector<2x8x8xf32>
    %cst_151 = arith.constant dense<0.000000e+00> : vector<2x8xf32>
    %299 = vector.multi_reduction <add>, %298, %cst_151 [2] : vector<2x8x8xf32> to vector<2x8xf32>
    %300 = vector.shape_cast %299 : vector<2x8xf32> to vector<2x8x1xf32>
    %301 = tpu.reciprocal %300 {approx = true} : vector<2x8x1xf32> -> vector<2x8x1xf32>
    %302 = vector.broadcast %301 : vector<2x8x1xf32> to vector<2x8x8xf32>
    %303 = arith.mulf %298, %302 : vector<2x8x8xf32>
    %304 = vector.extract_strided_slice %267 {offsets = [0, 0, 8], sizes = [2, 8, 8], strides = [1, 1, 1]} : vector<2x8x32xf32> to vector<2x8x8xf32>
    "tpu.trace_start"() <{level = 10 : i32, message = "bqk,bkd->bqd"}> : () -> ()
    %cst_152 = arith.constant dense<0.000000e+00> : vector<2x8x8xf32>
    %305 = tpu.matmul %303, %304, %cst_152 {dimension_numbers = #tpu.dot_dimension_numbers<[2], [1], [1], [2], [0, 0, 0, 1, 1, 2], [0], [0]>} : vector<2x8x8xf32>, vector<2x8x8xf32>, vector<2x8x8xf32> -> vector<2x8x8xf32>
    "tpu.trace_stop"() : () -> ()
    %306 = vector.extract_strided_slice %251 {offsets = [0, 0, 16], sizes = [2, 8, 8], strides = [1, 1, 1]} : vector<2x8x32xf32> to vector<2x8x8xf32>
    %307 = vector.extract_strided_slice %259 {offsets = [0, 0, 16], sizes = [2, 8, 8], strides = [1, 1, 1]} : vector<2x8x32xf32> to vector<2x8x8xf32>
    "tpu.trace_start"() <{level = 10 : i32, message = "bqd,bkd->bqk"}> : () -> ()
    %cst_153 = arith.constant dense<0.000000e+00> : vector<2x8x8xf32>
    %308 = tpu.matmul %306, %307, %cst_153 {dimension_numbers = #tpu.dot_dimension_numbers<[2], [2], [1], [1], [0, 0, 0, 1, 1, 1], [0], [0]>} : vector<2x8x8xf32>, vector<2x8x8xf32>, vector<2x8x8xf32> -> vector<2x8x8xf32>
    "tpu.trace_stop"() : () -> ()
    %cst_154 = arith.constant 0.353553385 : f32
    %309 = vector.broadcast %cst_154 : f32 to vector<2x8x8xf32>
    %310 = arith.mulf %308, %309 : vector<2x8x8xf32>
    %311 = vector.broadcast %32 : vector<2x1x8xf32> to vector<2x8x8xf32>
    %312 = arith.addf %310, %311 : vector<2x8x8xf32>
    %cst_155 = arith.constant dense<0xFF800000> : vector<2x8xf32>
    %313 = vector.multi_reduction <maximumf>, %312, %cst_155 [2] : vector<2x8x8xf32> to vector<2x8xf32>
    %314 = vector.shape_cast %313 : vector<2x8xf32> to vector<2x8x1xf32>
    %315 = vector.broadcast %314 : vector<2x8x1xf32> to vector<2x8x8xf32>
    %316 = arith.subf %312, %315 : vector<2x8x8xf32>
    %317 = math.exp %316 : vector<2x8x8xf32>
    %cst_156 = arith.constant dense<0.000000e+00> : vector<2x8xf32>
    %318 = vector.multi_reduction <add>, %317, %cst_156 [2] : vector<2x8x8xf32> to vector<2x8xf32>
    %319 = vector.shape_cast %318 : vector<2x8xf32> to vector<2x8x1xf32>
    %320 = tpu.reciprocal %319 {approx = true} : vector<2x8x1xf32> -> vector<2x8x1xf32>
    %321 = vector.broadcast %320 : vector<2x8x1xf32> to vector<2x8x8xf32>
    %322 = arith.mulf %317, %321 : vector<2x8x8xf32>
    %323 = vector.extract_strided_slice %267 {offsets = [0, 0, 16], sizes = [2, 8, 8], strides = [1, 1, 1]} : vector<2x8x32xf32> to vector<2x8x8xf32>
    "tpu.trace_start"() <{level = 10 : i32, message = "bqk,bkd->bqd"}> : () -> ()
    %cst_157 = arith.constant dense<0.000000e+00> : vector<2x8x8xf32>
    %324 = tpu.matmul %322, %323, %cst_157 {dimension_numbers = #tpu.dot_dimension_numbers<[2], [1], [1], [2], [0, 0, 0, 1, 1, 2], [0], [0]>} : vector<2x8x8xf32>, vector<2x8x8xf32>, vector<2x8x8xf32> -> vector<2x8x8xf32>
    "tpu.trace_stop"() : () -> ()
    %325 = vector.extract_strided_slice %251 {offsets = [0, 0, 24], sizes = [2, 8, 8], strides = [1, 1, 1]} : vector<2x8x32xf32> to vector<2x8x8xf32>
    %326 = vector.extract_strided_slice %259 {offsets = [0, 0, 24], sizes = [2, 8, 8], strides = [1, 1, 1]} : vector<2x8x32xf32> to vector<2x8x8xf32>
    "tpu.trace_start"() <{level = 10 : i32, message = "bqd,bkd->bqk"}> : () -> ()
    %cst_158 = arith.constant dense<0.000000e+00> : vector<2x8x8xf32>
    %327 = tpu.matmul %325, %326, %cst_158 {dimension_numbers = #tpu.dot_dimension_numbers<[2], [2], [1], [1], [0, 0, 0, 1, 1, 1], [0], [0]>} : vector<2x8x8xf32>, vector<2x8x8xf32>, vector<2x8x8xf32> -> vector<2x8x8xf32>
    "tpu.trace_stop"() : () -> ()
    %cst_159 = arith.constant 0.353553385 : f32
    %328 = vector.broadcast %cst_159 : f32 to vector<2x8x8xf32>
    %329 = arith.mulf %327, %328 : vector<2x8x8xf32>
    %330 = vector.broadcast %32 : vector<2x1x8xf32> to vector<2x8x8xf32>
    %331 = arith.addf %329, %330 : vector<2x8x8xf32>
    %cst_160 = arith.constant dense<0xFF800000> : vector<2x8xf32>
    %332 = vector.multi_reduction <maximumf>, %331, %cst_160 [2] : vector<2x8x8xf32> to vector<2x8xf32>
    %333 = vector.shape_cast %332 : vector<2x8xf32> to vector<2x8x1xf32>
    %334 = vector.broadcast %333 : vector<2x8x1xf32> to vector<2x8x8xf32>
    %335 = arith.subf %331, %334 : vector<2x8x8xf32>
    %336 = math.exp %335 : vector<2x8x8xf32>
    %cst_161 = arith.constant dense<0.000000e+00> : vector<2x8xf32>
    %337 = vector.multi_reduction <add>, %336, %cst_161 [2] : vector<2x8x8xf32> to vector<2x8xf32>
    %338 = vector.shape_cast %337 : vector<2x8xf32> to vector<2x8x1xf32>
    %339 = tpu.reciprocal %338 {approx = true} : vector<2x8x1xf32> -> vector<2x8x1xf32>
    %340 = vector.broadcast %339 : vector<2x8x1xf32> to vector<2x8x8xf32>
    %341 = arith.mulf %336, %340 : vector<2x8x8xf32>
    %342 = vector.extract_strided_slice %267 {offsets = [0, 0, 24], sizes = [2, 8, 8], strides = [1, 1, 1]} : vector<2x8x32xf32> to vector<2x8x8xf32>
    "tpu.trace_start"() <{level = 10 : i32, message = "bqk,bkd->bqd"}> : () -> ()
    %cst_162 = arith.constant dense<0.000000e+00> : vector<2x8x8xf32>
    %343 = tpu.matmul %341, %342, %cst_162 {dimension_numbers = #tpu.dot_dimension_numbers<[2], [1], [1], [2], [0, 0, 0, 1, 1, 2], [0], [0]>} : vector<2x8x8xf32>, vector<2x8x8xf32>, vector<2x8x8xf32> -> vector<2x8x8xf32>
    "tpu.trace_stop"() : () -> ()
    %344 = tpu.concatenate %286, %305, %324, %343 in 2 : vector<2x8x8xf32>, vector<2x8x8xf32>, vector<2x8x8xf32>, vector<2x8x8xf32> -> vector<2x8x32xf32>
    %345 = vector.shape_cast %344 : vector<2x8x32xf32> to vector<16x32xf32>
    %c1_163 = arith.constant 1 : index
    %c0_164 = arith.constant 0 : index
    %c0_165 = arith.constant 0 : index
    %346 = vector.load %arg16[%c1_163, %c0_164, %c0_165] : memref<2x32x32xf32, #tpu.memory_space<vmem>>, vector<1x32x32xf32>
    %347 = vector.shape_cast %346 : vector<1x32x32xf32> to vector<32x32xf32>
    %cst_166 = arith.constant dense<0.000000e+00> : vector<16x32xf32>
    %348 = tpu.matmul %345, %347, %cst_166 {dimension_numbers = #tpu.dot_dimension_numbers<[1], [0], [0], [1], [0, 0, 1, 1], [], []>} : vector<16x32xf32>, vector<32x32xf32>, vector<16x32xf32> -> vector<16x32xf32>
    %c1_167 = arith.constant 1 : index
    %c0_168 = arith.constant 0 : index
    %c0_169 = arith.constant 0 : index
    %349 = vector.load %arg17[%c1_167, %c0_168, %c0_169] : memref<2x1x32xf32, #tpu.memory_space<vmem>>, vector<1x1x32xf32>
    %350 = vector.shape_cast %349 : vector<1x1x32xf32> to vector<1x32xf32>
    %351 = vector.broadcast %350 : vector<1x32xf32> to vector<16x32xf32>
    %352 = arith.addf %348, %351 : vector<16x32xf32>
    %353 = arith.addf %243, %352 : vector<16x32xf32>
    %c1_170 = arith.constant 1 : index
    %c0_171 = arith.constant 0 : index
    %c0_172 = arith.constant 0 : index
    %354 = vector.load %arg24[%c1_170, %c0_171, %c0_172] : memref<2x1x32xf32, #tpu.memory_space<vmem>>, vector<1x1x32xf32>
    %355 = vector.shape_cast %354 : vector<1x1x32xf32> to vector<1x32xf32>
    %c1_173 = arith.constant 1 : index
    %c0_174 = arith.constant 0 : index
    %c0_175 = arith.constant 0 : index
    %356 = vector.load %arg25[%c1_173, %c0_174, %c0_175] : memref<2x1x32xf32, #tpu.memory_space<vmem>>, vector<1x1x32xf32>
    %357 = vector.shape_cast %356 : vector<1x1x32xf32> to vector<1x32xf32>
    %cst_176 = arith.constant dense<0.000000e+00> : vector<16xf32>
    %358 = vector.multi_reduction <add>, %353, %cst_176 [1] : vector<16x32xf32> to vector<16xf32>
    %359 = vector.shape_cast %358 : vector<16xf32> to vector<16x1xf32>
    %cst_177 = arith.constant 3.200000e+01 : f32
    %360 = vector.broadcast %cst_177 : f32 to vector<16x1xf32>
    %361 = arith.divf %359, %360 : vector<16x1xf32>
    %362 = vector.broadcast %361 : vector<16x1xf32> to vector<16x32xf32>
    %363 = arith.subf %353, %362 : vector<16x32xf32>
    %364 = arith.mulf %363, %363 : vector<16x32xf32>
    %cst_178 = arith.constant dense<0.000000e+00> : vector<16xf32>
    %365 = vector.multi_reduction <add>, %364, %cst_178 [1] : vector<16x32xf32> to vector<16xf32>
    %366 = vector.shape_cast %365 : vector<16xf32> to vector<16x1xf32>
    %cst_179 = arith.constant 3.200000e+01 : f32
    %367 = vector.broadcast %cst_179 : f32 to vector<16x1xf32>
    %368 = arith.divf %366, %367 : vector<16x1xf32>
    %cst_180 = arith.constant 9.99999974E-6 : f32
    %369 = vector.broadcast %cst_180 : f32 to vector<16x1xf32>
    %370 = arith.addf %368, %369 : vector<16x1xf32>
    %371 = math.rsqrt %370 : vector<16x1xf32>
    %372 = vector.broadcast %371 : vector<16x1xf32> to vector<16x32xf32>
    %373 = arith.mulf %363, %372 : vector<16x32xf32>
    %374 = vector.broadcast %355 : vector<1x32xf32> to vector<16x32xf32>
    %375 = arith.mulf %373, %374 : vector<16x32xf32>
    %376 = vector.broadcast %357 : vector<1x32xf32> to vector<16x32xf32>
    %377 = arith.addf %375, %376 : vector<16x32xf32>
    %c1_181 = arith.constant 1 : index
    %c0_182 = arith.constant 0 : index
    %c0_183 = arith.constant 0 : index
    %378 = vector.load %arg18[%c1_181, %c0_182, %c0_183] : memref<2x32x32xf32, #tpu.memory_space<vmem>>, vector<1x32x32xf32>
    %379 = vector.shape_cast %378 : vector<1x32x32xf32> to vector<32x32xf32>
    %cst_184 = arith.constant dense<0.000000e+00> : vector<2x32xf32>
    %380 = tpu.matmul %29, %379, %cst_184 {dimension_numbers = #tpu.dot_dimension_numbers<[1], [0], [0], [1], [0, 0, 1, 1], [], []>} : vector<2x32xf32>, vector<32x32xf32>, vector<2x32xf32> -> vector<2x32xf32>
    %c1_185 = arith.constant 1 : index
    %c0_186 = arith.constant 0 : index
    %c0_187 = arith.constant 0 : index
    %381 = vector.load %arg19[%c1_185, %c0_186, %c0_187] : memref<2x1x32xf32, #tpu.memory_space<vmem>>, vector<1x1x32xf32>
    %382 = vector.shape_cast %381 : vector<1x1x32xf32> to vector<1x32xf32>
    %383 = vector.broadcast %382 : vector<1x32xf32> to vector<2x32xf32>
    %384 = arith.addf %380, %383 : vector<2x32xf32>
    %385 = vector.shape_cast %377 : vector<16x32xf32> to vector<2x8x32xf32>
    %386 = vector.shape_cast %384 : vector<2x32xf32> to vector<2x1x32xf32>
    %387 = vector.broadcast %386 : vector<2x1x32xf32> to vector<2x8x32xf32>
    %388 = arith.addf %385, %387 : vector<2x8x32xf32>
    %389 = vector.shape_cast %388 : vector<2x8x32xf32> to vector<16x32xf32>
    %c1_188 = arith.constant 1 : index
    %c0_189 = arith.constant 0 : index
    %c0_190 = arith.constant 0 : index
    %390 = vector.load %arg26[%c1_188, %c0_189, %c0_190] : memref<2x1x32xf32, #tpu.memory_space<vmem>>, vector<1x1x32xf32>
    %391 = vector.shape_cast %390 : vector<1x1x32xf32> to vector<1x32xf32>
    %c1_191 = arith.constant 1 : index
    %c0_192 = arith.constant 0 : index
    %c0_193 = arith.constant 0 : index
    %392 = vector.load %arg27[%c1_191, %c0_192, %c0_193] : memref<2x1x32xf32, #tpu.memory_space<vmem>>, vector<1x1x32xf32>
    %393 = vector.shape_cast %392 : vector<1x1x32xf32> to vector<1x32xf32>
    %cst_194 = arith.constant dense<0.000000e+00> : vector<16xf32>
    %394 = vector.multi_reduction <add>, %389, %cst_194 [1] : vector<16x32xf32> to vector<16xf32>
    %395 = vector.shape_cast %394 : vector<16xf32> to vector<16x1xf32>
    %cst_195 = arith.constant 3.200000e+01 : f32
    %396 = vector.broadcast %cst_195 : f32 to vector<16x1xf32>
    %397 = arith.divf %395, %396 : vector<16x1xf32>
    %398 = vector.broadcast %397 : vector<16x1xf32> to vector<16x32xf32>
    %399 = arith.subf %389, %398 : vector<16x32xf32>
    %400 = arith.mulf %399, %399 : vector<16x32xf32>
    %cst_196 = arith.constant dense<0.000000e+00> : vector<16xf32>
    %401 = vector.multi_reduction <add>, %400, %cst_196 [1] : vector<16x32xf32> to vector<16xf32>
    %402 = vector.shape_cast %401 : vector<16xf32> to vector<16x1xf32>
    %cst_197 = arith.constant 3.200000e+01 : f32
    %403 = vector.broadcast %cst_197 : f32 to vector<16x1xf32>
    %404 = arith.divf %402, %403 : vector<16x1xf32>
    %cst_198 = arith.constant 9.99999974E-6 : f32
    %405 = vector.broadcast %cst_198 : f32 to vector<16x1xf32>
    %406 = arith.addf %404, %405 : vector<16x1xf32>
    %407 = math.rsqrt %406 : vector<16x1xf32>
    %408 = vector.broadcast %407 : vector<16x1xf32> to vector<16x32xf32>
    %409 = arith.mulf %399, %408 : vector<16x32xf32>
    %410 = vector.broadcast %391 : vector<1x32xf32> to vector<16x32xf32>
    %411 = arith.mulf %409, %410 : vector<16x32xf32>
    %412 = vector.broadcast %393 : vector<1x32xf32> to vector<16x32xf32>
    %413 = arith.addf %411, %412 : vector<16x32xf32>
    %c1_199 = arith.constant 1 : index
    %c0_200 = arith.constant 0 : index
    %c0_201 = arith.constant 0 : index
    %414 = vector.load %arg20[%c1_199, %c0_200, %c0_201] : memref<2x32x64xf32, #tpu.memory_space<vmem>>, vector<1x32x64xf32>
    %415 = vector.shape_cast %414 : vector<1x32x64xf32> to vector<32x64xf32>
    %cst_202 = arith.constant dense<0.000000e+00> : vector<16x64xf32>
    %416 = tpu.matmul %413, %415, %cst_202 {dimension_numbers = #tpu.dot_dimension_numbers<[1], [0], [0], [1], [0, 0, 1, 1], [], []>} : vector<16x32xf32>, vector<32x64xf32>, vector<16x64xf32> -> vector<16x64xf32>
    %c1_203 = arith.constant 1 : index
    %c0_204 = arith.constant 0 : index
    %c0_205 = arith.constant 0 : index
    %417 = vector.load %arg21[%c1_203, %c0_204, %c0_205] : memref<2x1x64xf32, #tpu.memory_space<vmem>>, vector<1x1x64xf32>
    %418 = vector.shape_cast %417 : vector<1x1x64xf32> to vector<1x64xf32>
    %419 = vector.broadcast %418 : vector<1x64xf32> to vector<16x64xf32>
    %420 = arith.addf %416, %419 : vector<16x64xf32>
    %cst_206 = arith.constant 0.000000e+00 : f32
    %421 = vector.broadcast %cst_206 : f32 to vector<16x64xf32>
    %422 = arith.maximumf %420, %421 : vector<16x64xf32>
    %c1_207 = arith.constant 1 : index
    %c0_208 = arith.constant 0 : index
    %c0_209 = arith.constant 0 : index
    %423 = vector.load %arg22[%c1_207, %c0_208, %c0_209] : memref<2x64x32xf32, #tpu.memory_space<vmem>>, vector<1x64x32xf32>
    %424 = vector.shape_cast %423 : vector<1x64x32xf32> to vector<64x32xf32>
    %cst_210 = arith.constant dense<0.000000e+00> : vector<16x32xf32>
    %425 = tpu.matmul %422, %424, %cst_210 {dimension_numbers = #tpu.dot_dimension_numbers<[1], [0], [0], [1], [0, 0, 1, 1], [], []>} : vector<16x64xf32>, vector<64x32xf32>, vector<16x32xf32> -> vector<16x32xf32>
    %c1_211 = arith.constant 1 : index
    %c0_212 = arith.constant 0 : index
    %c0_213 = arith.constant 0 : index
    %426 = vector.load %arg23[%c1_211, %c0_212, %c0_213] : memref<2x1x32xf32, #tpu.memory_space<vmem>>, vector<1x1x32xf32>
    %427 = vector.shape_cast %426 : vector<1x1x32xf32> to vector<1x32xf32>
    %428 = vector.broadcast %427 : vector<1x32xf32> to vector<16x32xf32>
    %429 = arith.addf %425, %428 : vector<16x32xf32>
    %430 = arith.addf %413, %429 : vector<16x32xf32>
    %c1_214 = arith.constant 1 : index
    %c0_215 = arith.constant 0 : index
    %c0_216 = arith.constant 0 : index
    %431 = vector.load %arg28[%c1_214, %c0_215, %c0_216] : memref<2x1x32xf32, #tpu.memory_space<vmem>>, vector<1x1x32xf32>
    %432 = vector.shape_cast %431 : vector<1x1x32xf32> to vector<1x32xf32>
    %c1_217 = arith.constant 1 : index
    %c0_218 = arith.constant 0 : index
    %c0_219 = arith.constant 0 : index
    %433 = vector.load %arg29[%c1_217, %c0_218, %c0_219] : memref<2x1x32xf32, #tpu.memory_space<vmem>>, vector<1x1x32xf32>
    %434 = vector.shape_cast %433 : vector<1x1x32xf32> to vector<1x32xf32>
    %cst_220 = arith.constant dense<0.000000e+00> : vector<16xf32>
    %435 = vector.multi_reduction <add>, %430, %cst_220 [1] : vector<16x32xf32> to vector<16xf32>
    %436 = vector.shape_cast %435 : vector<16xf32> to vector<16x1xf32>
    %cst_221 = arith.constant 3.200000e+01 : f32
    %437 = vector.broadcast %cst_221 : f32 to vector<16x1xf32>
    %438 = arith.divf %436, %437 : vector<16x1xf32>
    %439 = vector.broadcast %438 : vector<16x1xf32> to vector<16x32xf32>
    %440 = arith.subf %430, %439 : vector<16x32xf32>
    %441 = arith.mulf %440, %440 : vector<16x32xf32>
    %cst_222 = arith.constant dense<0.000000e+00> : vector<16xf32>
    %442 = vector.multi_reduction <add>, %441, %cst_222 [1] : vector<16x32xf32> to vector<16xf32>
    %443 = vector.shape_cast %442 : vector<16xf32> to vector<16x1xf32>
    %cst_223 = arith.constant 3.200000e+01 : f32
    %444 = vector.broadcast %cst_223 : f32 to vector<16x1xf32>
    %445 = arith.divf %443, %444 : vector<16x1xf32>
    %cst_224 = arith.constant 9.99999974E-6 : f32
    %446 = vector.broadcast %cst_224 : f32 to vector<16x1xf32>
    %447 = arith.addf %445, %446 : vector<16x1xf32>
    %448 = math.rsqrt %447 : vector<16x1xf32>
    %449 = vector.broadcast %448 : vector<16x1xf32> to vector<16x32xf32>
    %450 = arith.mulf %440, %449 : vector<16x32xf32>
    %451 = vector.broadcast %432 : vector<1x32xf32> to vector<16x32xf32>
    %452 = arith.mulf %450, %451 : vector<16x32xf32>
    %453 = vector.broadcast %434 : vector<1x32xf32> to vector<16x32xf32>
    %454 = arith.addf %452, %453 : vector<16x32xf32>
    %455 = vector.shape_cast %454 : vector<16x32xf32> to vector<2x8x32xf32>
    %c0_225 = arith.constant 0 : index
    %c0_226 = arith.constant 0 : index
    %456 = vector.load %arg30[%c0_225, %c0_226] : memref<1x32xf32, #tpu.memory_space<vmem>>, vector<1x32xf32>
    %457 = vector.shape_cast %456 : vector<1x32xf32> to vector<1x1x32xf32>
    %458 = vector.broadcast %457 : vector<1x1x32xf32> to vector<2x8x32xf32>
    %459 = arith.mulf %455, %458 : vector<2x8x32xf32>
    %cst_227 = arith.constant dense<0.000000e+00> : vector<2x8xf32>
    %460 = vector.multi_reduction <add>, %459, %cst_227 [2] : vector<2x8x32xf32> to vector<2x8xf32>
    %c0_228 = arith.constant 0 : index
    %c0_229 = arith.constant 0 : index
    %461 = vector.load %arg31[%c0_228, %c0_229] : memref<1x1xf32, #tpu.memory_space<vmem>>, vector<1x1xf32>
    %462 = vector.broadcast %461 : vector<1x1xf32> to vector<2x8xf32>
    %463 = arith.addf %460, %462 : vector<2x8xf32>
    %464 = vector.shape_cast %463 : vector<2x8xf32> to vector<1x1x16xf32>
    %c0_230 = arith.constant 0 : index
    %c0_231 = arith.constant 0 : index
    %c0_232 = arith.constant 0 : index
    %465 = vector.load %arg32[%c0_230, %c0_231, %c0_232] : memref<1x1x16xf32, #tpu.memory_space<vmem>>, vector<1x1x16xf32>
    tpu.vector_store %arg32[%c0_230, %c0_231, %c0_232], %464 {strides = array<i32>} : memref<1x1x16xf32, #tpu.memory_space<vmem>>, vector<1x1x16xf32>,
    return
  }
  func.func @transform_0(%arg0: i32) -> (i32, i32) {
    %c0_i32 = arith.constant 0 : i32
    %c0_i32_0 = arith.constant 0 : i32
    return %arg0, %c0_i32 : i32, i32
  }
  func.func @transform_1(%arg0: i32) -> (i32, i32) {
    %c0_i32 = arith.constant 0 : i32
    %c0_i32_0 = arith.constant 0 : i32
    return %arg0, %c0_i32 : i32, i32
  }
  func.func @transform_2(%arg0: i32) -> (i32, i32) {
    %c0_i32 = arith.constant 0 : i32
    %c0_i32_0 = arith.constant 0 : i32
    return %arg0, %c0_i32 : i32, i32
  }
  func.func @transform_3(%arg0: i32) -> (i32, i32, i32) {
    %c0_i32 = arith.constant 0 : i32
    %c0_i32_0 = arith.constant 0 : i32
    %c0_i32_1 = arith.constant 0 : i32
    return %arg0, %c0_i32, %c0_i32_0 : i32, i32, i32
  }
  func.func @transform_4(%arg0: i32) -> (i32, i32) {
    %c0_i32 = arith.constant 0 : i32
    %c0_i32_0 = arith.constant 0 : i32
    %c0_i32_1 = arith.constant 0 : i32
    return %c0_i32, %c0_i32_0 : i32, i32
  }
  func.func @transform_5(%arg0: i32) -> (i32, i32) {
    %c0_i32 = arith.constant 0 : i32
    %c0_i32_0 = arith.constant 0 : i32
    %c0_i32_1 = arith.constant 0 : i32
    return %c0_i32, %c0_i32_0 : i32, i32
  }
  func.func @transform_6(%arg0: i32) -> (i32, i32) {
    %c0_i32 = arith.constant 0 : i32
    %c0_i32_0 = arith.constant 0 : i32
    %c0_i32_1 = arith.constant 0 : i32
    return %c0_i32, %c0_i32_0 : i32, i32
  }
  func.func @transform_7(%arg0: i32) -> (i32, i32) {
    %c0_i32 = arith.constant 0 : i32
    %c0_i32_0 = arith.constant 0 : i32
    %c0_i32_1 = arith.constant 0 : i32
    return %c0_i32, %c0_i32_0 : i32, i32
  }
  func.func @transform_8(%arg0: i32) -> (i32, i32) {
    %c0_i32 = arith.constant 0 : i32
    %c0_i32_0 = arith.constant 0 : i32
    %c0_i32_1 = arith.constant 0 : i32
    return %c0_i32, %c0_i32_0 : i32, i32
  }
  func.func @transform_9(%arg0: i32) -> (i32, i32, i32) {
    %c0_i32 = arith.constant 0 : i32
    %c0_i32_0 = arith.constant 0 : i32
    %c0_i32_1 = arith.constant 0 : i32
    %c0_i32_2 = arith.constant 0 : i32
    return %c0_i32, %c0_i32_0, %c0_i32_1 : i32, i32, i32
  }
  func.func @transform_10(%arg0: i32) -> (i32, i32, i32) {
    %c0_i32 = arith.constant 0 : i32
    %c0_i32_0 = arith.constant 0 : i32
    %c0_i32_1 = arith.constant 0 : i32
    %c0_i32_2 = arith.constant 0 : i32
    return %c0_i32, %c0_i32_0, %c0_i32_1 : i32, i32, i32
  }
  func.func @transform_11(%arg0: i32) -> (i32, i32, i32) {
    %c0_i32 = arith.constant 0 : i32
    %c0_i32_0 = arith.constant 0 : i32
    %c0_i32_1 = arith.constant 0 : i32
    %c0_i32_2 = arith.constant 0 : i32
    return %c0_i32, %c0_i32_0, %c0_i32_1 : i32, i32, i32
  }
  func.func @transform_12(%arg0: i32) -> (i32, i32, i32) {
    %c0_i32 = arith.constant 0 : i32
    %c0_i32_0 = arith.constant 0 : i32
    %c0_i32_1 = arith.constant 0 : i32
    %c0_i32_2 = arith.constant 0 : i32
    return %c0_i32, %c0_i32_0, %c0_i32_1 : i32, i32, i32
  }
  func.func @transform_13(%arg0: i32) -> (i32, i32, i32) {
    %c0_i32 = arith.constant 0 : i32
    %c0_i32_0 = arith.constant 0 : i32
    %c0_i32_1 = arith.constant 0 : i32
    %c0_i32_2 = arith.constant 0 : i32
    return %c0_i32, %c0_i32_0, %c0_i32_1 : i32, i32, i32
  }
  func.func @transform_14(%arg0: i32) -> (i32, i32, i32) {
    %c0_i32 = arith.constant 0 : i32
    %c0_i32_0 = arith.constant 0 : i32
    %c0_i32_1 = arith.constant 0 : i32
    %c0_i32_2 = arith.constant 0 : i32
    return %c0_i32, %c0_i32_0, %c0_i32_1 : i32, i32, i32
  }
  func.func @transform_15(%arg0: i32) -> (i32, i32, i32) {
    %c0_i32 = arith.constant 0 : i32
    %c0_i32_0 = arith.constant 0 : i32
    %c0_i32_1 = arith.constant 0 : i32
    %c0_i32_2 = arith.constant 0 : i32
    return %c0_i32, %c0_i32_0, %c0_i32_1 : i32, i32, i32
  }
  func.func @transform_16(%arg0: i32) -> (i32, i32, i32) {
    %c0_i32 = arith.constant 0 : i32
    %c0_i32_0 = arith.constant 0 : i32
    %c0_i32_1 = arith.constant 0 : i32
    %c0_i32_2 = arith.constant 0 : i32
    return %c0_i32, %c0_i32_0, %c0_i32_1 : i32, i32, i32
  }
  func.func @transform_17(%arg0: i32) -> (i32, i32, i32) {
    %c0_i32 = arith.constant 0 : i32
    %c0_i32_0 = arith.constant 0 : i32
    %c0_i32_1 = arith.constant 0 : i32
    %c0_i32_2 = arith.constant 0 : i32
    return %c0_i32, %c0_i32_0, %c0_i32_1 : i32, i32, i32
  }
  func.func @transform_18(%arg0: i32) -> (i32, i32, i32) {
    %c0_i32 = arith.constant 0 : i32
    %c0_i32_0 = arith.constant 0 : i32
    %c0_i32_1 = arith.constant 0 : i32
    %c0_i32_2 = arith.constant 0 : i32
    return %c0_i32, %c0_i32_0, %c0_i32_1 : i32, i32, i32
  }
  func.func @transform_19(%arg0: i32) -> (i32, i32, i32) {
    %c0_i32 = arith.constant 0 : i32
    %c0_i32_0 = arith.constant 0 : i32
    %c0_i32_1 = arith.constant 0 : i32
    %c0_i32_2 = arith.constant 0 : i32
    return %c0_i32, %c0_i32_0, %c0_i32_1 : i32, i32, i32
  }
  func.func @transform_20(%arg0: i32) -> (i32, i32, i32) {
    %c0_i32 = arith.constant 0 : i32
    %c0_i32_0 = arith.constant 0 : i32
    %c0_i32_1 = arith.constant 0 : i32
    %c0_i32_2 = arith.constant 0 : i32
    return %c0_i32, %c0_i32_0, %c0_i32_1 : i32, i32, i32
  }
  func.func @transform_21(%arg0: i32) -> (i32, i32, i32) {
    %c0_i32 = arith.constant 0 : i32
    %c0_i32_0 = arith.constant 0 : i32
    %c0_i32_1 = arith.constant 0 : i32
    %c0_i32_2 = arith.constant 0 : i32
    return %c0_i32, %c0_i32_0, %c0_i32_1 : i32, i32, i32
  }
  func.func @transform_22(%arg0: i32) -> (i32, i32, i32) {
    %c0_i32 = arith.constant 0 : i32
    %c0_i32_0 = arith.constant 0 : i32
    %c0_i32_1 = arith.constant 0 : i32
    %c0_i32_2 = arith.constant 0 : i32
    return %c0_i32, %c0_i32_0, %c0_i32_1 : i32, i32, i32
  }
  func.func @transform_23(%arg0: i32) -> (i32, i32, i32) {
    %c0_i32 = arith.constant 0 : i32
    %c0_i32_0 = arith.constant 0 : i32
    %c0_i32_1 = arith.constant 0 : i32
    %c0_i32_2 = arith.constant 0 : i32
    return %c0_i32, %c0_i32_0, %c0_i32_1 : i32, i32, i32
  }
  func.func @transform_24(%arg0: i32) -> (i32, i32, i32) {
    %c0_i32 = arith.constant 0 : i32
    %c0_i32_0 = arith.constant 0 : i32
    %c0_i32_1 = arith.constant 0 : i32
    %c0_i32_2 = arith.constant 0 : i32
    return %c0_i32, %c0_i32_0, %c0_i32_1 : i32, i32, i32
  }
  func.func @transform_25(%arg0: i32) -> (i32, i32, i32) {
    %c0_i32 = arith.constant 0 : i32
    %c0_i32_0 = arith.constant 0 : i32
    %c0_i32_1 = arith.constant 0 : i32
    %c0_i32_2 = arith.constant 0 : i32
    return %c0_i32, %c0_i32_0, %c0_i32_1 : i32, i32, i32
  }
  func.func @transform_26(%arg0: i32) -> (i32, i32, i32) {
    %c0_i32 = arith.constant 0 : i32
    %c0_i32_0 = arith.constant 0 : i32
    %c0_i32_1 = arith.constant 0 : i32
    %c0_i32_2 = arith.constant 0 : i32
    return %c0_i32, %c0_i32_0, %c0_i32_1 : i32, i32, i32
  }
  func.func @transform_27(%arg0: i32) -> (i32, i32, i32) {
    %c0_i32 = arith.constant 0 : i32
    %c0_i32_0 = arith.constant 0 : i32
    %c0_i32_1 = arith.constant 0 : i32
    %c0_i32_2 = arith.constant 0 : i32
    return %c0_i32, %c0_i32_0, %c0_i32_1 : i32, i32, i32
  }
  func.func @transform_28(%arg0: i32) -> (i32, i32, i32) {
    %c0_i32 = arith.constant 0 : i32
    %c0_i32_0 = arith.constant 0 : i32
    %c0_i32_1 = arith.constant 0 : i32
    %c0_i32_2 = arith.constant 0 : i32
    return %c0_i32, %c0_i32_0, %c0_i32_1 : i32, i32, i32
  }
  func.func @transform_29(%arg0: i32) -> (i32, i32) {
    %c0_i32 = arith.constant 0 : i32
    %c0_i32_0 = arith.constant 0 : i32
    %c0_i32_1 = arith.constant 0 : i32
    return %c0_i32, %c0_i32_0 : i32, i32
  }
  func.func @transform_30(%arg0: i32) -> (i32, i32) {
    %c0_i32 = arith.constant 0 : i32
    %c0_i32_0 = arith.constant 0 : i32
    %c0_i32_1 = arith.constant 0 : i32
    return %c0_i32, %c0_i32_0 : i32, i32
  }
  func.func @transform_31(%arg0: i32) -> (i32, i32, i32) {
    %c0_i32 = arith.constant 0 : i32
    %c0_i32_0 = arith.constant 0 : i32
    %c0_i32_1 = arith.constant 0 : i32
    return %arg0, %c0_i32, %c0_i32_0 : i32, i32, i32
  }
}

</mosaic_0001>

<llo_original>
// kernel: tpu_custom_call.1
$region0: #{tpu_custom_call.1}
  #allocation0 [shape = 'u32[]', space=smem, size = 0x4, offset = 0x4, fixed_abs, tag = 'smem constant byte address 0x4 - core index']
  #allocation1 [shape = 'u32[72,128]{1,0:T(1,128)}', space=vmem, size = 0x9000, scoped, tag = 'internal scratch']
  #allocation2 [shape = 'f32[1,1]{1,0:T(1,128)S(1)}', space=vmem, size = 0x200, scoped, tag = 'scoped memory for tpu_custom_call.1']
  %s0 = inlined_call_operand.smem [shape: u32[32], index: -1, kind: input, shape index: {}]
  %s1 = sld [smem:[%s0]]
  %s2 = scalar_lea.smem %s0, 1
  %s3 = sld [smem:[%s2]]
  %s4 = scalar_lea.smem %s0, 2
  %s5 = sld [smem:[%s4]]
  %s6 = scalar_lea.smem %s0, 3
  %s7 = sld [smem:[%s6]]
  %s8 = scalar_lea.smem %s0, 4
  %s9 = sld [smem:[%s8]]
  %s10 = scalar_lea.smem %s0, 5
  %s11 = sld [smem:[%s10]]
  %s12 = scalar_lea.smem %s0, 6
  %s13 = sld [smem:[%s12]]
  %s14 = scalar_lea.smem %s0, 7
  %s15 = sld [smem:[%s14]]
  %s16 = scalar_lea.smem %s0, 8
  %s17 = sld [smem:[%s16]]
  %s18 = scalar_lea.smem %s0, 9
  %s19 = sld [smem:[%s18]]
  %s20 = scalar_lea.smem %s0, 10
  %s21 = sld [smem:[%s20]]
  %s22 = scalar_lea.smem %s0, 11
  %s23 = sld [smem:[%s22]]
  %s24 = scalar_lea.smem %s0, 12
  %s25 = sld [smem:[%s24]]
  %s26 = scalar_lea.smem %s0, 13
  %s27 = sld [smem:[%s26]]
  %s28 = scalar_lea.smem %s0, 14
  %s29 = sld [smem:[%s28]]
  %s30 = scalar_lea.smem %s0, 15
  %s31 = sld [smem:[%s30]]
  %s32 = scalar_lea.smem %s0, 16
  %s33 = sld [smem:[%s32]]
  %s34 = scalar_lea.smem %s0, 17
  %s35 = sld [smem:[%s34]]
  %s36 = scalar_lea.smem %s0, 18
  %s37 = sld [smem:[%s36]]
  %s38 = scalar_lea.smem %s0, 19
  %s39 = sld [smem:[%s38]]
  %s40 = scalar_lea.smem %s0, 20
  %s41 = sld [smem:[%s40]]
  %s42 = scalar_lea.smem %s0, 21
  %s43 = sld [smem:[%s42]]
  %s44 = scalar_lea.smem %s0, 22
  %s45 = sld [smem:[%s44]]
  %s46 = scalar_lea.smem %s0, 23
  %s47 = sld [smem:[%s46]]
  %s48 = scalar_lea.smem %s0, 24
  %s49 = sld [smem:[%s48]]
  %s50 = scalar_lea.smem %s0, 25
  %s51 = sld [smem:[%s50]]
  %s52 = scalar_lea.smem %s0, 26
  %s53 = sld [smem:[%s52]]
  %s54 = scalar_lea.smem %s0, 27
  %s55 = sld [smem:[%s54]]
  %s56 = scalar_lea.smem %s0, 28
  %s57 = sld [smem:[%s56]]
  %s58 = scalar_lea.smem %s0, 29
  %s59 = sld [smem:[%s58]]
  %s60 = scalar_lea.smem %s0, 30
  %s61 = sld [smem:[%s60]]
  %s62 = scalar_lea.smem %s0, 31
  %s63 = sld [smem:[%s62]]
  %s64 = sld [smem:[#allocation0]]
  $region182: #{tpu_custom_call.1} parent=0
    _
  %s66 = ssub.s32 1, %s64
  %s67 = scalar_select 0, %s66, %s64
  %v68 = vstv %s61
  %69 = vst [vmem:[#allocation2] sm:$0x1] %v68
  $region1: #{tpu_custom_call.1} parent=0
    #allocation3 [shape = 'u8[1024]{0}', space=vmem, size = 0x400, scoped, tag = 'input window, operand 1, single buffered']
    #allocation4 [shape = 's32[1]{0}', space=sflag, size = 0x4, scoped, tag = 'scoped memory for tpu_custom_call.1']
    #allocation5 [shape = 's32[1]{0}', space=sflag, size = 0x4, scoped, tag = 'scoped memory for tpu_custom_call.1']
    #allocation6 [shape = 'u8[1024]{0}', space=vmem, size = 0x400, scoped, tag = 'input window, operand 2, single buffered']
    #allocation7 [shape = 's32[1]{0}', space=sflag, size = 0x4, scoped, tag = 'scoped memory for tpu_custom_call.1']
    #allocation8 [shape = 'u8[4096]{0}', space=vmem, size = 0x1000, scoped, tag = 'input window, operand 4, single buffered']
    #allocation9 [shape = 'u8[512]{0}', space=vmem, size = 0x400, scoped, tag = 'input window, operand 5, single buffered']
    #allocation10 [shape = 's32[1]{0}', space=sflag, size = 0x4, scoped, tag = 'scoped memory for tpu_custom_call.1']
    #allocation11 [shape = 'u8[512]{0}', space=vmem, size = 0x400, scoped, tag = 'input window, operand 6, single buffered']
    #allocation12 [shape = 'u8[8192]{0}', space=vmem, size = 0x2000, scoped, tag = 'input window, operand 7, single buffered']
    #allocation13 [shape = 's32[1]{0}', space=sflag, size = 0x4, scoped, tag = 'scoped memory for tpu_custom_call.1']
    #allocation14 [shape = 'u8[512]{0}', space=vmem, size = 0x400, scoped, tag = 'input window, operand 8, single buffered']
    #allocation15 [shape = 'u8[32768]{0}', space=vmem, size = 0x8000, scoped, tag = 'input window, operand 15, single buffered']
    #allocation16 [shape = 's32[1]{0}', space=sflag, size = 0x4, scoped, tag = 'scoped memory for tpu_custom_call.1']
    #allocation17 [shape = 'u8[32768]{0}', space=vmem, size = 0x8000, scoped, tag = 'input window, operand 17, single buffered']
    #allocation18 [shape = 'u8[32768]{0}', space=vmem, size = 0x8000, scoped, tag = 'input window, operand 19, single buffered']
    #allocation19 [shape = 's32[1]{0}', space=sflag, size = 0x4, scoped, tag = 'scoped memory for tpu_custom_call.1']
    #allocation20 [shape = 'u8[1024]{0}', space=vmem, size = 0x400, scoped, tag = 'input window, operand 27, single buffered']
    #allocation21 [shape = 'u8[512]{0}', space=vmem, size = 0x400, scoped, tag = 'input window, operand 29, single buffered']
    #allocation22 [shape = 's32[1]{0}', space=sflag, size = 0x4, scoped, tag = 'scoped memory for tpu_custom_call.1']
    #allocation23 [shape = 'u8[512]{0}', space=vmem, size = 0x400, scoped, tag = 'output window, operand 0, single buffered']
    %70 = vsyncpa [#allocation4], 0
    %71 = vsyncpa [#allocation7], 0
    %72 = vsyncpa [#allocation10], 0
    %73 = vsyncpa [#allocation13], 0
    %74 = vsyncpa [#allocation16], 0
    %75 = vsyncpa [#allocation19], 0
    %76 = vsyncpa [#allocation22], 0
    %77 = vsyncpa [#allocation5], 0
    // Predicated region
    $region2: #{tpu_custom_call.1} parent=1 // pred_check
      _
    $region3: #{tpu_custom_call.1} parent=1 // pred_check_branch
      %79 = sbr.rel (0) target = $region5
    $region4: #{tpu_custom_call.1} parent=1 // pred_region
      _
    $region5: #{tpu_custom_call.1} parent=1 // pred_fallthru
      _
    // Predicated region
    $region6: #{tpu_custom_call.1} parent=1 // pred_check
      _
    $region7: #{tpu_custom_call.1} parent=1 // pred_check_branch
      %81 = sbr.rel (0) target = $region9
    $region8: #{tpu_custom_call.1} parent=1 // pred_region
      %83 = vsyncadd [#allocation4], 0
      %s85 = sshll.u32 %s3, 4
      %s86 = int_to_ptr.hbm [resolvable:$true] %s85
      %s87 = sshll.u32 [#allocation3], 4
      %s88 = int_to_ptr.vmem [resolvable:$true] %s87
      %90 = dma.hbm_to_vmem [thread:$0]  %s86, 32, %s88, [#allocation4]
    $region9: #{tpu_custom_call.1} parent=1 // pred_fallthru
      _
    // Predicated region
    $region10: #{tpu_custom_call.1} parent=1 // pred_check
      _
    $region11: #{tpu_custom_call.1} parent=1 // pred_check_branch
      %92 = sbr.rel (0) target = $region13
    $region12: #{tpu_custom_call.1} parent=1 // pred_region
      %94 = vsyncadd [#allocation7], 0
      %s96 = sshll.u32 %s5, 4
      %s97 = int_to_ptr.hbm [resolvable:$true] %s96
      %s98 = sshll.u32 [#allocation6], 4
      %s99 = int_to_ptr.vmem [resolvable:$true] %s98
      %101 = dma.hbm_to_vmem [thread:$0]  %s97, 32, %s99, [#allocation7]
    $region13: #{tpu_custom_call.1} parent=1 // pred_fallthru
      _
    // Predicated region
    $region14: #{tpu_custom_call.1} parent=1 // pred_check
      _
    $region15: #{tpu_custom_call.1} parent=1 // pred_check_branch
      %103 = sbr.rel (0) target = $region17
    $region16: #{tpu_custom_call.1} parent=1 // pred_region
      _
    $region17: #{tpu_custom_call.1} parent=1 // pred_fallthru
      _
    // Predicated region
    $region18: #{tpu_custom_call.1} parent=1 // pred_check
      _
    $region19: #{tpu_custom_call.1} parent=1 // pred_check_branch
      %105 = sbr.rel (0) target = $region21
    $region20: #{tpu_custom_call.1} parent=1 // pred_region
      %107 = vsyncadd [#allocation7], 0
      %s109 = sshll.u32 %s9, 4
      %s110 = int_to_ptr.hbm [resolvable:$true] %s109
      %s111 = sshll.u32 [#allocation8], 4
      %s112 = int_to_ptr.vmem [resolvable:$true] %s111
      %114 = dma.hbm_to_vmem [thread:$0]  %s110, 128, %s112, [#allocation7]
    $region21: #{tpu_custom_call.1} parent=1 // pred_fallthru
      _
    // Predicated region
    $region22: #{tpu_custom_call.1} parent=1 // pred_check
      _
    $region23: #{tpu_custom_call.1} parent=1 // pred_check_branch
      %116 = sbr.rel (0) target = $region25
    $region24: #{tpu_custom_call.1} parent=1 // pred_region
      %118 = vsyncadd [#allocation10], 0
      %s120 = sshll.u32 %s11, 4
      %s121 = int_to_ptr.hbm [resolvable:$true] %s120
      %s122 = sshll.u32 [#allocation9], 4
      %s123 = int_to_ptr.vmem [resolvable:$true] %s122
      %125 = dma.hbm_to_vmem [thread:$0]  %s121, 16, %s123, [#allocation10]
    $region25: #{tpu_custom_call.1} parent=1 // pred_fallthru
      _
    // Predicated region
    $region26: #{tpu_custom_call.1} parent=1 // pred_check
      _
    $region27: #{tpu_custom_call.1} parent=1 // pred_check_branch
      %127 = sbr.rel (0) target = $region29
    $region28: #{tpu_custom_call.1} parent=1 // pred_region
      %129 = vsyncadd [#allocation10], 0
      %s131 = sshll.u32 %s13, 4
      %s132 = int_to_ptr.hbm [resolvable:$true] %s131
      %s133 = sshll.u32 [#allocation11], 4
      %s134 = int_to_ptr.vmem [resolvable:$true] %s133
      %136 = dma.hbm_to_vmem [thread:$0]  %s132, 16, %s134, [#allocation10]
    $region29: #{tpu_custom_call.1} parent=1 // pred_fallthru
      _
    // Predicated region
    $region30: #{tpu_custom_call.1} parent=1 // pred_check
      _
    $region31: #{tpu_custom_call.1} parent=1 // pred_check_branch
      %138 = sbr.rel (0) target = $region33
    $region32: #{tpu_custom_call.1} parent=1 // pred_region
      %140 = vsyncadd [#allocation13], 0
      %s141 = sshll.u32 %s15, 4
      %s142 = int_to_ptr.hbm [resolvable:$true] %s141
      %s143 = sshll.u32 [#allocation12], 4
      %s144 = int_to_ptr.vmem [resolvable:$true] %s143
      %149 = dma.hbm_to_vmem [thread:$0]  %s142, 256, %s144, [#allocation13], 128, 128, 8
    $region33: #{tpu_custom_call.1} parent=1 // pred_fallthru
      _
    // Predicated region
    $region34: #{tpu_custom_call.1} parent=1 // pred_check
      _
    $region35: #{tpu_custom_call.1} parent=1 // pred_check_branch
      %151 = sbr.rel (0) target = $region37
    $region36: #{tpu_custom_call.1} parent=1 // pred_region
      %153 = vsyncadd [#allocation13], 0
      %s155 = sshll.u32 %s17, 4
      %s156 = int_to_ptr.hbm [resolvable:$true] %s155
      %s157 = sshll.u32 [#allocation14], 4
      %s158 = int_to_ptr.vmem [resolvable:$true] %s157
      %160 = dma.hbm_to_vmem [thread:$0]  %s156, 16, %s158, [#allocation13]
    $region37: #{tpu_custom_call.1} parent=1 // pred_fallthru
      _
    // Predicated region
    $region38: #{tpu_custom_call.1} parent=1 // pred_check
      _
    $region39: #{tpu_custom_call.1} parent=1 // pred_check_branch
      %162 = sbr.rel (0) target = $region41
    $region40: #{tpu_custom_call.1} parent=1 // pred_region
      _
    $region41: #{tpu_custom_call.1} parent=1 // pred_fallthru
      _
    // Predicated region
    $region42: #{tpu_custom_call.1} parent=1 // pred_check
      _
    $region43: #{tpu_custom_call.1} parent=1 // pred_check_branch
      %164 = sbr.rel (0) target = $region45
    $region44: #{tpu_custom_call.1} parent=1 // pred_region
      _
    $region45: #{tpu_custom_call.1} parent=1 // pred_fallthru
      _
    // Predicated region
    $region46: #{tpu_custom_call.1} parent=1 // pred_check
      _
    $region47: #{tpu_custom_call.1} parent=1 // pred_check_branch
      %166 = sbr.rel (0) target = $region49
    $region48: #{tpu_custom_call.1} parent=1 // pred_region
      _
    $region49: #{tpu_custom_call.1} parent=1 // pred_fallthru
      _
    // Predicated region
    $region50: #{tpu_custom_call.1} parent=1 // pred_check
      _
    $region51: #{tpu_custom_call.1} parent=1 // pred_check_branch
      %168 = sbr.rel (0) target = $region53
    $region52: #{tpu_custom_call.1} parent=1 // pred_region
      _
    $region53: #{tpu_custom_call.1} parent=1 // pred_fallthru
      _
    // Predicated region
    $region54: #{tpu_custom_call.1} parent=1 // pred_check
      _
    $region55: #{tpu_custom_call.1} parent=1 // pred_check_branch
      %170 = sbr.rel (0) target = $region57
    $region56: #{tpu_custom_call.1} parent=1 // pred_region
      _
    $region57: #{tpu_custom_call.1} parent=1 // pred_fallthru
      _
    // Predicated region
    $region58: #{tpu_custom_call.1} parent=1 // pred_check
      _
    $region59: #{tpu_custom_call.1} parent=1 // pred_check_branch
      %172 = sbr.rel (0) target = $region61
    $region60: #{tpu_custom_call.1} parent=1 // pred_region
      _
    $region61: #{tpu_custom_call.1} parent=1 // pred_fallthru
      _
    // Predicated region
    $region62: #{tpu_custom_call.1} parent=1 // pred_check
      _
    $region63: #{tpu_custom_call.1} parent=1 // pred_check_branch
      %174 = sbr.rel (0) target = $region65
    $region64: #{tpu_custom_call.1} parent=1 // pred_region
      %176 = vsyncadd [#allocation16], 0
      %s177 = sshll.u32 %s31, 4
      %s178 = int_to_ptr.hbm [resolvable:$true] %s177
      %s179 = sshll.u32 [#allocation15], 4
      %s180 = int_to_ptr.vmem [resolvable:$true] %s179
      %185 = dma.hbm_to_vmem [thread:$0]  %s178, 1024, %s180, [#allocation16], 128, 128, 8
    $region65: #{tpu_custom_call.1} parent=1 // pred_fallthru
      _
    // Predicated region
    $region66: #{tpu_custom_call.1} parent=1 // pred_check
      _
    $region67: #{tpu_custom_call.1} parent=1 // pred_check_branch
      %187 = sbr.rel (0) target = $region69
    $region68: #{tpu_custom_call.1} parent=1 // pred_region
      _
    $region69: #{tpu_custom_call.1} parent=1 // pred_fallthru
      _
    // Predicated region
    $region70: #{tpu_custom_call.1} parent=1 // pred_check
      _
    $region71: #{tpu_custom_call.1} parent=1 // pred_check_branch
      %189 = sbr.rel (0) target = $region73
    $region72: #{tpu_custom_call.1} parent=1 // pred_region
      %191 = vsyncadd [#allocation16], 0
      %s192 = sshll.u32 %s35, 4
      %s193 = int_to_ptr.hbm [resolvable:$true] %s192
      %s194 = sshll.u32 [#allocation17], 4
      %s195 = int_to_ptr.vmem [resolvable:$true] %s194
      %200 = dma.hbm_to_vmem [thread:$0]  %s193, 1024, %s195, [#allocation16], 128, 128, 8
    $region73: #{tpu_custom_call.1} parent=1 // pred_fallthru
      _
    // Predicated region
    $region74: #{tpu_custom_call.1} parent=1 // pred_check
      _
    $region75: #{tpu_custom_call.1} parent=1 // pred_check_branch
      %202 = sbr.rel (0) target = $region77
    $region76: #{tpu_custom_call.1} parent=1 // pred_region
      _
    $region77: #{tpu_custom_call.1} parent=1 // pred_fallthru
      _
    // Predicated region
    $region78: #{tpu_custom_call.1} parent=1 // pred_check
      _
    $region79: #{tpu_custom_call.1} parent=1 // pred_check_branch
      %204 = sbr.rel (0) target = $region81
    $region80: #{tpu_custom_call.1} parent=1 // pred_region
      %206 = vsyncadd [#allocation19], 0
      %s207 = sshll.u32 %s39, 4
      %s208 = int_to_ptr.hbm [resolvable:$true] %s207
      %s209 = sshll.u32 [#allocation18], 4
      %s210 = int_to_ptr.vmem [resolvable:$true] %s209
      %215 = dma.hbm_to_vmem [thread:$0]  %s208, 1024, %s210, [#allocation19], 128, 128, 8
    $region81: #{tpu_custom_call.1} parent=1 // pred_fallthru
      _
    // Predicated region
    $region82: #{tpu_custom_call.1} parent=1 // pred_check
      _
    $region83: #{tpu_custom_call.1} parent=1 // pred_check_branch
      %217 = sbr.rel (0) target = $region85
    $region84: #{tpu_custom_call.1} parent=1 // pred_region
      _
    $region85: #{tpu_custom_call.1} parent=1 // pred_fallthru
      _
    // Predicated region
    $region86: #{tpu_custom_call.1} parent=1 // pred_check
      _
    $region87: #{tpu_custom_call.1} parent=1 // pred_check_branch
      %219 = sbr.rel (0) target = $region89
    $region88: #{tpu_custom_call.1} parent=1 // pred_region
      _
    $region89: #{tpu_custom_call.1} parent=1 // pred_fallthru
      _
    // Predicated region
    $region90: #{tpu_custom_call.1} parent=1 // pred_check
      _
    $region91: #{tpu_custom_call.1} parent=1 // pred_check_branch
      %221 = sbr.rel (0) target = $region93
    $region92: #{tpu_custom_call.1} parent=1 // pred_region
      _
    $region93: #{tpu_custom_call.1} parent=1 // pred_fallthru
      _
    // Predicated region
    $region94: #{tpu_custom_call.1} parent=1 // pred_check
      _
    $region95: #{tpu_custom_call.1} parent=1 // pred_check_branch
      %223 = sbr.rel (0) target = $region97
    $region96: #{tpu_custom_call.1} parent=1 // pred_region
      _
    $region97: #{tpu_custom_call.1} parent=1 // pred_fallthru
      _
    // Predicated region
    $region98: #{tpu_custom_call.1} parent=1 // pred_check
      _
    $region99: #{tpu_custom_call.1} parent=1 // pred_check_branch
      %225 = sbr.rel (0) target = $region101
    $region100: #{tpu_custom_call.1} parent=1 // pred_region
      _
    $region101: #{tpu_custom_call.1} parent=1 // pred_fallthru
      _
    // Predicated region
    $region102: #{tpu_custom_call.1} parent=1 // pred_check
      _
    $region103: #{tpu_custom_call.1} parent=1 // pred_check_branch
      %227 = sbr.rel (0) target = $region105
    $region104: #{tpu_custom_call.1} parent=1 // pred_region
      _
    $region105: #{tpu_custom_call.1} parent=1 // pred_fallthru
      _
    // Predicated region
    $region106: #{tpu_custom_call.1} parent=1 // pred_check
      _
    $region107: #{tpu_custom_call.1} parent=1 // pred_check_branch
      %229 = sbr.rel (0) target = $region109
    $region108: #{tpu_custom_call.1} parent=1 // pred_region
      _
    $region109: #{tpu_custom_call.1} parent=1 // pred_fallthru
      _
    // Predicated region
    $region110: #{tpu_custom_call.1} parent=1 // pred_check
      _
    $region111: #{tpu_custom_call.1} parent=1 // pred_check_branch
      %231 = sbr.rel (0) target = $region113
    $region112: #{tpu_custom_call.1} parent=1 // pred_region
      %233 = vsyncadd [#allocation19], 0
      %s234 = sshll.u32 %s55, 4
      %s235 = int_to_ptr.hbm [resolvable:$true] %s234
      %s236 = sshll.u32 [#allocation20], 4
      %s237 = int_to_ptr.vmem [resolvable:$true] %s236
      %242 = dma.hbm_to_vmem [thread:$0]  %s235, 32, %s237, [#allocation19], 16, 16, 1
    $region113: #{tpu_custom_call.1} parent=1 // pred_fallthru
      _
    // Predicated region
    $region114: #{tpu_custom_call.1} parent=1 // pred_check
      _
    $region115: #{tpu_custom_call.1} parent=1 // pred_check_branch
      %244 = sbr.rel (0) target = $region117
    $region116: #{tpu_custom_call.1} parent=1 // pred_region
      _
    $region117: #{tpu_custom_call.1} parent=1 // pred_fallthru
      _
    // Predicated region
    $region118: #{tpu_custom_call.1} parent=1 // pred_check
      _
    $region119: #{tpu_custom_call.1} parent=1 // pred_check_branch
      %246 = sbr.rel (0) target = $region121
    $region120: #{tpu_custom_call.1} parent=1 // pred_region
      %248 = vsyncadd [#allocation22], 0
      %s250 = sshll.u32 %s59, 4
      %s251 = int_to_ptr.hbm [resolvable:$true] %s250
      %s252 = sshll.u32 [#allocation21], 4
      %s253 = int_to_ptr.vmem [resolvable:$true] %s252
      %255 = dma.hbm_to_vmem [thread:$0]  %s251, 16, %s253, [#allocation22]
    $region121: #{tpu_custom_call.1} parent=1 // pred_fallthru
      _
    // Predicated region
    $region122: #{tpu_custom_call.1} parent=1 // pred_check
      _
    $region123: #{tpu_custom_call.1} parent=1 // pred_check_branch
      %257 = sbr.rel (0) target = $region125
    $region124: #{tpu_custom_call.1} parent=1 // pred_region
      _
    $region125: #{tpu_custom_call.1} parent=1 // pred_fallthru
      _
    // Predicated region
    $region126: #{tpu_custom_call.1} parent=1 // pred_check
      _
    $region127: #{tpu_custom_call.1} parent=1 // pred_check_branch
      %259 = sbr.rel (0) target = $region129
    $region128: #{tpu_custom_call.1} parent=1 // pred_region
      %261 = dma.done [#allocation4], 32
    $region129: #{tpu_custom_call.1} parent=1 // pred_fallthru
      _
    // Predicated region
    $region130: #{tpu_custom_call.1} parent=1 // pred_check
      _
    $region131: #{tpu_custom_call.1} parent=1 // pred_check_branch
      %263 = sbr.rel (0) target = $region133
    $region132: #{tpu_custom_call.1} parent=1 // pred_region
      %265 = dma.done [#allocation7], 32
    $region133: #{tpu_custom_call.1} parent=1 // pred_fallthru
      _
    // Predicated region
    $region134: #{tpu_custom_call.1} parent=1 // pred_check
      _
    $region135: #{tpu_custom_call.1} parent=1 // pred_check_branch
      %267 = sbr.rel (0) target = $region137
    $region136: #{tpu_custom_call.1} parent=1 // pred_region
      %269 = dma.done [#allocation7], 128
    $region137: #{tpu_custom_call.1} parent=1 // pred_fallthru
      _
    // Predicated region
    $region138: #{tpu_custom_call.1} parent=1 // pred_check
      _
    $region139: #{tpu_custom_call.1} parent=1 // pred_check_branch
      %271 = sbr.rel (0) target = $region141
    $region140: #{tpu_custom_call.1} parent=1 // pred_region
      %273 = dma.done [#allocation10], 16
    $region141: #{tpu_custom_call.1} parent=1 // pred_fallthru
      _
    // Predicated region
    $region142: #{tpu_custom_call.1} parent=1 // pred_check
      _
    $region143: #{tpu_custom_call.1} parent=1 // pred_check_branch
      %275 = sbr.rel (0) target = $region145
    $region144: #{tpu_custom_call.1} parent=1 // pred_region
      %277 = dma.done [#allocation10], 16
    $region145: #{tpu_custom_call.1} parent=1 // pred_fallthru
      _
    // Predicated region
    $region146: #{tpu_custom_call.1} parent=1 // pred_check
      _
    $region147: #{tpu_custom_call.1} parent=1 // pred_check_branch
      %279 = sbr.rel (0) target = $region149
    $region148: #{tpu_custom_call.1} parent=1 // pred_region
      %281 = dma.done [#allocation13], 256
    $region149: #{tpu_custom_call.1} parent=1 // pred_fallthru
      _
    // Predicated region
    $region150: #{tpu_custom_call.1} parent=1 // pred_check
      _
    $region151: #{tpu_custom_call.1} parent=1 // pred_check_branch
      %283 = sbr.rel (0) target = $region153
    $region152: #{tpu_custom_call.1} parent=1 // pred_region
      %285 = dma.done [#allocation13], 16
    $region153: #{tpu_custom_call.1} parent=1 // pred_fallthru
      _
    // Predicated region
    $region154: #{tpu_custom_call.1} parent=1 // pred_check
      _
    $region155: #{tpu_custom_call.1} parent=1 // pred_check_branch
      %287 = sbr.rel (0) target = $region157
    $region156: #{tpu_custom_call.1} parent=1 // pred_region
      %289 = dma.done [#allocation16], 1024
    $region157: #{tpu_custom_call.1} parent=1 // pred_fallthru
      _
    // Predicated region
    $region158: #{tpu_custom_call.1} parent=1 // pred_check
      _
    $region159: #{tpu_custom_call.1} parent=1 // pred_check_branch
      %291 = sbr.rel (0) target = $region161
    $region160: #{tpu_custom_call.1} parent=1 // pred_region
      %293 = dma.done [#allocation16], 1024
    $region161: #{tpu_custom_call.1} parent=1 // pred_fallthru
      _
    // Predicated region
    $region162: #{tpu_custom_call.1} parent=1 // pred_check
      _
    $region163: #{tpu_custom_call.1} parent=1 // pred_check_branch
      %295 = sbr.rel (0) target = $region165
    $region164: #{tpu_custom_call.1} parent=1 // pred_region
      %297 = dma.done [#allocation19], 1024
    $region165: #{tpu_custom_call.1} parent=1 // pred_fallthru
      _
    // Predicated region
    $region166: #{tpu_custom_call.1} parent=1 // pred_check
      _
    $region167: #{tpu_custom_call.1} parent=1 // pred_check_branch
      %299 = sbr.rel (0) target = $region169
    $region168: #{tpu_custom_call.1} parent=1 // pred_region
      %301 = dma.done [#allocation19], 32
    $region169: #{tpu_custom_call.1} parent=1 // pred_fallthru
      _
    // Predicated region
    $region170: #{tpu_custom_call.1} parent=1 // pred_check
      _
    $region171: #{tpu_custom_call.1} parent=1 // pred_check_branch
      %303 = sbr.rel (0) target = $region173
    $region172: #{tpu_custom_call.1} parent=1 // pred_region
      %305 = dma.done [#allocation22], 16
    $region173: #{tpu_custom_call.1} parent=1 // pred_fallthru
      _
    %v306 = vld [vmem:[#allocation3] sm:$0x3]
    %v307 = vperm.slane %v306, 0
    %v308 = vlaneseq
    %v309 = vshrl.u32 %v308, 7
    %311 = vset.pattern.permute.xlu0 %v309
    %312 = vperm.xlu0 %311, %v307
    %v313 = vpop.permute.xlu0 %312
    %v314 = vperm.slane %v306, 1
    %v315 = vlaneseq
    %v316 = vshrl.u32 %v315, 7
    %318 = vset.pattern.permute.xlu0 %v316
    %319 = vperm.xlu0 %318, %v314
    %v320 = vpop.permute.xlu0 %319
    %v321 = vlaneseq
    %v322 = vand.u32 %v321, 127
    %vm323 = vcmp.eq.s32.totalorder %v313, %v322
    %vm324 = vcmp.eq.s32.totalorder %v320, %v322
    %v325 = vsel %vm323, 1, 0
    %v326 = vsel %vm324, 1, 0
    %v327 = vcvt.s32.f32 %v325
    %v328 = vcvt.s32.f32 %v326
    %v329 = vld [vmem:[#allocation8] sm:$0xff]
    %vm330 = vcmask 64512
    %v332 = vsel %vm330, %v327, 0
    %v335 = vsel %vm330, %v328, 0
    %337 = vmatpush.msra.mxu0 0.0
    %338 = vmatpush.msra.mxu0 0.0
    %339 = vmatpush.msra.mxu0 0.0
    %340 = vmatpush.msra.mxu0 0.0
    %341 = vmatpush.msra.mxu0 0.0
    %342 = vmatpush.msra.mxu0 0.0
    %343 = vmatpush.msra.mxu0 0.0
    %344 = vmatpush.msra.mxu0 0.0
    %345 = vmatpush.msra.mxu0 0.0
    %346 = vmatpush.msra.mxu0 0.0
    %347 = vmatpush.msra.mxu0 0.0
    %348 = vmatpush.msra.mxu0 0.0
    %349 = vmatpush.msra.mxu0 0.0
    %350 = vmatpush.msra.mxu0 0.0
    %351 = vmatpush.msra.mxu0 0.0
    %352 = vmatpush.msra.mxu0 %v329
    %353 = vmatmul.f32.gmra.mxu0 %v332
    %v354 = vpop.f32.mrf.mxu0
    %v355 = vadd.f32 0.0, %v354
    %356 = vmatmul.f32.gmra.mxu0 %v335
    %v357 = vpop.f32.mrf.mxu0
    %v358 = vadd.f32 0.0, %v357
    %359 = vdwg.mxu0
    %v360 = vld [vmem:[%s1] sm:$0x3]
    %v361 = vperm.slane %v360, 0
    %v362 = vlaneseq
    %v363 = vshrl.u32 %v362, 7
    %365 = vset.pattern.permute.xlu0 %v363
    %366 = vperm.xlu0 %365, %v361
    %v367 = vpop.permute.xlu0 %366
    %v368 = vperm.slane %v360, 1
    %v369 = vlaneseq
    %v370 = vshrl.u32 %v369, 7
    %372 = vset.pattern.permute.xlu0 %v370
    %373 = vperm.xlu0 %372, %v368
    %v374 = vpop.permute.xlu0 %373
    %v375 = vld [vmem:[#allocation9] sm:$0x1]
    %v377 = vperm.slane %v375, 0
    %v379 = vmul.f32 %v367, %v377
    %v380 = vmul.f32 %v374, %v377
    %v381 = vld [vmem:[#allocation11] sm:$0x1]
    %v383 = vperm.slane %v381, 0
    %v385 = vadd.f32 %v379, %v383
    %v386 = vadd.f32 %v380, %v383
    %v387 = vadd.f32 %v385, %v355
    %v388 = vadd.f32 %v386, %v358
    %v389 = vld [vmem:[#allocation6] sm:$0x3]
    %v390 = vld [vmem:[#allocation12] sm:$0xff]
    %v391 = vld [vmem:[#allocation12 + $0x8] sm:$0xff]
    %v392 = vld [vmem:[#allocation14] sm:$0x1]
    %v394 = vperm.slane %v392, 0
    %vm396 = vcmask 130048
    %v398 = vsel %vm396, %v389, 0
    %400 = vmatpush.msra.mxu0 0.0
    %401 = vmatpush.msra.mxu0 0.0
    %402 = vmatpush.msra.mxu0 0.0
    %403 = vmatpush.msra.mxu0 0.0
    %404 = vmatpush.msra.mxu0 0.0
    %405 = vmatpush.msra.mxu0 0.0
    %406 = vmatpush.msra.mxu0 0.0
    %407 = vmatpush.msra.mxu0 0.0
    %408 = vmatpush.msra.mxu0 0.0
    %409 = vmatpush.msra.mxu0 0.0
    %410 = vmatpush.msra.mxu0 0.0
    %411 = vmatpush.msra.mxu0 0.0
    %412 = vmatpush.msra.mxu0 0.0
    %413 = vmatpush.msra.mxu0 0.0
    %414 = vmatpush.msra.mxu0 %v391
    %415 = vmatpush.msra.mxu0 %v390
    %416 = vmatmul.f32.gmra.mxu0 %v398
    %v417 = vpop.f32.mrf.mxu0
    %v418 = vadd.f32 %v394, %v417
    %419 = vdwg.mxu0
    %v420 = vld [vmem:[%s7] sm:$0x1]
    %v421 = vld [vmem:[%s7 + $0x1] sm:$0x1]
    %v422 = vmul.f32 %v420, -1e+09
    %v423 = vmul.f32 %v421, -1e+09
    %v424 = vld [vmem:[%s19] sm:$0xff]
    %v425 = vld [vmem:[%s19 + $0x8] sm:$0xff]
    %v426 = vld [vmem:[%s19 + $0x10] sm:$0xff]
    %v427 = vld [vmem:[%s19 + $0x18] sm:$0xff]
    %v428 = vld [vmem:[%s21] sm:$0x1]
    %v430 = vperm.slane %v428, 0
    %vm432 = vcmask 261120
    %v434 = vsel %vm432, %v387, 0
    %v437 = vsel %vm432, %v388, 0
    %439 = vmatpush.msra.mxu0 0.0
    %440 = vmatpush.msra.mxu0 0.0
    %441 = vmatpush.msra.mxu0 0.0
    %442 = vmatpush.msra.mxu0 0.0
    %443 = vmatpush.msra.mxu0 0.0
    %444 = vmatpush.msra.mxu0 0.0
    %445 = vmatpush.msra.mxu0 0.0
    %446 = vmatpush.msra.mxu0 0.0
    %447 = vmatpush.msra.mxu0 0.0
    %448 = vmatpush.msra.mxu0 0.0
    %449 = vmatpush.msra.mxu0 0.0
    %450 = vmatpush.msra.mxu0 0.0
    %451 = vmatpush.msra.mxu0 %v427
    %452 = vmatpush.msra.mxu0 %v426
    %453 = vmatpush.msra.mxu0 %v425
    %454 = vmatpush.msra.mxu0 %v424
    %455 = vmatmul.f32.gmra.mxu0 %v434
    %v456 = vpop.f32.mrf.mxu0
    %v457 = vadd.f32 %v430, %v456
    %458 = vmatmul.f32.gmra.mxu0 %v437
    %v459 = vpop.f32.mrf.mxu0
    %v460 = vadd.f32 %v430, %v459
    %461 = vdwg.mxu0
    %v462 = vld [vmem:[%s23] sm:$0xff]
    %v463 = vld [vmem:[%s23 + $0x8] sm:$0xff]
    %v464 = vld [vmem:[%s23 + $0x10] sm:$0xff]
    %v465 = vld [vmem:[%s23 + $0x18] sm:$0xff]
    %v466 = vld [vmem:[%s25] sm:$0x1]
    %v468 = vperm.slane %v466, 0
    %470 = vmatpush.msra.mxu0 0.0
    %471 = vmatpush.msra.mxu0 0.0
    %472 = vmatpush.msra.mxu0 0.0
    %473 = vmatpush.msra.mxu0 0.0
    %474 = vmatpush.msra.mxu0 0.0
    %475 = vmatpush.msra.mxu0 0.0
    %476 = vmatpush.msra.mxu0 0.0
    %477 = vmatpush.msra.mxu0 0.0
    %478 = vmatpush.msra.mxu0 0.0
    %479 = vmatpush.msra.mxu0 0.0
    %480 = vmatpush.msra.mxu0 0.0
    %481 = vmatpush.msra.mxu0 0.0
    %482 = vmatpush.msra.mxu0 %v465
    %483 = vmatpush.msra.mxu0 %v464
    %484 = vmatpush.msra.mxu0 %v463
    %485 = vmatpush.msra.mxu0 %v462
    %486 = vmatmul.f32.gmra.mxu0 %v434
    %v487 = vpop.f32.mrf.mxu0
    %v488 = vadd.f32 %v468, %v487
    %489 = vmatmul.f32.gmra.mxu0 %v437
    %v490 = vpop.f32.mrf.mxu0
    %v491 = vadd.f32 %v468, %v490
    %492 = vdwg.mxu0
    %v493 = vld [vmem:[%s27] sm:$0xff]
    %v494 = vld [vmem:[%s27 + $0x8] sm:$0xff]
    %v495 = vld [vmem:[%s27 + $0x10] sm:$0xff]
    %v496 = vld [vmem:[%s27 + $0x18] sm:$0xff]
    %v497 = vld [vmem:[%s29] sm:$0x1]
    %v499 = vperm.slane %v497, 0
    %501 = vmatpush.msra.mxu0 0.0
    %502 = vmatpush.msra.mxu0 0.0
    %503 = vmatpush.msra.mxu0 0.0
    %504 = vmatpush.msra.mxu0 0.0
    %505 = vmatpush.msra.mxu0 0.0
    %506 = vmatpush.msra.mxu0 0.0
    %507 = vmatpush.msra.mxu0 0.0
    %508 = vmatpush.msra.mxu0 0.0
    %509 = vmatpush.msra.mxu0 0.0
    %510 = vmatpush.msra.mxu0 0.0
    %511 = vmatpush.msra.mxu0 0.0
    %512 = vmatpush.msra.mxu0 0.0
    %513 = vmatpush.msra.mxu0 %v496
    %514 = vmatpush.msra.mxu0 %v495
    %515 = vmatpush.msra.mxu0 %v494
    %516 = vmatpush.msra.mxu0 %v493
    %517 = vmatmul.f32.gmra.mxu0 %v434
    %v518 = vpop.f32.mrf.mxu0
    %v519 = vadd.f32 %v499, %v518
    %520 = vmatmul.f32.gmra.mxu0 %v437
    %v521 = vpop.f32.mrf.mxu0
    %v522 = vadd.f32 %v499, %v521
    %523 = vdwg.mxu0
    %v525 = vsel %vm330, %v457, 0
    %v528 = vsel %vm330, %v488, 0
    %530 = vmatpush.xpose.msra.mxu0 0.0
    %531 = vmatpush.xpose.msra.mxu0 0.0
    %532 = vmatpush.xpose.msra.mxu0 0.0
    %533 = vmatpush.xpose.msra.mxu0 0.0
    %534 = vmatpush.xpose.msra.mxu0 0.0
    %535 = vmatpush.xpose.msra.mxu0 0.0
    %536 = vmatpush.xpose.msra.mxu0 0.0
    %537 = vmatpush.xpose.msra.mxu0 0.0
    %538 = vmatpush.xpose.msra.mxu0 0.0
    %539 = vmatpush.xpose.msra.mxu0 0.0
    %540 = vmatpush.xpose.msra.mxu0 0.0
    %541 = vmatpush.xpose.msra.mxu0 0.0
    %542 = vmatpush.xpose.msra.mxu0 0.0
    %543 = vmatpush.xpose.msra.mxu0 0.0
    %544 = vmatpush.xpose.msra.mxu0 0.0
    %545 = vmatpush.xpose.msra.mxu0 %v528
    %546 = vmatmul.f32.gmra.mxu0 %v525
    %v547 = vpop.f32.mrf.mxu0
    %v548 = vadd.f32 0.0, %v547
    %549 = vdwg.mxu0
    %v551 = vsel %vm330, %v460, 0
    %v554 = vsel %vm330, %v491, 0
    %556 = vmatpush.xpose.msra.mxu0 0.0
    %557 = vmatpush.xpose.msra.mxu0 0.0
    %558 = vmatpush.xpose.msra.mxu0 0.0
    %559 = vmatpush.xpose.msra.mxu0 0.0
    %560 = vmatpush.xpose.msra.mxu0 0.0
    %561 = vmatpush.xpose.msra.mxu0 0.0
    %562 = vmatpush.xpose.msra.mxu0 0.0
    %563 = vmatpush.xpose.msra.mxu0 0.0
    %564 = vmatpush.xpose.msra.mxu0 0.0
    %565 = vmatpush.xpose.msra.mxu0 0.0
    %566 = vmatpush.xpose.msra.mxu0 0.0
    %567 = vmatpush.xpose.msra.mxu0 0.0
    %568 = vmatpush.xpose.msra.mxu0 0.0
    %569 = vmatpush.xpose.msra.mxu0 0.0
    %570 = vmatpush.xpose.msra.mxu0 0.0
    %571 = vmatpush.xpose.msra.mxu0 %v554
    %572 = vmatmul.f32.gmra.mxu0 %v551
    %v573 = vpop.f32.mrf.mxu0
    %v574 = vadd.f32 0.0, %v573
    %575 = vdwg.mxu0
    %v576 = vmul.f32 %v548, 0.35355338
    %v577 = vmul.f32 %v574, 0.35355338
    %v580 = vperm.slane %v422, 0
    %v581 = vperm.slane %v423, 0
    %v584 = vadd.f32 %v576, %v580
    %v585 = vadd.f32 %v577, %v581
    %v586 = vsel %vm330, %v584, -inf
    %587 = vmax.xlane.f32.xlu0 %v586
    %v588 = vpop.xlane.xlu0 %587
    %v589 = vsel %vm330, %v585, -inf
    %590 = vmax.xlane.f32.xlu0 %v589
    %v591 = vpop.xlane.xlu0 %590
    %v592 = vsub.f32 %v584, %v588
    %v593 = vsub.f32 %v585, %v591
    %v594 = vmul.f32 %v592, 1.442695
    %v595 = vpow.pop %v594
    %v596 = vmul.f32 %v593, 1.442695
    %v597 = vpow.pop %v596
    %v598 = vsel %vm330, %v595, 0.0
    %599 = vadd.xlane.f32.xlu0 %v598
    %v600 = vpop.xlane.xlu0 %599
    %v601 = vsel %vm330, %v597, 0.0
    %602 = vadd.xlane.f32.xlu0 %v601
    %v603 = vpop.xlane.xlu0 %602
    %v604 = vrcp.pop %v600
    %v605 = vrcp.pop %v603
    %v606 = vmul.f32 %v595, %v604
    %v607 = vmul.f32 %v597, %v605
    %v609 = vsel %vm330, %v606, 0
    %611 = vmatpush.msra.mxu0 0.0
    %612 = vmatpush.msra.mxu0 0.0
    %613 = vmatpush.msra.mxu0 0.0
    %614 = vmatpush.msra.mxu0 0.0
    %615 = vmatpush.msra.mxu0 0.0
    %616 = vmatpush.msra.mxu0 0.0
    %617 = vmatpush.msra.mxu0 0.0
    %618 = vmatpush.msra.mxu0 0.0
    %619 = vmatpush.msra.mxu0 0.0
    %620 = vmatpush.msra.mxu0 0.0
    %621 = vmatpush.msra.mxu0 0.0
    %622 = vmatpush.msra.mxu0 0.0
    %623 = vmatpush.msra.mxu0 0.0
    %624 = vmatpush.msra.mxu0 0.0
    %625 = vmatpush.msra.mxu0 0.0
    %626 = vmatpush.msra.mxu0 %v519
    %627 = vmatmul.f32.gmra.mxu0 %v609
    %v628 = vpop.f32.mrf.mxu0
    %v629 = vadd.f32 0.0, %v628
    %630 = vdwg.mxu0
    %v632 = vsel %vm330, %v607, 0
    %634 = vmatpush.msra.mxu0 0.0
    %635 = vmatpush.msra.mxu0 0.0
    %636 = vmatpush.msra.mxu0 0.0
    %637 = vmatpush.msra.mxu0 0.0
    %638 = vmatpush.msra.mxu0 0.0
    %639 = vmatpush.msra.mxu0 0.0
    %640 = vmatpush.msra.mxu0 0.0
    %641 = vmatpush.msra.mxu0 0.0
    %642 = vmatpush.msra.mxu0 0.0
    %643 = vmatpush.msra.mxu0 0.0
    %644 = vmatpush.msra.mxu0 0.0
    %645 = vmatpush.msra.mxu0 0.0
    %646 = vmatpush.msra.mxu0 0.0
    %647 = vmatpush.msra.mxu0 0.0
    %648 = vmatpush.msra.mxu0 0.0
    %649 = vmatpush.msra.mxu0 %v522
    %650 = vmatmul.f32.gmra.mxu0 %v632
    %v651 = vpop.f32.mrf.mxu0
    %v652 = vadd.f32 0.0, %v651
    %653 = vdwg.mxu0
    %654 = vrot.lane.b32.xlu0 %v457, 120
    %v655 = vpop.permute.xlu0 %654
    %656 = vrot.lane.b32.xlu0 %v488, 120
    %v657 = vpop.permute.xlu0 %656
    %v658 = vsel %vm330, %v655, 0
    %v660 = vsel %vm330, %v657, 0
    %662 = vmatpush.xpose.msra.mxu0 0.0
    %663 = vmatpush.xpose.msra.mxu0 0.0
    %664 = vmatpush.xpose.msra.mxu0 0.0
    %665 = vmatpush.xpose.msra.mxu0 0.0
    %666 = vmatpush.xpose.msra.mxu0 0.0
    %667 = vmatpush.xpose.msra.mxu0 0.0
    %668 = vmatpush.xpose.msra.mxu0 0.0
    %669 = vmatpush.xpose.msra.mxu0 0.0
    %670 = vmatpush.xpose.msra.mxu0 0.0
    %671 = vmatpush.xpose.msra.mxu0 0.0
    %672 = vmatpush.xpose.msra.mxu0 0.0
    %673 = vmatpush.xpose.msra.mxu0 0.0
    %674 = vmatpush.xpose.msra.mxu0 0.0
    %675 = vmatpush.xpose.msra.mxu0 0.0
    %676 = vmatpush.xpose.msra.mxu0 0.0
    %677 = vmatpush.xpose.msra.mxu0 %v660
    %678 = vmatmul.f32.gmra.mxu0 %v658
    %v679 = vpop.f32.mrf.mxu0
    %v680 = vadd.f32 0.0, %v679
    %681 = vdwg.mxu0
    %682 = vrot.lane.b32.xlu0 %v460, 120
    %v683 = vpop.permute.xlu0 %682
    %684 = vrot.lane.b32.xlu0 %v491, 120
    %v685 = vpop.permute.xlu0 %684
    %v686 = vsel %vm330, %v683, 0
    %v688 = vsel %vm330, %v685, 0
    %690 = vmatpush.xpose.msra.mxu0 0.0
    %691 = vmatpush.xpose.msra.mxu0 0.0
    %692 = vmatpush.xpose.msra.mxu0 0.0
    %693 = vmatpush.xpose.msra.mxu0 0.0
    %694 = vmatpush.xpose.msra.mxu0 0.0
    %695 = vmatpush.xpose.msra.mxu0 0.0
    %696 = vmatpush.xpose.msra.mxu0 0.0
    %697 = vmatpush.xpose.msra.mxu0 0.0
    %698 = vmatpush.xpose.msra.mxu0 0.0
    %699 = vmatpush.xpose.msra.mxu0 0.0
    %700 = vmatpush.xpose.msra.mxu0 0.0
    %701 = vmatpush.xpose.msra.mxu0 0.0
    %702 = vmatpush.xpose.msra.mxu0 0.0
    %703 = vmatpush.xpose.msra.mxu0 0.0
    %704 = vmatpush.xpose.msra.mxu0 0.0
    %705 = vmatpush.xpose.msra.mxu0 %v688
    %706 = vmatmul.f32.gmra.mxu0 %v686
    %v707 = vpop.f32.mrf.mxu0
    %v708 = vadd.f32 0.0, %v707
    %709 = vdwg.mxu0
    %v710 = vmul.f32 %v680, 0.35355338
    %v711 = vmul.f32 %v708, 0.35355338
    %v712 = vadd.f32 %v710, %v580
    %v713 = vadd.f32 %v711, %v581
    %v714 = vsel %vm330, %v712, -inf
    %715 = vmax.xlane.f32.xlu0 %v714
    %v716 = vpop.xlane.xlu0 %715
    %v717 = vsel %vm330, %v713, -inf
    %718 = vmax.xlane.f32.xlu0 %v717
    %v719 = vpop.xlane.xlu0 %718
    %v720 = vsub.f32 %v712, %v716
    %v721 = vsub.f32 %v713, %v719
    %v722 = vmul.f32 %v720, 1.442695
    %v723 = vpow.pop %v722
    %v724 = vmul.f32 %v721, 1.442695
    %v725 = vpow.pop %v724
    %v726 = vsel %vm330, %v723, 0.0
    %727 = vadd.xlane.f32.xlu0 %v726
    %v728 = vpop.xlane.xlu0 %727
    %v729 = vsel %vm330, %v725, 0.0
    %730 = vadd.xlane.f32.xlu0 %v729
    %v731 = vpop.xlane.xlu0 %730
    %v732 = vrcp.pop %v728
    %v733 = vrcp.pop %v731
    %v734 = vmul.f32 %v723, %v732
    %v735 = vmul.f32 %v725, %v733
    %737 = vrot.lane.b32.xlu0 %v519, 120
    %v738 = vpop.permute.xlu0 %737
    %v741 = vsel %vm330, %v734, 0
    %743 = vmatpush.msra.mxu0 0.0
    %744 = vmatpush.msra.mxu0 0.0
    %745 = vmatpush.msra.mxu0 0.0
    %746 = vmatpush.msra.mxu0 0.0
    %747 = vmatpush.msra.mxu0 0.0
    %748 = vmatpush.msra.mxu0 0.0
    %749 = vmatpush.msra.mxu0 0.0
    %750 = vmatpush.msra.mxu0 0.0
    %751 = vmatpush.msra.mxu0 0.0
    %752 = vmatpush.msra.mxu0 0.0
    %753 = vmatpush.msra.mxu0 0.0
    %754 = vmatpush.msra.mxu0 0.0
    %755 = vmatpush.msra.mxu0 0.0
    %756 = vmatpush.msra.mxu0 0.0
    %757 = vmatpush.msra.mxu0 0.0
    %758 = vmatpush.msra.mxu0 %v738
    %759 = vmatmul.f32.gmra.mxu0 %v741
    %v760 = vpop.f32.mrf.mxu0
    %v761 = vadd.f32 0.0, %v760
    %762 = vdwg.mxu0
    %764 = vrot.lane.b32.xlu0 %v522, 120
    %v765 = vpop.permute.xlu0 %764
    %v768 = vsel %vm330, %v735, 0
    %770 = vmatpush.msra.mxu0 0.0
    %771 = vmatpush.msra.mxu0 0.0
    %772 = vmatpush.msra.mxu0 0.0
    %773 = vmatpush.msra.mxu0 0.0
    %774 = vmatpush.msra.mxu0 0.0
    %775 = vmatpush.msra.mxu0 0.0
    %776 = vmatpush.msra.mxu0 0.0
    %777 = vmatpush.msra.mxu0 0.0
    %778 = vmatpush.msra.mxu0 0.0
    %779 = vmatpush.msra.mxu0 0.0
    %780 = vmatpush.msra.mxu0 0.0
    %781 = vmatpush.msra.mxu0 0.0
    %782 = vmatpush.msra.mxu0 0.0
    %783 = vmatpush.msra.mxu0 0.0
    %784 = vmatpush.msra.mxu0 0.0
    %785 = vmatpush.msra.mxu0 %v765
    %786 = vmatmul.f32.gmra.mxu0 %v768
    %v787 = vpop.f32.mrf.mxu0
    %v788 = vadd.f32 0.0, %v787
    %789 = vdwg.mxu0
    %790 = vrot.lane.b32.xlu0 %v457, 112
    %v791 = vpop.permute.xlu0 %790
    %792 = vrot.lane.b32.xlu0 %v488, 112
    %v793 = vpop.permute.xlu0 %792
    %v794 = vsel %vm330, %v791, 0
    %v796 = vsel %vm330, %v793, 0
    %798 = vmatpush.xpose.msra.mxu0 0.0
    %799 = vmatpush.xpose.msra.mxu0 0.0
    %800 = vmatpush.xpose.msra.mxu0 0.0
    %801 = vmatpush.xpose.msra.mxu0 0.0
    %802 = vmatpush.xpose.msra.mxu0 0.0
    %803 = vmatpush.xpose.msra.mxu0 0.0
    %804 = vmatpush.xpose.msra.mxu0 0.0
    %805 = vmatpush.xpose.msra.mxu0 0.0
    %806 = vmatpush.xpose.msra.mxu0 0.0
    %807 = vmatpush.xpose.msra.mxu0 0.0
    %808 = vmatpush.xpose.msra.mxu0 0.0
    %809 = vmatpush.xpose.msra.mxu0 0.0
    %810 = vmatpush.xpose.msra.mxu0 0.0
    %811 = vmatpush.xpose.msra.mxu0 0.0
    %812 = vmatpush.xpose.msra.mxu0 0.0
    %813 = vmatpush.xpose.msra.mxu0 %v796
    %814 = vmatmul.f32.gmra.mxu0 %v794
    %v815 = vpop.f32.mrf.mxu0
    %v816 = vadd.f32 0.0, %v815
    %817 = vdwg.mxu0
    %818 = vrot.lane.b32.xlu0 %v460, 112
    %v819 = vpop.permute.xlu0 %818
    %820 = vrot.lane.b32.xlu0 %v491, 112
    %v821 = vpop.permute.xlu0 %820
    %v822 = vsel %vm330, %v819, 0
    %v824 = vsel %vm330, %v821, 0
    %826 = vmatpush.xpose.msra.mxu0 0.0
    %827 = vmatpush.xpose.msra.mxu0 0.0
    %828 = vmatpush.xpose.msra.mxu0 0.0
    %829 = vmatpush.xpose.msra.mxu0 0.0
    %830 = vmatpush.xpose.msra.mxu0 0.0
    %831 = vmatpush.xpose.msra.mxu0 0.0
    %832 = vmatpush.xpose.msra.mxu0 0.0
    %833 = vmatpush.xpose.msra.mxu0 0.0
    %834 = vmatpush.xpose.msra.mxu0 0.0
    %835 = vmatpush.xpose.msra.mxu0 0.0
    %836 = vmatpush.xpose.msra.mxu0 0.0
    %837 = vmatpush.xpose.msra.mxu0 0.0
    %838 = vmatpush.xpose.msra.mxu0 0.0
    %839 = vmatpush.xpose.msra.mxu0 0.0
    %840 = vmatpush.xpose.msra.mxu0 0.0
    %841 = vmatpush.xpose.msra.mxu0 %v824
    %842 = vmatmul.f32.gmra.mxu0 %v822
    %v843 = vpop.f32.mrf.mxu0
    %v844 = vadd.f32 0.0, %v843
    %845 = vdwg.mxu0
    %v846 = vmul.f32 %v816, 0.35355338
    %v847 = vmul.f32 %v844, 0.35355338
    %v848 = vadd.f32 %v846, %v580
    %v849 = vadd.f32 %v847, %v581
    %v850 = vsel %vm330, %v848, -inf
    %851 = vmax.xlane.f32.xlu0 %v850
    %v852 = vpop.xlane.xlu0 %851
    %v853 = vsel %vm330, %v849, -inf
    %854 = vmax.xlane.f32.xlu0 %v853
    %v855 = vpop.xlane.xlu0 %854
    %v856 = vsub.f32 %v848, %v852
    %v857 = vsub.f32 %v849, %v855
    %v858 = vmul.f32 %v856, 1.442695
    %v859 = vpow.pop %v858
    %v860 = vmul.f32 %v857, 1.442695
    %v861 = vpow.pop %v860
    %v862 = vsel %vm330, %v859, 0.0
    %863 = vadd.xlane.f32.xlu0 %v862
    %v864 = vpop.xlane.xlu0 %863
    %v865 = vsel %vm330, %v861, 0.0
    %866 = vadd.xlane.f32.xlu0 %v865
    %v867 = vpop.xlane.xlu0 %866
    %v868 = vrcp.pop %v864
    %v869 = vrcp.pop %v867
    %v870 = vmul.f32 %v859, %v868
    %v871 = vmul.f32 %v861, %v869
    %872 = vrot.lane.b32.xlu0 %v519, 112
    %v873 = vpop.permute.xlu0 %872
    %v876 = vsel %vm330, %v870, 0
    %878 = vmatpush.msra.mxu0 0.0
    %879 = vmatpush.msra.mxu0 0.0
    %880 = vmatpush.msra.mxu0 0.0
    %881 = vmatpush.msra.mxu0 0.0
    %882 = vmatpush.msra.mxu0 0.0
    %883 = vmatpush.msra.mxu0 0.0
    %884 = vmatpush.msra.mxu0 0.0
    %885 = vmatpush.msra.mxu0 0.0
    %886 = vmatpush.msra.mxu0 0.0
    %887 = vmatpush.msra.mxu0 0.0
    %888 = vmatpush.msra.mxu0 0.0
    %889 = vmatpush.msra.mxu0 0.0
    %890 = vmatpush.msra.mxu0 0.0
    %891 = vmatpush.msra.mxu0 0.0
    %892 = vmatpush.msra.mxu0 0.0
    %893 = vmatpush.msra.mxu0 %v873
    %894 = vmatmul.f32.gmra.mxu0 %v876
    %v895 = vpop.f32.mrf.mxu0
    %v896 = vadd.f32 0.0, %v895
    %897 = vdwg.mxu0
    %898 = vrot.lane.b32.xlu0 %v522, 112
    %v899 = vpop.permute.xlu0 %898
    %v902 = vsel %vm330, %v871, 0
    %904 = vmatpush.msra.mxu0 0.0
    %905 = vmatpush.msra.mxu0 0.0
    %906 = vmatpush.msra.mxu0 0.0
    %907 = vmatpush.msra.mxu0 0.0
    %908 = vmatpush.msra.mxu0 0.0
    %909 = vmatpush.msra.mxu0 0.0
    %910 = vmatpush.msra.mxu0 0.0
    %911 = vmatpush.msra.mxu0 0.0
    %912 = vmatpush.msra.mxu0 0.0
    %913 = vmatpush.msra.mxu0 0.0
    %914 = vmatpush.msra.mxu0 0.0
    %915 = vmatpush.msra.mxu0 0.0
    %916 = vmatpush.msra.mxu0 0.0
    %917 = vmatpush.msra.mxu0 0.0
    %918 = vmatpush.msra.mxu0 0.0
    %919 = vmatpush.msra.mxu0 %v899
    %920 = vmatmul.f32.gmra.mxu0 %v902
    %v921 = vpop.f32.mrf.mxu0
    %v922 = vadd.f32 0.0, %v921
    %923 = vdwg.mxu0
    %924 = vrot.lane.b32.xlu0 %v457, 104
    %v925 = vpop.permute.xlu0 %924
    %926 = vrot.lane.b32.xlu0 %v488, 104
    %v927 = vpop.permute.xlu0 %926
    %v928 = vsel %vm330, %v925, 0
    %v930 = vsel %vm330, %v927, 0
    %932 = vmatpush.xpose.msra.mxu0 0.0
    %933 = vmatpush.xpose.msra.mxu0 0.0
    %934 = vmatpush.xpose.msra.mxu0 0.0
    %935 = vmatpush.xpose.msra.mxu0 0.0
    %936 = vmatpush.xpose.msra.mxu0 0.0
    %937 = vmatpush.xpose.msra.mxu0 0.0
    %938 = vmatpush.xpose.msra.mxu0 0.0
    %939 = vmatpush.xpose.msra.mxu0 0.0
    %940 = vmatpush.xpose.msra.mxu0 0.0
    %941 = vmatpush.xpose.msra.mxu0 0.0
    %942 = vmatpush.xpose.msra.mxu0 0.0
    %943 = vmatpush.xpose.msra.mxu0 0.0
    %944 = vmatpush.xpose.msra.mxu0 0.0
    %945 = vmatpush.xpose.msra.mxu0 0.0
    %946 = vmatpush.xpose.msra.mxu0 0.0
    %947 = vmatpush.xpose.msra.mxu0 %v930
    %948 = vmatmul.f32.gmra.mxu0 %v928
    %v949 = vpop.f32.mrf.mxu0
    %v950 = vadd.f32 0.0, %v949
    %951 = vdwg.mxu0
    %952 = vrot.lane.b32.xlu0 %v460, 104
    %v953 = vpop.permute.xlu0 %952
    %954 = vrot.lane.b32.xlu0 %v491, 104
    %v955 = vpop.permute.xlu0 %954
    %v956 = vsel %vm330, %v953, 0
    %v958 = vsel %vm330, %v955, 0
    %960 = vmatpush.xpose.msra.mxu0 0.0
    %961 = vmatpush.xpose.msra.mxu0 0.0
    %962 = vmatpush.xpose.msra.mxu0 0.0
    %963 = vmatpush.xpose.msra.mxu0 0.0
    %964 = vmatpush.xpose.msra.mxu0 0.0
    %965 = vmatpush.xpose.msra.mxu0 0.0
    %966 = vmatpush.xpose.msra.mxu0 0.0
    %967 = vmatpush.xpose.msra.mxu0 0.0
    %968 = vmatpush.xpose.msra.mxu0 0.0
    %969 = vmatpush.xpose.msra.mxu0 0.0
    %970 = vmatpush.xpose.msra.mxu0 0.0
    %971 = vmatpush.xpose.msra.mxu0 0.0
    %972 = vmatpush.xpose.msra.mxu0 0.0
    %973 = vmatpush.xpose.msra.mxu0 0.0
    %974 = vmatpush.xpose.msra.mxu0 0.0
    %975 = vmatpush.xpose.msra.mxu0 %v958
    %976 = vmatmul.f32.gmra.mxu0 %v956
    %v977 = vpop.f32.mrf.mxu0
    %v978 = vadd.f32 0.0, %v977
    %979 = vdwg.mxu0
    %v980 = vmul.f32 %v950, 0.35355338
    %v981 = vmul.f32 %v978, 0.35355338
    %v982 = vadd.f32 %v980, %v580
    %v983 = vadd.f32 %v981, %v581
    %v984 = vsel %vm330, %v982, -inf
    %985 = vmax.xlane.f32.xlu0 %v984
    %v986 = vpop.xlane.xlu0 %985
    %v987 = vsel %vm330, %v983, -inf
    %988 = vmax.xlane.f32.xlu0 %v987
    %v989 = vpop.xlane.xlu0 %988
    %v990 = vsub.f32 %v982, %v986
    %v991 = vsub.f32 %v983, %v989
    %v992 = vmul.f32 %v990, 1.442695
    %v993 = vpow.pop %v992
    %v994 = vmul.f32 %v991, 1.442695
    %v995 = vpow.pop %v994
    %v996 = vsel %vm330, %v993, 0.0
    %997 = vadd.xlane.f32.xlu0 %v996
    %v998 = vpop.xlane.xlu0 %997
    %v999 = vsel %vm330, %v995, 0.0
    %1000 = vadd.xlane.f32.xlu0 %v999
    %v1001 = vpop.xlane.xlu0 %1000
    %v1002 = vrcp.pop %v998
    %v1003 = vrcp.pop %v1001
    %v1004 = vmul.f32 %v993, %v1002
    %v1005 = vmul.f32 %v995, %v1003
    %1006 = vrot.lane.b32.xlu0 %v519, 104
    %v1007 = vpop.permute.xlu0 %1006
    %v1010 = vsel %vm330, %v1004, 0
    %1012 = vmatpush.msra.mxu0 0.0
    %1013 = vmatpush.msra.mxu0 0.0
    %1014 = vmatpush.msra.mxu0 0.0
    %1015 = vmatpush.msra.mxu0 0.0
    %1016 = vmatpush.msra.mxu0 0.0
    %1017 = vmatpush.msra.mxu0 0.0
    %1018 = vmatpush.msra.mxu0 0.0
    %1019 = vmatpush.msra.mxu0 0.0
    %1020 = vmatpush.msra.mxu0 0.0
    %1021 = vmatpush.msra.mxu0 0.0
    %1022 = vmatpush.msra.mxu0 0.0
    %1023 = vmatpush.msra.mxu0 0.0
    %1024 = vmatpush.msra.mxu0 0.0
    %1025 = vmatpush.msra.mxu0 0.0
    %1026 = vmatpush.msra.mxu0 0.0
    %1027 = vmatpush.msra.mxu0 %v1007
    %1028 = vmatmul.f32.gmra.mxu0 %v1010
    %v1029 = vpop.f32.mrf.mxu0
    %v1030 = vadd.f32 0.0, %v1029
    %1031 = vdwg.mxu0
    %1032 = vrot.lane.b32.xlu0 %v522, 104
    %v1033 = vpop.permute.xlu0 %1032
    %v1036 = vsel %vm330, %v1005, 0
    %1038 = vmatpush.msra.mxu0 0.0
    %1039 = vmatpush.msra.mxu0 0.0
    %1040 = vmatpush.msra.mxu0 0.0
    %1041 = vmatpush.msra.mxu0 0.0
    %1042 = vmatpush.msra.mxu0 0.0
    %1043 = vmatpush.msra.mxu0 0.0
    %1044 = vmatpush.msra.mxu0 0.0
    %1045 = vmatpush.msra.mxu0 0.0
    %1046 = vmatpush.msra.mxu0 0.0
    %1047 = vmatpush.msra.mxu0 0.0
    %1048 = vmatpush.msra.mxu0 0.0
    %1049 = vmatpush.msra.mxu0 0.0
    %1050 = vmatpush.msra.mxu0 0.0
    %1051 = vmatpush.msra.mxu0 0.0
    %1052 = vmatpush.msra.mxu0 0.0
    %1053 = vmatpush.msra.mxu0 %v1033
    %1054 = vmatmul.f32.gmra.mxu0 %v1036
    %v1055 = vpop.f32.mrf.mxu0
    %v1056 = vadd.f32 0.0, %v1055
    %1057 = vdwg.mxu0
    %1060 = vrot.lane.b32.xlu0 %v761, 8
    %v1061 = vpop.permute.xlu0 %1060
    %1062 = vrot.lane.b32.xlu0 %v788, 8
    %v1063 = vpop.permute.xlu0 %1062
    %1068 = vrot.lane.b32.xlu0 %v896, 16
    %v1069 = vpop.permute.xlu0 %1068
    %1070 = vrot.lane.b32.xlu0 %v922, 16
    %v1071 = vpop.permute.xlu0 %1070
    %1076 = vrot.lane.b32.xlu0 %v1030, 24
    %v1077 = vpop.permute.xlu0 %1076
    %1078 = vrot.lane.b32.xlu0 %v1056, 24
    %v1079 = vpop.permute.xlu0 %1078
    %v1082 = vsel %vm330, %v629, %v1061
    %v1083 = vsel %vm330, %v652, %v1063
    %v1084 = vsel %vm396, %v1082, %v1069
    %v1085 = vsel %vm396, %v1083, %v1071
    %vm1086 = vcmask 195584
    %v1087 = vsel %vm1086, %v1084, %v1077
    %v1088 = vsel %vm1086, %v1085, %v1079
    %v1089 = vld [vmem:[#allocation15] sm:$0xff]
    %v1090 = vld [vmem:[#allocation15 + $0x8] sm:$0xff]
    %v1091 = vld [vmem:[#allocation15 + $0x10] sm:$0xff]
    %v1092 = vld [vmem:[#allocation15 + $0x18] sm:$0xff]
    %v1093 = vld [vmem:[%s33] sm:$0x1]
    %v1095 = vperm.slane %v1093, 0
    %v1098 = vsel %vm432, %v1087, 0
    %v1101 = vsel %vm432, %v1088, 0
    %1103 = vmatpush.msra.mxu0 0.0
    %1104 = vmatpush.msra.mxu0 0.0
    %1105 = vmatpush.msra.mxu0 0.0
    %1106 = vmatpush.msra.mxu0 0.0
    %1107 = vmatpush.msra.mxu0 0.0
    %1108 = vmatpush.msra.mxu0 0.0
    %1109 = vmatpush.msra.mxu0 0.0
    %1110 = vmatpush.msra.mxu0 0.0
    %1111 = vmatpush.msra.mxu0 0.0
    %1112 = vmatpush.msra.mxu0 0.0
    %1113 = vmatpush.msra.mxu0 0.0
    %1114 = vmatpush.msra.mxu0 0.0
    %1115 = vmatpush.msra.mxu0 %v1092
    %1116 = vmatpush.msra.mxu0 %v1091
    %1117 = vmatpush.msra.mxu0 %v1090
    %1118 = vmatpush.msra.mxu0 %v1089
    %1119 = vmatmul.f32.gmra.mxu0 %v1098
    %v1120 = vpop.f32.mrf.mxu0
    %v1121 = vadd.f32 %v1095, %v1120
    %1122 = vmatmul.f32.gmra.mxu0 %v1101
    %v1123 = vpop.f32.mrf.mxu0
    %v1124 = vadd.f32 %v1095, %v1123
    %1125 = vdwg.mxu0
    %v1126 = vadd.f32 %v387, %v1121
    %v1127 = vadd.f32 %v388, %v1124
    %v1128 = vld [vmem:[%s47] sm:$0x1]
    %v1129 = vld [vmem:[%s49] sm:$0x1]
    %v1130 = vsel %vm432, %v1126, 0.0
    %1131 = vadd.xlane.f32.xlu0 %v1130
    %v1132 = vpop.xlane.xlu0 %1131
    %v1133 = vsel %vm432, %v1127, 0.0
    %1134 = vadd.xlane.f32.xlu0 %v1133
    %v1135 = vpop.xlane.xlu0 %1134
    %v1136 = vrcp.pop 32.0
    %v1137 = vmul.f32 32.0, %v1136
    %v1138 = vsub.f32 1.0, %v1137
    %v1139 = vmul.f32 %v1136, %v1138
    %v1140 = vadd.f32 %v1136, %v1139
    %vm1141 = vweird.f32 %v1136
    %v1142 = vsel %vm1141, %v1136, %v1140
    %v1143 = vmul.f32 %v1132, %v1142
    %v1144 = vmul.f32 %v1135, %v1142
    %v1145 = vsub.f32 %v1126, %v1143
    %v1146 = vsub.f32 %v1127, %v1144
    %v1147 = vmul.f32 %v1145, %v1145
    %v1148 = vmul.f32 %v1146, %v1146
    %v1149 = vsel %vm432, %v1147, 0.0
    %1150 = vadd.xlane.f32.xlu0 %v1149
    %v1151 = vpop.xlane.xlu0 %1150
    %v1152 = vsel %vm432, %v1148, 0.0
    %1153 = vadd.xlane.f32.xlu0 %v1152
    %v1154 = vpop.xlane.xlu0 %1153
    %v1155 = vmul.f32 %v1151, %v1142
    %v1156 = vmul.f32 %v1154, %v1142
    %v1157 = vadd.f32 %v1155, 1e-05
    %v1158 = vadd.f32 %v1156, 1e-05
    %v1159 = vrsqrt.pop %v1157
    %v1160 = vmul.f32 %v1159, %v1157
    %v1161 = vmul.f32 %v1160, %v1159
    %v1162 = vmul.f32 0.5, %v1161
    %v1163 = vsub.f32 1.5, %v1162
    %v1164 = vmul.f32 %v1159, %v1163
    %vm1165 = vweird.f32 %v1157
    %vm1166 = vweird.f32 %v1159
    %vm1167 = vmor %vm1165, %vm1166
    %v1168 = vsel %vm1167, %v1159, %v1164
    %v1169 = vrsqrt.pop %v1158
    %v1170 = vmul.f32 %v1169, %v1158
    %v1171 = vmul.f32 %v1170, %v1169
    %v1172 = vmul.f32 0.5, %v1171
    %v1173 = vsub.f32 1.5, %v1172
    %v1174 = vmul.f32 %v1169, %v1173
    %vm1175 = vweird.f32 %v1158
    %vm1176 = vweird.f32 %v1169
    %vm1177 = vmor %vm1175, %vm1176
    %v1178 = vsel %vm1177, %v1169, %v1174
    %v1179 = vmul.f32 %v1145, %v1168
    %v1180 = vmul.f32 %v1146, %v1178
    %v1182 = vperm.slane %v1128, 0
    %v1184 = vmul.f32 %v1179, %v1182
    %v1185 = vmul.f32 %v1180, %v1182
    %v1187 = vperm.slane %v1129, 0
    %v1189 = vadd.f32 %v1184, %v1187
    %v1190 = vadd.f32 %v1185, %v1187
    %v1191 = vld [vmem:[#allocation17] sm:$0xff]
    %v1192 = vld [vmem:[#allocation17 + $0x8] sm:$0xff]
    %v1193 = vld [vmem:[#allocation17 + $0x10] sm:$0xff]
    %v1194 = vld [vmem:[#allocation17 + $0x18] sm:$0xff]
    %v1195 = vld [vmem:[%s37] sm:$0x1]
    %v1197 = vperm.slane %v1195, 0
    %v1200 = vsel %vm432, %v418, 0
    %1202 = vmatpush.msra.mxu0 0.0
    %1203 = vmatpush.msra.mxu0 0.0
    %1204 = vmatpush.msra.mxu0 0.0
    %1205 = vmatpush.msra.mxu0 0.0
    %1206 = vmatpush.msra.mxu0 0.0
    %1207 = vmatpush.msra.mxu0 0.0
    %1208 = vmatpush.msra.mxu0 0.0
    %1209 = vmatpush.msra.mxu0 0.0
    %1210 = vmatpush.msra.mxu0 0.0
    %1211 = vmatpush.msra.mxu0 0.0
    %1212 = vmatpush.msra.mxu0 0.0
    %1213 = vmatpush.msra.mxu0 0.0
    %1214 = vmatpush.msra.mxu0 %v1194
    %1215 = vmatpush.msra.mxu0 %v1193
    %1216 = vmatpush.msra.mxu0 %v1192
    %1217 = vmatpush.msra.mxu0 %v1191
    %1218 = vmatmul.f32.gmra.mxu0 %v1200
    %v1219 = vpop.f32.mrf.mxu0
    %v1220 = vadd.f32 %v1197, %v1219
    %1221 = vdwg.mxu0
    %v1223 = vrot.slane %v1220, 1
    %v1224 = vperm.slane %v1220, 0
    %v1225 = vperm.slane %v1223, 0
    %v1228 = vadd.f32 %v1189, %v1224
    %v1229 = vadd.f32 %v1190, %v1225
    %v1230 = vld [vmem:[%s51] sm:$0x1]
    %v1231 = vld [vmem:[%s53] sm:$0x1]
    %v1232 = vsel %vm432, %v1228, 0.0
    %1233 = vadd.xlane.f32.xlu0 %v1232
    %v1234 = vpop.xlane.xlu0 %1233
    %v1235 = vsel %vm432, %v1229, 0.0
    %1236 = vadd.xlane.f32.xlu0 %v1235
    %v1237 = vpop.xlane.xlu0 %1236
    %v1238 = vmul.f32 %v1234, %v1142
    %v1239 = vmul.f32 %v1237, %v1142
    %v1240 = vsub.f32 %v1228, %v1238
    %v1241 = vsub.f32 %v1229, %v1239
    %v1242 = vmul.f32 %v1240, %v1240
    %v1243 = vmul.f32 %v1241, %v1241
    %v1244 = vsel %vm432, %v1242, 0.0
    %1245 = vadd.xlane.f32.xlu0 %v1244
    %v1246 = vpop.xlane.xlu0 %1245
    %v1247 = vsel %vm432, %v1243, 0.0
    %1248 = vadd.xlane.f32.xlu0 %v1247
    %v1249 = vpop.xlane.xlu0 %1248
    %v1250 = vmul.f32 %v1246, %v1142
    %v1251 = vmul.f32 %v1249, %v1142
    %v1252 = vadd.f32 %v1250, 1e-05
    %v1253 = vadd.f32 %v1251, 1e-05
    %v1254 = vrsqrt.pop %v1252
    %v1255 = vmul.f32 %v1254, %v1252
    %v1256 = vmul.f32 %v1255, %v1254
    %v1257 = vmul.f32 0.5, %v1256
    %v1258 = vsub.f32 1.5, %v1257
    %v1259 = vmul.f32 %v1254, %v1258
    %vm1260 = vweird.f32 %v1252
    %vm1261 = vweird.f32 %v1254
    %vm1262 = vmor %vm1260, %vm1261
    %v1263 = vsel %vm1262, %v1254, %v1259
    %v1264 = vrsqrt.pop %v1253
    %v1265 = vmul.f32 %v1264, %v1253
    %v1266 = vmul.f32 %v1265, %v1264
    %v1267 = vmul.f32 0.5, %v1266
    %v1268 = vsub.f32 1.5, %v1267
    %v1269 = vmul.f32 %v1264, %v1268
    %vm1270 = vweird.f32 %v1253
    %vm1271 = vweird.f32 %v1264
    %vm1272 = vmor %vm1270, %vm1271
    %v1273 = vsel %vm1272, %v1264, %v1269
    %v1274 = vmul.f32 %v1240, %v1263
    %v1275 = vmul.f32 %v1241, %v1273
    %v1277 = vperm.slane %v1230, 0
    %v1279 = vmul.f32 %v1274, %v1277
    %v1280 = vmul.f32 %v1275, %v1277
    %v1282 = vperm.slane %v1231, 0
    %v1284 = vadd.f32 %v1279, %v1282
    %v1285 = vadd.f32 %v1280, %v1282
    %v1286 = vld [vmem:[#allocation18] sm:$0xff]
    %v1287 = vld [vmem:[#allocation18 + $0x8] sm:$0xff]
    %v1288 = vld [vmem:[#allocation18 + $0x10] sm:$0xff]
    %v1289 = vld [vmem:[#allocation18 + $0x18] sm:$0xff]
    %v1290 = vld [vmem:[%s41] sm:$0x1]
    %v1292 = vperm.slane %v1290, 0
    %v1295 = vsel %vm432, %v1284, 0
    %v1298 = vsel %vm432, %v1285, 0
    %1300 = vmatpush.msra.mxu0 0.0
    %1301 = vmatpush.msra.mxu0 0.0
    %1302 = vmatpush.msra.mxu0 0.0
    %1303 = vmatpush.msra.mxu0 0.0
    %1304 = vmatpush.msra.mxu0 0.0
    %1305 = vmatpush.msra.mxu0 0.0
    %1306 = vmatpush.msra.mxu0 0.0
    %1307 = vmatpush.msra.mxu0 0.0
    %1308 = vmatpush.msra.mxu0 0.0
    %1309 = vmatpush.msra.mxu0 0.0
    %1310 = vmatpush.msra.mxu0 0.0
    %1311 = vmatpush.msra.mxu0 0.0
    %1312 = vmatpush.msra.mxu0 %v1289
    %1313 = vmatpush.msra.mxu0 %v1288
    %1314 = vmatpush.msra.mxu0 %v1287
    %1315 = vmatpush.msra.mxu0 %v1286
    %1316 = vmatmul.f32.gmra.mxu0 %v1295
    %v1317 = vpop.f32.mrf.mxu0
    %v1318 = vadd.f32 %v1292, %v1317
    %1319 = vmatmul.f32.gmra.mxu0 %v1298
    %v1320 = vpop.f32.mrf.mxu0
    %v1321 = vadd.f32 %v1292, %v1320
    %1322 = vdwg.mxu0
    %v1323 = vmax.f32 %v1318, 0.0
    %v1324 = vmax.f32 %v1321, 0.0
    %v1325 = vld [vmem:[%s43] sm:$0xff]
    %v1326 = vld [vmem:[%s43 + $0x8] sm:$0xff]
    %v1327 = vld [vmem:[%s43 + $0x10] sm:$0xff]
    %v1328 = vld [vmem:[%s43 + $0x18] sm:$0xff]
    %v1329 = vld [vmem:[%s43 + $0x20] sm:$0xff]
    %v1330 = vld [vmem:[%s43 + $0x28] sm:$0xff]
    %v1331 = vld [vmem:[%s43 + $0x30] sm:$0xff]
    %v1332 = vld [vmem:[%s43 + $0x38] sm:$0xff]
    %v1333 = vld [vmem:[%s45] sm:$0x1]
    %v1335 = vperm.slane %v1333, 0
    %vm1337 = vcmask 523264
    %v1339 = vsel %vm1337, %v1323, 0
    %v1342 = vsel %vm1337, %v1324, 0
    %1344 = vmatpush.msra.mxu0 0.0
    %1345 = vmatpush.msra.mxu0 0.0
    %1346 = vmatpush.msra.mxu0 0.0
    %1347 = vmatpush.msra.mxu0 0.0
    %1348 = vmatpush.msra.mxu0 0.0
    %1349 = vmatpush.msra.mxu0 0.0
    %1350 = vmatpush.msra.mxu0 0.0
    %1351 = vmatpush.msra.mxu0 0.0
    %1352 = vmatpush.msra.mxu0 %v1332
    %1353 = vmatpush.msra.mxu0 %v1331
    %1354 = vmatpush.msra.mxu0 %v1330
    %1355 = vmatpush.msra.mxu0 %v1329
    %1356 = vmatpush.msra.mxu0 %v1328
    %1357 = vmatpush.msra.mxu0 %v1327
    %1358 = vmatpush.msra.mxu0 %v1326
    %1359 = vmatpush.msra.mxu0 %v1325
    %1360 = vmatmul.f32.gmra.mxu0 %v1339
    %v1361 = vpop.f32.mrf.mxu0
    %v1362 = vadd.f32 %v1335, %v1361
    %1363 = vmatmul.f32.gmra.mxu0 %v1342
    %v1364 = vpop.f32.mrf.mxu0
    %v1365 = vadd.f32 %v1335, %v1364
    %1366 = vdwg.mxu0
    %v1367 = vadd.f32 %v1284, %v1362
    %v1368 = vadd.f32 %v1285, %v1365
    %v1369 = vld [vmem:[#allocation20] sm:$0x1]
    %v1370 = vld [vmem:[%s57] sm:$0x1]
    %v1371 = vsel %vm432, %v1367, 0.0
    %1372 = vadd.xlane.f32.xlu0 %v1371
    %v1373 = vpop.xlane.xlu0 %1372
    %v1374 = vsel %vm432, %v1368, 0.0
    %1375 = vadd.xlane.f32.xlu0 %v1374
    %v1376 = vpop.xlane.xlu0 %1375
    %v1377 = vmul.f32 %v1373, %v1142
    %v1378 = vmul.f32 %v1376, %v1142
    %v1379 = vsub.f32 %v1367, %v1377
    %v1380 = vsub.f32 %v1368, %v1378
    %v1381 = vmul.f32 %v1379, %v1379
    %v1382 = vmul.f32 %v1380, %v1380
    %v1383 = vsel %vm432, %v1381, 0.0
    %1384 = vadd.xlane.f32.xlu0 %v1383
    %v1385 = vpop.xlane.xlu0 %1384
    %v1386 = vsel %vm432, %v1382, 0.0
    %1387 = vadd.xlane.f32.xlu0 %v1386
    %v1388 = vpop.xlane.xlu0 %1387
    %v1389 = vmul.f32 %v1385, %v1142
    %v1390 = vmul.f32 %v1388, %v1142
    %v1391 = vadd.f32 %v1389, 1e-05
    %v1392 = vadd.f32 %v1390, 1e-05
    %v1393 = vrsqrt.pop %v1391
    %v1394 = vmul.f32 %v1393, %v1391
    %v1395 = vmul.f32 %v1394, %v1393
    %v1396 = vmul.f32 0.5, %v1395
    %v1397 = vsub.f32 1.5, %v1396
    %v1398 = vmul.f32 %v1393, %v1397
    %vm1399 = vweird.f32 %v1391
    %vm1400 = vweird.f32 %v1393
    %vm1401 = vmor %vm1399, %vm1400
    %v1402 = vsel %vm1401, %v1393, %v1398
    %v1403 = vrsqrt.pop %v1392
    %v1404 = vmul.f32 %v1403, %v1392
    %v1405 = vmul.f32 %v1404, %v1403
    %v1406 = vmul.f32 0.5, %v1405
    %v1407 = vsub.f32 1.5, %v1406
    %v1408 = vmul.f32 %v1403, %v1407
    %vm1409 = vweird.f32 %v1392
    %vm1410 = vweird.f32 %v1403
    %vm1411 = vmor %vm1409, %vm1410
    %v1412 = vsel %vm1411, %v1403, %v1408
    %v1413 = vmul.f32 %v1379, %v1402
    %v1414 = vmul.f32 %v1380, %v1412
    %v1416 = vperm.slane %v1369, 0
    %v1418 = vmul.f32 %v1413, %v1416
    %v1419 = vmul.f32 %v1414, %v1416
    %v1421 = vperm.slane %v1370, 0
    %v1423 = vadd.f32 %v1418, %v1421
    %v1424 = vadd.f32 %v1419, %v1421
    %s1425 = scalar_lea.vmem %s19, 32
    %v1426 = vld [vmem:[%s1425] sm:$0xff]
    %v1427 = vld [vmem:[%s1425 + $0x8] sm:$0xff]
    %v1428 = vld [vmem:[%s1425 + $0x10] sm:$0xff]
    %v1429 = vld [vmem:[%s1425 + $0x18] sm:$0xff]
    %s1430 = scalar_lea.vmem %s21, 1
    %v1431 = vld [vmem:[%s1430] sm:$0x1]
    %v1433 = vperm.slane %v1431, 0
    %v1436 = vsel %vm432, %v1423, 0
    %v1439 = vsel %vm432, %v1424, 0
    %1441 = vmatpush.msra.mxu0 0.0
    %1442 = vmatpush.msra.mxu0 0.0
    %1443 = vmatpush.msra.mxu0 0.0
    %1444 = vmatpush.msra.mxu0 0.0
    %1445 = vmatpush.msra.mxu0 0.0
    %1446 = vmatpush.msra.mxu0 0.0
    %1447 = vmatpush.msra.mxu0 0.0
    %1448 = vmatpush.msra.mxu0 0.0
    %1449 = vmatpush.msra.mxu0 0.0
    %1450 = vmatpush.msra.mxu0 0.0
    %1451 = vmatpush.msra.mxu0 0.0
    %1452 = vmatpush.msra.mxu0 0.0
    %1453 = vmatpush.msra.mxu0 %v1429
    %1454 = vmatpush.msra.mxu0 %v1428
    %1455 = vmatpush.msra.mxu0 %v1427
    %1456 = vmatpush.msra.mxu0 %v1426
    %1457 = vmatmul.f32.gmra.mxu0 %v1436
    %v1458 = vpop.f32.mrf.mxu0
    %v1459 = vadd.f32 %v1433, %v1458
    %1460 = vmatmul.f32.gmra.mxu0 %v1439
    %v1461 = vpop.f32.mrf.mxu0
    %v1462 = vadd.f32 %v1433, %v1461
    %1463 = vdwg.mxu0
    %s1464 = scalar_lea.vmem %s23, 32
    %v1465 = vld [vmem:[%s1464] sm:$0xff]
    %v1466 = vld [vmem:[%s1464 + $0x8] sm:$0xff]
    %v1467 = vld [vmem:[%s1464 + $0x10] sm:$0xff]
    %v1468 = vld [vmem:[%s1464 + $0x18] sm:$0xff]
    %s1469 = scalar_lea.vmem %s25, 1
    %v1470 = vld [vmem:[%s1469] sm:$0x1]
    %v1472 = vperm.slane %v1470, 0
    %1474 = vmatpush.msra.mxu0 0.0
    %1475 = vmatpush.msra.mxu0 0.0
    %1476 = vmatpush.msra.mxu0 0.0
    %1477 = vmatpush.msra.mxu0 0.0
    %1478 = vmatpush.msra.mxu0 0.0
    %1479 = vmatpush.msra.mxu0 0.0
    %1480 = vmatpush.msra.mxu0 0.0
    %1481 = vmatpush.msra.mxu0 0.0
    %1482 = vmatpush.msra.mxu0 0.0
    %1483 = vmatpush.msra.mxu0 0.0
    %1484 = vmatpush.msra.mxu0 0.0
    %1485 = vmatpush.msra.mxu0 0.0
    %1486 = vmatpush.msra.mxu0 %v1468
    %1487 = vmatpush.msra.mxu0 %v1467
    %1488 = vmatpush.msra.mxu0 %v1466
    %1489 = vmatpush.msra.mxu0 %v1465
    %1490 = vmatmul.f32.gmra.mxu0 %v1436
    %v1491 = vpop.f32.mrf.mxu0
    %v1492 = vadd.f32 %v1472, %v1491
    %1493 = vmatmul.f32.gmra.mxu0 %v1439
    %v1494 = vpop.f32.mrf.mxu0
    %v1495 = vadd.f32 %v1472, %v1494
    %1496 = vdwg.mxu0
    %s1497 = scalar_lea.vmem %s27, 32
    %v1498 = vld [vmem:[%s1497] sm:$0xff]
    %v1499 = vld [vmem:[%s1497 + $0x8] sm:$0xff]
    %v1500 = vld [vmem:[%s1497 + $0x10] sm:$0xff]
    %v1501 = vld [vmem:[%s1497 + $0x18] sm:$0xff]
    %s1502 = scalar_lea.vmem %s29, 1
    %v1503 = vld [vmem:[%s1502] sm:$0x1]
    %v1505 = vperm.slane %v1503, 0
    %1507 = vmatpush.msra.mxu0 0.0
    %1508 = vmatpush.msra.mxu0 0.0
    %1509 = vmatpush.msra.mxu0 0.0
    %1510 = vmatpush.msra.mxu0 0.0
    %1511 = vmatpush.msra.mxu0 0.0
    %1512 = vmatpush.msra.mxu0 0.0
    %1513 = vmatpush.msra.mxu0 0.0
    %1514 = vmatpush.msra.mxu0 0.0
    %1515 = vmatpush.msra.mxu0 0.0
    %1516 = vmatpush.msra.mxu0 0.0
    %1517 = vmatpush.msra.mxu0 0.0
    %1518 = vmatpush.msra.mxu0 0.0
    %1519 = vmatpush.msra.mxu0 %v1501
    %1520 = vmatpush.msra.mxu0 %v1500
    %1521 = vmatpush.msra.mxu0 %v1499
    %1522 = vmatpush.msra.mxu0 %v1498
    %1523 = vmatmul.f32.gmra.mxu0 %v1436
    %v1524 = vpop.f32.mrf.mxu0
    %v1525 = vadd.f32 %v1505, %v1524
    %1526 = vmatmul.f32.gmra.mxu0 %v1439
    %v1527 = vpop.f32.mrf.mxu0
    %v1528 = vadd.f32 %v1505, %v1527
    %1529 = vdwg.mxu0
    %v1531 = vsel %vm330, %v1459, 0
    %v1534 = vsel %vm330, %v1492, 0
    %1536 = vmatpush.xpose.msra.mxu0 0.0
    %1537 = vmatpush.xpose.msra.mxu0 0.0
    %1538 = vmatpush.xpose.msra.mxu0 0.0
    %1539 = vmatpush.xpose.msra.mxu0 0.0
    %1540 = vmatpush.xpose.msra.mxu0 0.0
    %1541 = vmatpush.xpose.msra.mxu0 0.0
    %1542 = vmatpush.xpose.msra.mxu0 0.0
    %1543 = vmatpush.xpose.msra.mxu0 0.0
    %1544 = vmatpush.xpose.msra.mxu0 0.0
    %1545 = vmatpush.xpose.msra.mxu0 0.0
    %1546 = vmatpush.xpose.msra.mxu0 0.0
    %1547 = vmatpush.xpose.msra.mxu0 0.0
    %1548 = vmatpush.xpose.msra.mxu0 0.0
    %1549 = vmatpush.xpose.msra.mxu0 0.0
    %1550 = vmatpush.xpose.msra.mxu0 0.0
    %1551 = vmatpush.xpose.msra.mxu0 %v1534
    %1552 = vmatmul.f32.gmra.mxu0 %v1531
    %v1553 = vpop.f32.mrf.mxu0
    %v1554 = vadd.f32 0.0, %v1553
    %1555 = vdwg.mxu0
    %v1557 = vsel %vm330, %v1462, 0
    %v1560 = vsel %vm330, %v1495, 0
    %1562 = vmatpush.xpose.msra.mxu0 0.0
    %1563 = vmatpush.xpose.msra.mxu0 0.0
    %1564 = vmatpush.xpose.msra.mxu0 0.0
    %1565 = vmatpush.xpose.msra.mxu0 0.0
    %1566 = vmatpush.xpose.msra.mxu0 0.0
    %1567 = vmatpush.xpose.msra.mxu0 0.0
    %1568 = vmatpush.xpose.msra.mxu0 0.0
    %1569 = vmatpush.xpose.msra.mxu0 0.0
    %1570 = vmatpush.xpose.msra.mxu0 0.0
    %1571 = vmatpush.xpose.msra.mxu0 0.0
    %1572 = vmatpush.xpose.msra.mxu0 0.0
    %1573 = vmatpush.xpose.msra.mxu0 0.0
    %1574 = vmatpush.xpose.msra.mxu0 0.0
    %1575 = vmatpush.xpose.msra.mxu0 0.0
    %1576 = vmatpush.xpose.msra.mxu0 0.0
    %1577 = vmatpush.xpose.msra.mxu0 %v1560
    %1578 = vmatmul.f32.gmra.mxu0 %v1557
    %v1579 = vpop.f32.mrf.mxu0
    %v1580 = vadd.f32 0.0, %v1579
    %1581 = vdwg.mxu0
    %v1582 = vmul.f32 %v1554, 0.35355338
    %v1583 = vmul.f32 %v1580, 0.35355338
    %v1584 = vadd.f32 %v1582, %v580
    %v1585 = vadd.f32 %v1583, %v581
    %v1586 = vsel %vm330, %v1584, -inf
    %1587 = vmax.xlane.f32.xlu0 %v1586
    %v1588 = vpop.xlane.xlu0 %1587
    %v1589 = vsel %vm330, %v1585, -inf
    %1590 = vmax.xlane.f32.xlu0 %v1589
    %v1591 = vpop.xlane.xlu0 %1590
    %v1592 = vsub.f32 %v1584, %v1588
    %v1593 = vsub.f32 %v1585, %v1591
    %v1594 = vmul.f32 %v1592, 1.442695
    %v1595 = vpow.pop %v1594
    %v1596 = vmul.f32 %v1593, 1.442695
    %v1597 = vpow.pop %v1596
    %v1598 = vsel %vm330, %v1595, 0.0
    %1599 = vadd.xlane.f32.xlu0 %v1598
    %v1600 = vpop.xlane.xlu0 %1599
    %v1601 = vsel %vm330, %v1597, 0.0
    %1602 = vadd.xlane.f32.xlu0 %v1601
    %v1603 = vpop.xlane.xlu0 %1602
    %v1604 = vrcp.pop %v1600
    %v1605 = vrcp.pop %v1603
    %v1606 = vmul.f32 %v1595, %v1604
    %v1607 = vmul.f32 %v1597, %v1605
    %v1609 = vsel %vm330, %v1606, 0
    %1611 = vmatpush.msra.mxu0 0.0
    %1612 = vmatpush.msra.mxu0 0.0
    %1613 = vmatpush.msra.mxu0 0.0
    %1614 = vmatpush.msra.mxu0 0.0
    %1615 = vmatpush.msra.mxu0 0.0
    %1616 = vmatpush.msra.mxu0 0.0
    %1617 = vmatpush.msra.mxu0 0.0
    %1618 = vmatpush.msra.mxu0 0.0
    %1619 = vmatpush.msra.mxu0 0.0
    %1620 = vmatpush.msra.mxu0 0.0
    %1621 = vmatpush.msra.mxu0 0.0
    %1622 = vmatpush.msra.mxu0 0.0
    %1623 = vmatpush.msra.mxu0 0.0
    %1624 = vmatpush.msra.mxu0 0.0
    %1625 = vmatpush.msra.mxu0 0.0
    %1626 = vmatpush.msra.mxu0 %v1525
    %1627 = vmatmul.f32.gmra.mxu0 %v1609
    %v1628 = vpop.f32.mrf.mxu0
    %v1629 = vadd.f32 0.0, %v1628
    %1630 = vdwg.mxu0
    %v1632 = vsel %vm330, %v1607, 0
    %1634 = vmatpush.msra.mxu0 0.0
    %1635 = vmatpush.msra.mxu0 0.0
    %1636 = vmatpush.msra.mxu0 0.0
    %1637 = vmatpush.msra.mxu0 0.0
    %1638 = vmatpush.msra.mxu0 0.0
    %1639 = vmatpush.msra.mxu0 0.0
    %1640 = vmatpush.msra.mxu0 0.0
    %1641 = vmatpush.msra.mxu0 0.0
    %1642 = vmatpush.msra.mxu0 0.0
    %1643 = vmatpush.msra.mxu0 0.0
    %1644 = vmatpush.msra.mxu0 0.0
    %1645 = vmatpush.msra.mxu0 0.0
    %1646 = vmatpush.msra.mxu0 0.0
    %1647 = vmatpush.msra.mxu0 0.0
    %1648 = vmatpush.msra.mxu0 0.0
    %1649 = vmatpush.msra.mxu0 %v1528
    %1650 = vmatmul.f32.gmra.mxu0 %v1632
    %v1651 = vpop.f32.mrf.mxu0
    %v1652 = vadd.f32 0.0, %v1651
    %1653 = vdwg.mxu0
    %1654 = vrot.lane.b32.xlu0 %v1459, 120
    %v1655 = vpop.permute.xlu0 %1654
    %1656 = vrot.lane.b32.xlu0 %v1492, 120
    %v1657 = vpop.permute.xlu0 %1656
    %v1658 = vsel %vm330, %v1655, 0
    %v1660 = vsel %vm330, %v1657, 0
    %1662 = vmatpush.xpose.msra.mxu0 0.0
    %1663 = vmatpush.xpose.msra.mxu0 0.0
    %1664 = vmatpush.xpose.msra.mxu0 0.0
    %1665 = vmatpush.xpose.msra.mxu0 0.0
    %1666 = vmatpush.xpose.msra.mxu0 0.0
    %1667 = vmatpush.xpose.msra.mxu0 0.0
    %1668 = vmatpush.xpose.msra.mxu0 0.0
    %1669 = vmatpush.xpose.msra.mxu0 0.0
    %1670 = vmatpush.xpose.msra.mxu0 0.0
    %1671 = vmatpush.xpose.msra.mxu0 0.0
    %1672 = vmatpush.xpose.msra.mxu0 0.0
    %1673 = vmatpush.xpose.msra.mxu0 0.0
    %1674 = vmatpush.xpose.msra.mxu0 0.0
    %1675 = vmatpush.xpose.msra.mxu0 0.0
    %1676 = vmatpush.xpose.msra.mxu0 0.0
    %1677 = vmatpush.xpose.msra.mxu0 %v1660
    %1678 = vmatmul.f32.gmra.mxu0 %v1658
    %v1679 = vpop.f32.mrf.mxu0
    %v1680 = vadd.f32 0.0, %v1679
    %1681 = vdwg.mxu0
    %1682 = vrot.lane.b32.xlu0 %v1462, 120
    %v1683 = vpop.permute.xlu0 %1682
    %1684 = vrot.lane.b32.xlu0 %v1495, 120
    %v1685 = vpop.permute.xlu0 %1684
    %v1686 = vsel %vm330, %v1683, 0
    %v1688 = vsel %vm330, %v1685, 0
    %1690 = vmatpush.xpose.msra.mxu0 0.0
    %1691 = vmatpush.xpose.msra.mxu0 0.0
    %1692 = vmatpush.xpose.msra.mxu0 0.0
    %1693 = vmatpush.xpose.msra.mxu0 0.0
    %1694 = vmatpush.xpose.msra.mxu0 0.0
    %1695 = vmatpush.xpose.msra.mxu0 0.0
    %1696 = vmatpush.xpose.msra.mxu0 0.0
    %1697 = vmatpush.xpose.msra.mxu0 0.0
    %1698 = vmatpush.xpose.msra.mxu0 0.0
    %1699 = vmatpush.xpose.msra.mxu0 0.0
    %1700 = vmatpush.xpose.msra.mxu0 0.0
    %1701 = vmatpush.xpose.msra.mxu0 0.0
    %1702 = vmatpush.xpose.msra.mxu0 0.0
    %1703 = vmatpush.xpose.msra.mxu0 0.0
    %1704 = vmatpush.xpose.msra.mxu0 0.0
    %1705 = vmatpush.xpose.msra.mxu0 %v1688
    %1706 = vmatmul.f32.gmra.mxu0 %v1686
    %v1707 = vpop.f32.mrf.mxu0
    %v1708 = vadd.f32 0.0, %v1707
    %1709 = vdwg.mxu0
    %v1710 = vmul.f32 %v1680, 0.35355338
    %v1711 = vmul.f32 %v1708, 0.35355338
    %v1712 = vadd.f32 %v1710, %v580
    %v1713 = vadd.f32 %v1711, %v581
    %v1714 = vsel %vm330, %v1712, -inf
    %1715 = vmax.xlane.f32.xlu0 %v1714
    %v1716 = vpop.xlane.xlu0 %1715
    %v1717 = vsel %vm330, %v1713, -inf
    %1718 = vmax.xlane.f32.xlu0 %v1717
    %v1719 = vpop.xlane.xlu0 %1718
    %v1720 = vsub.f32 %v1712, %v1716
    %v1721 = vsub.f32 %v1713, %v1719
    %v1722 = vmul.f32 %v1720, 1.442695
    %v1723 = vpow.pop %v1722
    %v1724 = vmul.f32 %v1721, 1.442695
    %v1725 = vpow.pop %v1724
    %v1726 = vsel %vm330, %v1723, 0.0
    %1727 = vadd.xlane.f32.xlu0 %v1726
    %v1728 = vpop.xlane.xlu0 %1727
    %v1729 = vsel %vm330, %v1725, 0.0
    %1730 = vadd.xlane.f32.xlu0 %v1729
    %v1731 = vpop.xlane.xlu0 %1730
    %v1732 = vrcp.pop %v1728
    %v1733 = vrcp.pop %v1731
    %v1734 = vmul.f32 %v1723, %v1732
    %v1735 = vmul.f32 %v1725, %v1733
    %1737 = vrot.lane.b32.xlu0 %v1525, 120
    %v1738 = vpop.permute.xlu0 %1737
    %v1741 = vsel %vm330, %v1734, 0
    %1743 = vmatpush.msra.mxu0 0.0
    %1744 = vmatpush.msra.mxu0 0.0
    %1745 = vmatpush.msra.mxu0 0.0
    %1746 = vmatpush.msra.mxu0 0.0
    %1747 = vmatpush.msra.mxu0 0.0
    %1748 = vmatpush.msra.mxu0 0.0
    %1749 = vmatpush.msra.mxu0 0.0
    %1750 = vmatpush.msra.mxu0 0.0
    %1751 = vmatpush.msra.mxu0 0.0
    %1752 = vmatpush.msra.mxu0 0.0
    %1753 = vmatpush.msra.mxu0 0.0
    %1754 = vmatpush.msra.mxu0 0.0
    %1755 = vmatpush.msra.mxu0 0.0
    %1756 = vmatpush.msra.mxu0 0.0
    %1757 = vmatpush.msra.mxu0 0.0
    %1758 = vmatpush.msra.mxu0 %v1738
    %1759 = vmatmul.f32.gmra.mxu0 %v1741
    %v1760 = vpop.f32.mrf.mxu0
    %v1761 = vadd.f32 0.0, %v1760
    %1762 = vdwg.mxu0
    %1764 = vrot.lane.b32.xlu0 %v1528, 120
    %v1765 = vpop.permute.xlu0 %1764
    %v1768 = vsel %vm330, %v1735, 0
    %1770 = vmatpush.msra.mxu0 0.0
    %1771 = vmatpush.msra.mxu0 0.0
    %1772 = vmatpush.msra.mxu0 0.0
    %1773 = vmatpush.msra.mxu0 0.0
    %1774 = vmatpush.msra.mxu0 0.0
    %1775 = vmatpush.msra.mxu0 0.0
    %1776 = vmatpush.msra.mxu0 0.0
    %1777 = vmatpush.msra.mxu0 0.0
    %1778 = vmatpush.msra.mxu0 0.0
    %1779 = vmatpush.msra.mxu0 0.0
    %1780 = vmatpush.msra.mxu0 0.0
    %1781 = vmatpush.msra.mxu0 0.0
    %1782 = vmatpush.msra.mxu0 0.0
    %1783 = vmatpush.msra.mxu0 0.0
    %1784 = vmatpush.msra.mxu0 0.0
    %1785 = vmatpush.msra.mxu0 %v1765
    %1786 = vmatmul.f32.gmra.mxu0 %v1768
    %v1787 = vpop.f32.mrf.mxu0
    %v1788 = vadd.f32 0.0, %v1787
    %1789 = vdwg.mxu0
    %1790 = vrot.lane.b32.xlu0 %v1459, 112
    %v1791 = vpop.permute.xlu0 %1790
    %1792 = vrot.lane.b32.xlu0 %v1492, 112
    %v1793 = vpop.permute.xlu0 %1792
    %v1794 = vsel %vm330, %v1791, 0
    %v1796 = vsel %vm330, %v1793, 0
    %1798 = vmatpush.xpose.msra.mxu0 0.0
    %1799 = vmatpush.xpose.msra.mxu0 0.0
    %1800 = vmatpush.xpose.msra.mxu0 0.0
    %1801 = vmatpush.xpose.msra.mxu0 0.0
    %1802 = vmatpush.xpose.msra.mxu0 0.0
    %1803 = vmatpush.xpose.msra.mxu0 0.0
    %1804 = vmatpush.xpose.msra.mxu0 0.0
    %1805 = vmatpush.xpose.msra.mxu0 0.0
    %1806 = vmatpush.xpose.msra.mxu0 0.0
    %1807 = vmatpush.xpose.msra.mxu0 0.0
    %1808 = vmatpush.xpose.msra.mxu0 0.0
    %1809 = vmatpush.xpose.msra.mxu0 0.0
    %1810 = vmatpush.xpose.msra.mxu0 0.0
    %1811 = vmatpush.xpose.msra.mxu0 0.0
    %1812 = vmatpush.xpose.msra.mxu0 0.0
    %1813 = vmatpush.xpose.msra.mxu0 %v1796
    %1814 = vmatmul.f32.gmra.mxu0 %v1794
    %v1815 = vpop.f32.mrf.mxu0
    %v1816 = vadd.f32 0.0, %v1815
    %1817 = vdwg.mxu0
    %1818 = vrot.lane.b32.xlu0 %v1462, 112
    %v1819 = vpop.permute.xlu0 %1818
    %1820 = vrot.lane.b32.xlu0 %v1495, 112
    %v1821 = vpop.permute.xlu0 %1820
    %v1822 = vsel %vm330, %v1819, 0
    %v1824 = vsel %vm330, %v1821, 0
    %1826 = vmatpush.xpose.msra.mxu0 0.0
    %1827 = vmatpush.xpose.msra.mxu0 0.0
    %1828 = vmatpush.xpose.msra.mxu0 0.0
    %1829 = vmatpush.xpose.msra.mxu0 0.0
    %1830 = vmatpush.xpose.msra.mxu0 0.0
    %1831 = vmatpush.xpose.msra.mxu0 0.0
    %1832 = vmatpush.xpose.msra.mxu0 0.0
    %1833 = vmatpush.xpose.msra.mxu0 0.0
    %1834 = vmatpush.xpose.msra.mxu0 0.0
    %1835 = vmatpush.xpose.msra.mxu0 0.0
    %1836 = vmatpush.xpose.msra.mxu0 0.0
    %1837 = vmatpush.xpose.msra.mxu0 0.0
    %1838 = vmatpush.xpose.msra.mxu0 0.0
    %1839 = vmatpush.xpose.msra.mxu0 0.0
    %1840 = vmatpush.xpose.msra.mxu0 0.0
    %1841 = vmatpush.xpose.msra.mxu0 %v1824
    %1842 = vmatmul.f32.gmra.mxu0 %v1822
    %v1843 = vpop.f32.mrf.mxu0
    %v1844 = vadd.f32 0.0, %v1843
    %1845 = vdwg.mxu0
    %v1846 = vmul.f32 %v1816, 0.35355338
    %v1847 = vmul.f32 %v1844, 0.35355338
    %v1848 = vadd.f32 %v1846, %v580
    %v1849 = vadd.f32 %v1847, %v581
    %v1850 = vsel %vm330, %v1848, -inf
    %1851 = vmax.xlane.f32.xlu0 %v1850
    %v1852 = vpop.xlane.xlu0 %1851
    %v1853 = vsel %vm330, %v1849, -inf
    %1854 = vmax.xlane.f32.xlu0 %v1853
    %v1855 = vpop.xlane.xlu0 %1854
    %v1856 = vsub.f32 %v1848, %v1852
    %v1857 = vsub.f32 %v1849, %v1855
    %v1858 = vmul.f32 %v1856, 1.442695
    %v1859 = vpow.pop %v1858
    %v1860 = vmul.f32 %v1857, 1.442695
    %v1861 = vpow.pop %v1860
    %v1862 = vsel %vm330, %v1859, 0.0
    %1863 = vadd.xlane.f32.xlu0 %v1862
    %v1864 = vpop.xlane.xlu0 %1863
    %v1865 = vsel %vm330, %v1861, 0.0
    %1866 = vadd.xlane.f32.xlu0 %v1865
    %v1867 = vpop.xlane.xlu0 %1866
    %v1868 = vrcp.pop %v1864
    %v1869 = vrcp.pop %v1867
    %v1870 = vmul.f32 %v1859, %v1868
    %v1871 = vmul.f32 %v1861, %v1869
    %1872 = vrot.lane.b32.xlu0 %v1525, 112
    %v1873 = vpop.permute.xlu0 %1872
    %v1876 = vsel %vm330, %v1870, 0
    %1878 = vmatpush.msra.mxu0 0.0
    %1879 = vmatpush.msra.mxu0 0.0
    %1880 = vmatpush.msra.mxu0 0.0
    %1881 = vmatpush.msra.mxu0 0.0
    %1882 = vmatpush.msra.mxu0 0.0
    %1883 = vmatpush.msra.mxu0 0.0
    %1884 = vmatpush.msra.mxu0 0.0
    %1885 = vmatpush.msra.mxu0 0.0
    %1886 = vmatpush.msra.mxu0 0.0
    %1887 = vmatpush.msra.mxu0 0.0
    %1888 = vmatpush.msra.mxu0 0.0
    %1889 = vmatpush.msra.mxu0 0.0
    %1890 = vmatpush.msra.mxu0 0.0
    %1891 = vmatpush.msra.mxu0 0.0
    %1892 = vmatpush.msra.mxu0 0.0
    %1893 = vmatpush.msra.mxu0 %v1873
    %1894 = vmatmul.f32.gmra.mxu0 %v1876
    %v1895 = vpop.f32.mrf.mxu0
    %v1896 = vadd.f32 0.0, %v1895
    %1897 = vdwg.mxu0
    %1898 = vrot.lane.b32.xlu0 %v1528, 112
    %v1899 = vpop.permute.xlu0 %1898
    %v1902 = vsel %vm330, %v1871, 0
    %1904 = vmatpush.msra.mxu0 0.0
    %1905 = vmatpush.msra.mxu0 0.0
    %1906 = vmatpush.msra.mxu0 0.0
    %1907 = vmatpush.msra.mxu0 0.0
    %1908 = vmatpush.msra.mxu0 0.0
    %1909 = vmatpush.msra.mxu0 0.0
    %1910 = vmatpush.msra.mxu0 0.0
    %1911 = vmatpush.msra.mxu0 0.0
    %1912 = vmatpush.msra.mxu0 0.0
    %1913 = vmatpush.msra.mxu0 0.0
    %1914 = vmatpush.msra.mxu0 0.0
    %1915 = vmatpush.msra.mxu0 0.0
    %1916 = vmatpush.msra.mxu0 0.0
    %1917 = vmatpush.msra.mxu0 0.0
    %1918 = vmatpush.msra.mxu0 0.0
    %1919 = vmatpush.msra.mxu0 %v1899
    %1920 = vmatmul.f32.gmra.mxu0 %v1902
    %v1921 = vpop.f32.mrf.mxu0
    %v1922 = vadd.f32 0.0, %v1921
    %1923 = vdwg.mxu0
    %1924 = vrot.lane.b32.xlu0 %v1459, 104
    %v1925 = vpop.permute.xlu0 %1924
    %1926 = vrot.lane.b32.xlu0 %v1492, 104
    %v1927 = vpop.permute.xlu0 %1926
    %v1928 = vsel %vm330, %v1925, 0
    %v1930 = vsel %vm330, %v1927, 0
    %1932 = vmatpush.xpose.msra.mxu0 0.0
    %1933 = vmatpush.xpose.msra.mxu0 0.0
    %1934 = vmatpush.xpose.msra.mxu0 0.0
    %1935 = vmatpush.xpose.msra.mxu0 0.0
    %1936 = vmatpush.xpose.msra.mxu0 0.0
    %1937 = vmatpush.xpose.msra.mxu0 0.0
    %1938 = vmatpush.xpose.msra.mxu0 0.0
    %1939 = vmatpush.xpose.msra.mxu0 0.0
    %1940 = vmatpush.xpose.msra.mxu0 0.0
    %1941 = vmatpush.xpose.msra.mxu0 0.0
    %1942 = vmatpush.xpose.msra.mxu0 0.0
    %1943 = vmatpush.xpose.msra.mxu0 0.0
    %1944 = vmatpush.xpose.msra.mxu0 0.0
    %1945 = vmatpush.xpose.msra.mxu0 0.0
    %1946 = vmatpush.xpose.msra.mxu0 0.0
    %1947 = vmatpush.xpose.msra.mxu0 %v1930
    %1948 = vmatmul.f32.gmra.mxu0 %v1928
    %v1949 = vpop.f32.mrf.mxu0
    %v1950 = vadd.f32 0.0, %v1949
    %1951 = vdwg.mxu0
    %1952 = vrot.lane.b32.xlu0 %v1462, 104
    %v1953 = vpop.permute.xlu0 %1952
    %1954 = vrot.lane.b32.xlu0 %v1495, 104
    %v1955 = vpop.permute.xlu0 %1954
    %v1956 = vsel %vm330, %v1953, 0
    %v1958 = vsel %vm330, %v1955, 0
    %1960 = vmatpush.xpose.msra.mxu0 0.0
    %1961 = vmatpush.xpose.msra.mxu0 0.0
    %1962 = vmatpush.xpose.msra.mxu0 0.0
    %1963 = vmatpush.xpose.msra.mxu0 0.0
    %1964 = vmatpush.xpose.msra.mxu0 0.0
    %1965 = vmatpush.xpose.msra.mxu0 0.0
    %1966 = vmatpush.xpose.msra.mxu0 0.0
    %1967 = vmatpush.xpose.msra.mxu0 0.0
    %1968 = vmatpush.xpose.msra.mxu0 0.0
    %1969 = vmatpush.xpose.msra.mxu0 0.0
    %1970 = vmatpush.xpose.msra.mxu0 0.0
    %1971 = vmatpush.xpose.msra.mxu0 0.0
    %1972 = vmatpush.xpose.msra.mxu0 0.0
    %1973 = vmatpush.xpose.msra.mxu0 0.0
    %1974 = vmatpush.xpose.msra.mxu0 0.0
    %1975 = vmatpush.xpose.msra.mxu0 %v1958
    %1976 = vmatmul.f32.gmra.mxu0 %v1956
    %v1977 = vpop.f32.mrf.mxu0
    %v1978 = vadd.f32 0.0, %v1977
    %1979 = vdwg.mxu0
    %v1980 = vmul.f32 %v1950, 0.35355338
    %v1981 = vmul.f32 %v1978, 0.35355338
    %v1982 = vadd.f32 %v1980, %v580
    %v1983 = vadd.f32 %v1981, %v581
    %v1984 = vsel %vm330, %v1982, -inf
    %1985 = vmax.xlane.f32.xlu0 %v1984
    %v1986 = vpop.xlane.xlu0 %1985
    %v1987 = vsel %vm330, %v1983, -inf
    %1988 = vmax.xlane.f32.xlu0 %v1987
    %v1989 = vpop.xlane.xlu0 %1988
    %v1990 = vsub.f32 %v1982, %v1986
    %v1991 = vsub.f32 %v1983, %v1989
    %v1992 = vmul.f32 %v1990, 1.442695
    %v1993 = vpow.pop %v1992
    %v1994 = vmul.f32 %v1991, 1.442695
    %v1995 = vpow.pop %v1994
    %v1996 = vsel %vm330, %v1993, 0.0
    %1997 = vadd.xlane.f32.xlu0 %v1996
    %v1998 = vpop.xlane.xlu0 %1997
    %v1999 = vsel %vm330, %v1995, 0.0
    %2000 = vadd.xlane.f32.xlu0 %v1999
    %v2001 = vpop.xlane.xlu0 %2000
    %v2002 = vrcp.pop %v1998
    %v2003 = vrcp.pop %v2001
    %v2004 = vmul.f32 %v1993, %v2002
    %v2005 = vmul.f32 %v1995, %v2003
    %2006 = vrot.lane.b32.xlu0 %v1525, 104
    %v2007 = vpop.permute.xlu0 %2006
    %v2010 = vsel %vm330, %v2004, 0
    %2012 = vmatpush.msra.mxu0 0.0
    %2013 = vmatpush.msra.mxu0 0.0
    %2014 = vmatpush.msra.mxu0 0.0
    %2015 = vmatpush.msra.mxu0 0.0
    %2016 = vmatpush.msra.mxu0 0.0
    %2017 = vmatpush.msra.mxu0 0.0
    %2018 = vmatpush.msra.mxu0 0.0
    %2019 = vmatpush.msra.mxu0 0.0
    %2020 = vmatpush.msra.mxu0 0.0
    %2021 = vmatpush.msra.mxu0 0.0
    %2022 = vmatpush.msra.mxu0 0.0
    %2023 = vmatpush.msra.mxu0 0.0
    %2024 = vmatpush.msra.mxu0 0.0
    %2025 = vmatpush.msra.mxu0 0.0
    %2026 = vmatpush.msra.mxu0 0.0
    %2027 = vmatpush.msra.mxu0 %v2007
    %2028 = vmatmul.f32.gmra.mxu0 %v2010
    %v2029 = vpop.f32.mrf.mxu0
    %v2030 = vadd.f32 0.0, %v2029
    %2031 = vdwg.mxu0
    %2032 = vrot.lane.b32.xlu0 %v1528, 104
    %v2033 = vpop.permute.xlu0 %2032
    %v2036 = vsel %vm330, %v2005, 0
    %2038 = vmatpush.msra.mxu0 0.0
    %2039 = vmatpush.msra.mxu0 0.0
    %2040 = vmatpush.msra.mxu0 0.0
    %2041 = vmatpush.msra.mxu0 0.0
    %2042 = vmatpush.msra.mxu0 0.0
    %2043 = vmatpush.msra.mxu0 0.0
    %2044 = vmatpush.msra.mxu0 0.0
    %2045 = vmatpush.msra.mxu0 0.0
    %2046 = vmatpush.msra.mxu0 0.0
    %2047 = vmatpush.msra.mxu0 0.0
    %2048 = vmatpush.msra.mxu0 0.0
    %2049 = vmatpush.msra.mxu0 0.0
    %2050 = vmatpush.msra.mxu0 0.0
    %2051 = vmatpush.msra.mxu0 0.0
    %2052 = vmatpush.msra.mxu0 0.0
    %2053 = vmatpush.msra.mxu0 %v2033
    %2054 = vmatmul.f32.gmra.mxu0 %v2036
    %v2055 = vpop.f32.mrf.mxu0
    %v2056 = vadd.f32 0.0, %v2055
    %2057 = vdwg.mxu0
    %2060 = vrot.lane.b32.xlu0 %v1761, 8
    %v2061 = vpop.permute.xlu0 %2060
    %2062 = vrot.lane.b32.xlu0 %v1788, 8
    %v2063 = vpop.permute.xlu0 %2062
    %2068 = vrot.lane.b32.xlu0 %v1896, 16
    %v2069 = vpop.permute.xlu0 %2068
    %2070 = vrot.lane.b32.xlu0 %v1922, 16
    %v2071 = vpop.permute.xlu0 %2070
    %2076 = vrot.lane.b32.xlu0 %v2030, 24
    %v2077 = vpop.permute.xlu0 %2076
    %2078 = vrot.lane.b32.xlu0 %v2056, 24
    %v2079 = vpop.permute.xlu0 %2078
    %v2082 = vsel %vm330, %v1629, %v2061
    %v2083 = vsel %vm330, %v1652, %v2063
    %v2084 = vsel %vm396, %v2082, %v2069
    %v2085 = vsel %vm396, %v2083, %v2071
    %v2086 = vsel %vm1086, %v2084, %v2077
    %v2087 = vsel %vm1086, %v2085, %v2079
    %s2088 = scalar_lea.vmem [#allocation15], 32
    %v2089 = vld [vmem:[%s2088] sm:$0xff]
    %v2090 = vld [vmem:[%s2088 + $0x8] sm:$0xff]
    %v2091 = vld [vmem:[%s2088 + $0x10] sm:$0xff]
    %v2092 = vld [vmem:[%s2088 + $0x18] sm:$0xff]
    %s2093 = scalar_lea.vmem %s33, 1
    %v2094 = vld [vmem:[%s2093] sm:$0x1]
    %v2096 = vperm.slane %v2094, 0
    %v2099 = vsel %vm432, %v2086, 0
    %v2102 = vsel %vm432, %v2087, 0
    %2104 = vmatpush.msra.mxu0 0.0
    %2105 = vmatpush.msra.mxu0 0.0
    %2106 = vmatpush.msra.mxu0 0.0
    %2107 = vmatpush.msra.mxu0 0.0
    %2108 = vmatpush.msra.mxu0 0.0
    %2109 = vmatpush.msra.mxu0 0.0
    %2110 = vmatpush.msra.mxu0 0.0
    %2111 = vmatpush.msra.mxu0 0.0
    %2112 = vmatpush.msra.mxu0 0.0
    %2113 = vmatpush.msra.mxu0 0.0
    %2114 = vmatpush.msra.mxu0 0.0
    %2115 = vmatpush.msra.mxu0 0.0
    %2116 = vmatpush.msra.mxu0 %v2092
    %2117 = vmatpush.msra.mxu0 %v2091
    %2118 = vmatpush.msra.mxu0 %v2090
    %2119 = vmatpush.msra.mxu0 %v2089
    %2120 = vmatmul.f32.gmra.mxu0 %v2099
    %v2121 = vpop.f32.mrf.mxu0
    %v2122 = vadd.f32 %v2096, %v2121
    %2123 = vmatmul.f32.gmra.mxu0 %v2102
    %v2124 = vpop.f32.mrf.mxu0
    %v2125 = vadd.f32 %v2096, %v2124
    %2126 = vdwg.mxu0
    %v2127 = vadd.f32 %v1423, %v2122
    %v2128 = vadd.f32 %v1424, %v2125
    %s2129 = scalar_lea.vmem %s47, 1
    %v2130 = vld [vmem:[%s2129] sm:$0x1]
    %s2131 = scalar_lea.vmem %s49, 1
    %v2132 = vld [vmem:[%s2131] sm:$0x1]
    %v2133 = vsel %vm432, %v2127, 0.0
    %2134 = vadd.xlane.f32.xlu0 %v2133
    %v2135 = vpop.xlane.xlu0 %2134
    %v2136 = vsel %vm432, %v2128, 0.0
    %2137 = vadd.xlane.f32.xlu0 %v2136
    %v2138 = vpop.xlane.xlu0 %2137
    %v2139 = vmul.f32 %v2135, %v1142
    %v2140 = vmul.f32 %v2138, %v1142
    %v2141 = vsub.f32 %v2127, %v2139
    %v2142 = vsub.f32 %v2128, %v2140
    %v2143 = vmul.f32 %v2141, %v2141
    %v2144 = vmul.f32 %v2142, %v2142
    %v2145 = vsel %vm432, %v2143, 0.0
    %2146 = vadd.xlane.f32.xlu0 %v2145
    %v2147 = vpop.xlane.xlu0 %2146
    %v2148 = vsel %vm432, %v2144, 0.0
    %2149 = vadd.xlane.f32.xlu0 %v2148
    %v2150 = vpop.xlane.xlu0 %2149
    %v2151 = vmul.f32 %v2147, %v1142
    %v2152 = vmul.f32 %v2150, %v1142
    %v2153 = vadd.f32 %v2151, 1e-05
    %v2154 = vadd.f32 %v2152, 1e-05
    %v2155 = vrsqrt.pop %v2153
    %v2156 = vmul.f32 %v2155, %v2153
    %v2157 = vmul.f32 %v2156, %v2155
    %v2158 = vmul.f32 0.5, %v2157
    %v2159 = vsub.f32 1.5, %v2158
    %v2160 = vmul.f32 %v2155, %v2159
    %vm2161 = vweird.f32 %v2153
    %vm2162 = vweird.f32 %v2155
    %vm2163 = vmor %vm2161, %vm2162
    %v2164 = vsel %vm2163, %v2155, %v2160
    %v2165 = vrsqrt.pop %v2154
    %v2166 = vmul.f32 %v2165, %v2154
    %v2167 = vmul.f32 %v2166, %v2165
    %v2168 = vmul.f32 0.5, %v2167
    %v2169 = vsub.f32 1.5, %v2168
    %v2170 = vmul.f32 %v2165, %v2169
    %vm2171 = vweird.f32 %v2154
    %vm2172 = vweird.f32 %v2165
    %vm2173 = vmor %vm2171, %vm2172
    %v2174 = vsel %vm2173, %v2165, %v2170
    %v2175 = vmul.f32 %v2141, %v2164
    %v2176 = vmul.f32 %v2142, %v2174
    %v2178 = vperm.slane %v2130, 0
    %v2180 = vmul.f32 %v2175, %v2178
    %v2181 = vmul.f32 %v2176, %v2178
    %v2183 = vperm.slane %v2132, 0
    %v2185 = vadd.f32 %v2180, %v2183
    %v2186 = vadd.f32 %v2181, %v2183
    %s2187 = scalar_lea.vmem [#allocation17], 32
    %v2188 = vld [vmem:[%s2187] sm:$0xff]
    %v2189 = vld [vmem:[%s2187 + $0x8] sm:$0xff]
    %v2190 = vld [vmem:[%s2187 + $0x10] sm:$0xff]
    %v2191 = vld [vmem:[%s2187 + $0x18] sm:$0xff]
    %s2192 = scalar_lea.vmem %s37, 1
    %v2193 = vld [vmem:[%s2192] sm:$0x1]
    %v2195 = vperm.slane %v2193, 0
    %2197 = vmatpush.msra.mxu0 0.0
    %2198 = vmatpush.msra.mxu0 0.0
    %2199 = vmatpush.msra.mxu0 0.0
    %2200 = vmatpush.msra.mxu0 0.0
    %2201 = vmatpush.msra.mxu0 0.0
    %2202 = vmatpush.msra.mxu0 0.0
    %2203 = vmatpush.msra.mxu0 0.0
    %2204 = vmatpush.msra.mxu0 0.0
    %2205 = vmatpush.msra.mxu0 0.0
    %2206 = vmatpush.msra.mxu0 0.0
    %2207 = vmatpush.msra.mxu0 0.0
    %2208 = vmatpush.msra.mxu0 0.0
    %2209 = vmatpush.msra.mxu0 %v2191
    %2210 = vmatpush.msra.mxu0 %v2190
    %2211 = vmatpush.msra.mxu0 %v2189
    %2212 = vmatpush.msra.mxu0 %v2188
    %2213 = vmatmul.f32.gmra.mxu0 %v1200
    %v2214 = vpop.f32.mrf.mxu0
    %v2215 = vadd.f32 %v2195, %v2214
    %2216 = vdwg.mxu0
    %v2218 = vrot.slane %v2215, 1
    %v2219 = vperm.slane %v2215, 0
    %v2220 = vperm.slane %v2218, 0
    %v2223 = vadd.f32 %v2185, %v2219
    %v2224 = vadd.f32 %v2186, %v2220
    %s2225 = scalar_lea.vmem %s51, 1
    %v2226 = vld [vmem:[%s2225] sm:$0x1]
    %s2227 = scalar_lea.vmem %s53, 1
    %v2228 = vld [vmem:[%s2227] sm:$0x1]
    %v2229 = vsel %vm432, %v2223, 0.0
    %2230 = vadd.xlane.f32.xlu0 %v2229
    %v2231 = vpop.xlane.xlu0 %2230
    %v2232 = vsel %vm432, %v2224, 0.0
    %2233 = vadd.xlane.f32.xlu0 %v2232
    %v2234 = vpop.xlane.xlu0 %2233
    %v2235 = vmul.f32 %v2231, %v1142
    %v2236 = vmul.f32 %v2234, %v1142
    %v2237 = vsub.f32 %v2223, %v2235
    %v2238 = vsub.f32 %v2224, %v2236
    %v2239 = vmul.f32 %v2237, %v2237
    %v2240 = vmul.f32 %v2238, %v2238
    %v2241 = vsel %vm432, %v2239, 0.0
    %2242 = vadd.xlane.f32.xlu0 %v2241
    %v2243 = vpop.xlane.xlu0 %2242
    %v2244 = vsel %vm432, %v2240, 0.0
    %2245 = vadd.xlane.f32.xlu0 %v2244
    %v2246 = vpop.xlane.xlu0 %2245
    %v2247 = vmul.f32 %v2243, %v1142
    %v2248 = vmul.f32 %v2246, %v1142
    %v2249 = vadd.f32 %v2247, 1e-05
    %v2250 = vadd.f32 %v2248, 1e-05
    %v2251 = vrsqrt.pop %v2249
    %v2252 = vmul.f32 %v2251, %v2249
    %v2253 = vmul.f32 %v2252, %v2251
    %v2254 = vmul.f32 0.5, %v2253
    %v2255 = vsub.f32 1.5, %v2254
    %v2256 = vmul.f32 %v2251, %v2255
    %vm2257 = vweird.f32 %v2249
    %vm2258 = vweird.f32 %v2251
    %vm2259 = vmor %vm2257, %vm2258
    %v2260 = vsel %vm2259, %v2251, %v2256
    %v2261 = vrsqrt.pop %v2250
    %v2262 = vmul.f32 %v2261, %v2250
    %v2263 = vmul.f32 %v2262, %v2261
    %v2264 = vmul.f32 0.5, %v2263
    %v2265 = vsub.f32 1.5, %v2264
    %v2266 = vmul.f32 %v2261, %v2265
    %vm2267 = vweird.f32 %v2250
    %vm2268 = vweird.f32 %v2261
    %vm2269 = vmor %vm2267, %vm2268
    %v2270 = vsel %vm2269, %v2261, %v2266
    %v2271 = vmul.f32 %v2237, %v2260
    %v2272 = vmul.f32 %v2238, %v2270
    %v2274 = vperm.slane %v2226, 0
    %v2276 = vmul.f32 %v2271, %v2274
    %v2277 = vmul.f32 %v2272, %v2274
    %v2279 = vperm.slane %v2228, 0
    %v2281 = vadd.f32 %v2276, %v2279
    %v2282 = vadd.f32 %v2277, %v2279
    %s2283 = scalar_lea.vmem [#allocation18], 32
    %v2284 = vld [vmem:[%s2283] sm:$0xff]
    %v2285 = vld [vmem:[%s2283 + $0x8] sm:$0xff]
    %v2286 = vld [vmem:[%s2283 + $0x10] sm:$0xff]
    %v2287 = vld [vmem:[%s2283 + $0x18] sm:$0xff]
    %s2288 = scalar_lea.vmem %s41, 1
    %v2289 = vld [vmem:[%s2288] sm:$0x1]
    %v2291 = vperm.slane %v2289, 0
    %v2294 = vsel %vm432, %v2281, 0
    %v2297 = vsel %vm432, %v2282, 0
    %2299 = vmatpush.msra.mxu0 0.0
    %2300 = vmatpush.msra.mxu0 0.0
    %2301 = vmatpush.msra.mxu0 0.0
    %2302 = vmatpush.msra.mxu0 0.0
    %2303 = vmatpush.msra.mxu0 0.0
    %2304 = vmatpush.msra.mxu0 0.0
    %2305 = vmatpush.msra.mxu0 0.0
    %2306 = vmatpush.msra.mxu0 0.0
    %2307 = vmatpush.msra.mxu0 0.0
    %2308 = vmatpush.msra.mxu0 0.0
    %2309 = vmatpush.msra.mxu0 0.0
    %2310 = vmatpush.msra.mxu0 0.0
    %2311 = vmatpush.msra.mxu0 %v2287
    %2312 = vmatpush.msra.mxu0 %v2286
    %2313 = vmatpush.msra.mxu0 %v2285
    %2314 = vmatpush.msra.mxu0 %v2284
    %2315 = vmatmul.f32.gmra.mxu0 %v2294
    %v2316 = vpop.f32.mrf.mxu0
    %v2317 = vadd.f32 %v2291, %v2316
    %2318 = vmatmul.f32.gmra.mxu0 %v2297
    %v2319 = vpop.f32.mrf.mxu0
    %v2320 = vadd.f32 %v2291, %v2319
    %2321 = vdwg.mxu0
    %v2322 = vmax.f32 %v2317, 0.0
    %v2323 = vmax.f32 %v2320, 0.0
    %s2324 = scalar_lea.vmem %s43, 64
    %v2325 = vld [vmem:[%s2324] sm:$0xff]
    %v2326 = vld [vmem:[%s2324 + $0x8] sm:$0xff]
    %v2327 = vld [vmem:[%s2324 + $0x10] sm:$0xff]
    %v2328 = vld [vmem:[%s2324 + $0x18] sm:$0xff]
    %v2329 = vld [vmem:[%s2324 + $0x20] sm:$0xff]
    %v2330 = vld [vmem:[%s2324 + $0x28] sm:$0xff]
    %v2331 = vld [vmem:[%s2324 + $0x30] sm:$0xff]
    %v2332 = vld [vmem:[%s2324 + $0x38] sm:$0xff]
    %s2333 = scalar_lea.vmem %s45, 1
    %v2334 = vld [vmem:[%s2333] sm:$0x1]
    %v2336 = vperm.slane %v2334, 0
    %v2339 = vsel %vm1337, %v2322, 0
    %v2342 = vsel %vm1337, %v2323, 0
    %2344 = vmatpush.msra.mxu0 0.0
    %2345 = vmatpush.msra.mxu0 0.0
    %2346 = vmatpush.msra.mxu0 0.0
    %2347 = vmatpush.msra.mxu0 0.0
    %2348 = vmatpush.msra.mxu0 0.0
    %2349 = vmatpush.msra.mxu0 0.0
    %2350 = vmatpush.msra.mxu0 0.0
    %2351 = vmatpush.msra.mxu0 0.0
    %2352 = vmatpush.msra.mxu0 %v2332
    %2353 = vmatpush.msra.mxu0 %v2331
    %2354 = vmatpush.msra.mxu0 %v2330
    %2355 = vmatpush.msra.mxu0 %v2329
    %2356 = vmatpush.msra.mxu0 %v2328
    %2357 = vmatpush.msra.mxu0 %v2327
    %2358 = vmatpush.msra.mxu0 %v2326
    %2359 = vmatpush.msra.mxu0 %v2325
    %2360 = vmatmul.f32.gmra.mxu0 %v2339
    %v2361 = vpop.f32.mrf.mxu0
    %v2362 = vadd.f32 %v2336, %v2361
    %2363 = vmatmul.f32.gmra.mxu0 %v2342
    %v2364 = vpop.f32.mrf.mxu0
    %v2365 = vadd.f32 %v2336, %v2364
    %2366 = vdwg.mxu0
    %v2367 = vadd.f32 %v2281, %v2362
    %v2368 = vadd.f32 %v2282, %v2365
    %s2369 = scalar_lea.vmem [#allocation20], 1
    %v2370 = vld [vmem:[%s2369] sm:$0x1]
    %s2371 = scalar_lea.vmem %s57, 1
    %v2372 = vld [vmem:[%s2371] sm:$0x1]
    %v2373 = vsel %vm432, %v2367, 0.0
    %2374 = vadd.xlane.f32.xlu0 %v2373
    %v2375 = vpop.xlane.xlu0 %2374
    %v2376 = vsel %vm432, %v2368, 0.0
    %2377 = vadd.xlane.f32.xlu0 %v2376
    %v2378 = vpop.xlane.xlu0 %2377
    %v2379 = vmul.f32 %v2375, %v1142
    %v2380 = vmul.f32 %v2378, %v1142
    %v2381 = vsub.f32 %v2367, %v2379
    %v2382 = vsub.f32 %v2368, %v2380
    %v2383 = vmul.f32 %v2381, %v2381
    %v2384 = vmul.f32 %v2382, %v2382
    %v2385 = vsel %vm432, %v2383, 0.0
    %2386 = vadd.xlane.f32.xlu0 %v2385
    %v2387 = vpop.xlane.xlu0 %2386
    %v2388 = vsel %vm432, %v2384, 0.0
    %2389 = vadd.xlane.f32.xlu0 %v2388
    %v2390 = vpop.xlane.xlu0 %2389
    %v2391 = vmul.f32 %v2387, %v1142
    %v2392 = vmul.f32 %v2390, %v1142
    %v2393 = vadd.f32 %v2391, 1e-05
    %v2394 = vadd.f32 %v2392, 1e-05
    %v2395 = vrsqrt.pop %v2393
    %v2396 = vmul.f32 %v2395, %v2393
    %v2397 = vmul.f32 %v2396, %v2395
    %v2398 = vmul.f32 0.5, %v2397
    %v2399 = vsub.f32 1.5, %v2398
    %v2400 = vmul.f32 %v2395, %v2399
    %vm2401 = vweird.f32 %v2393
    %vm2402 = vweird.f32 %v2395
    %vm2403 = vmor %vm2401, %vm2402
    %v2404 = vsel %vm2403, %v2395, %v2400
    %v2405 = vrsqrt.pop %v2394
    %v2406 = vmul.f32 %v2405, %v2394
    %v2407 = vmul.f32 %v2406, %v2405
    %v2408 = vmul.f32 0.5, %v2407
    %v2409 = vsub.f32 1.5, %v2408
    %v2410 = vmul.f32 %v2405, %v2409
    %vm2411 = vweird.f32 %v2394
    %vm2412 = vweird.f32 %v2405
    %vm2413 = vmor %vm2411, %vm2412
    %v2414 = vsel %vm2413, %v2405, %v2410
    %v2415 = vmul.f32 %v2381, %v2404
    %v2416 = vmul.f32 %v2382, %v2414
    %v2418 = vperm.slane %v2370, 0
    %v2420 = vmul.f32 %v2415, %v2418
    %v2421 = vmul.f32 %v2416, %v2418
    %v2423 = vperm.slane %v2372, 0
    %v2425 = vadd.f32 %v2420, %v2423
    %v2426 = vadd.f32 %v2421, %v2423
    %v2427 = vld [vmem:[#allocation21] sm:$0x1]
    %v2429 = vperm.slane %v2427, 0
    %v2431 = vmul.f32 %v2425, %v2429
    %v2432 = vmul.f32 %v2426, %v2429
    %v2433 = vsel %vm432, %v2431, 0.0
    %2434 = vadd.xlane.f32.xlu0 %v2433
    %v2435 = vpop.xlane.xlu0 %2434
    %v2436 = vsel %vm432, %v2432, 0.0
    %2437 = vadd.xlane.f32.xlu0 %v2436
    %v2438 = vpop.xlane.xlu0 %2437
    %v2439 = vld [vmem:[#allocation2] sm:$0x1]
    %v2441 = vperm.slane %v2439, 0
    %2442 = vset.pattern.permute.xlu0 0
    %2443 = vperm.xlu0 %2442, %v2441
    %v2444 = vpop.permute.xlu0 %2443
    %v2446 = vadd.f32 %v2435, %v2444
    %v2447 = vadd.f32 %v2438, %v2444
    %v2450 = vperm.slane %v2446, %v322
    %v2451 = vadd.s32 %v322, 4294967288
    %v2452 = vperm.slane %v2447, %v2451
    %vm2453 = vcmask 130112
    %v2454 = vsel %vm2453, %v2452, %v2450
    %vm2456 = vcmask 122880
    %2457 = vst.msk [vmem:[#allocation23] sm:$0x1] %vm2456, %v2454
    // Predicated region
    $region174: #{tpu_custom_call.1} parent=1 // pred_check
      _
    $region175: #{tpu_custom_call.1} parent=1 // pred_check_branch
      %2459 = sbr.rel (0) target = $region177
    $region176: #{tpu_custom_call.1} parent=1 // pred_region
      %2461 = vsyncadd [#allocation5], 0
      %s2463 = sshll.u32 [#allocation23], 4
      %s2464 = int_to_ptr.vmem [resolvable:$true] %s2463
      %s2465 = sshll.u32 %s63, 4
      %s2466 = int_to_ptr.hbm [resolvable:$true] %s2465
      %2468 = dma.vmem_to_hbm [thread:$0]  %s2464, 16, %s2466, [#allocation5]
    $region177: #{tpu_custom_call.1} parent=1 // pred_fallthru
      _
    // Predicated region
    $region178: #{tpu_custom_call.1} parent=1 // pred_check
      _
    $region179: #{tpu_custom_call.1} parent=1 // pred_check_branch
      %2470 = sbr.rel (0) target = $region181
    $region180: #{tpu_custom_call.1} parent=1 // pred_region
      %2472 = dma.done [#allocation5], 16
    $region181: #{tpu_custom_call.1} parent=1 // pred_fallthru
      _
    %2473 = vsyncpa [#allocation4], 1
    %2474 = vsyncpa [#allocation7], 1
    %2475 = vsyncpa [#allocation10], 1
    %2476 = vsyncpa [#allocation13], 1
    %2477 = vsyncpa [#allocation16], 1
    %2478 = vsyncpa [#allocation19], 1
    %2479 = vsyncpa [#allocation22], 1
    %2480 = vsyncpa [#allocation5], 1

</llo_original>
